<compile_context>
chip_gen: v5e
topology: v5e:2x2
jax: 0.10.0
libtpu: 0.0.40
codegen_flags: <defaults>
</compile_context>

<pallas_src>
import math
import jax
import jax.numpy as jnp
from jax.experimental import pallas as pl
from jax.experimental.pallas import tpu as pltpu

_LANE = 128


def _pad_up(n, m=_LANE):
    return ((n + m - 1) // m) * m


def _autoencoder_kernel(x_ref, *refs):
    """refs = (w0, w1, ..., w9, bias_slab_ref, out_ref)."""
    out_ref = refs[-1]
    b_ref = refs[-2]          # (1, sum_of_padded_fan_out) packed biases
    w_refs = refs[:-2]
    n_layers = len(w_refs)

    h = x_ref[...]
    if h.dtype != jnp.float32:
        h = h.astype(jnp.float32)

    off = 0
    for i, w_ref in enumerate(w_refs):
        w = w_ref[...]
        od = w.shape[1]
        b = b_ref[:, off:off + od]        # static, lane-aligned (multiple of 128)
        off += od
        h = jnp.dot(h, w, preferred_element_type=jnp.float32) + b
        # ReLU after every Linear EXCEPT the encoder output (layer 4) and the
        # decoder output (layer 9) — exactly mirroring the nn.Sequential.
        if i != n_layers // 2 - 1 and i != n_layers - 1:
            h = jnp.maximum(h, 0.0)
    out_ref[...] = h.astype(out_ref.dtype)


def make_params(input_size, encoding_size, key):
    """Deterministic params, PyTorch-Linear-style uniform(-1/sqrt(in), 1/sqrt(in))."""
    stepsize = math.ceil((input_size - encoding_size) / 5)
    enc_dims = [input_size,
                input_size - stepsize,
                input_size - 2 * stepsize,
                input_size - 3 * stepsize,
                input_size - 4 * stepsize,
                encoding_size]
    dec_dims = [encoding_size,
                input_size - 4 * stepsize,
                input_size - 3 * stepsize,
                input_size - 2 * stepsize,
                input_size - 1 * stepsize,
                input_size]
    layer_dims = (list(zip(enc_dims[:-1], enc_dims[1:]))
                  + list(zip(dec_dims[:-1], dec_dims[1:])))

    params = []
    for fan_in, fan_out in layer_dims:
        key, kw, kb = jax.random.split(key, 3)
        bound = 1.0 / math.sqrt(fan_in)
        w = jax.random.uniform(kw, (fan_in, fan_out), jnp.float32, -bound, bound)
        b = jax.random.uniform(kb, (fan_out,), jnp.float32, -bound, bound)
        params.append((w, b))
    return params


def autoencoder_forward(x, params, *, tile_batch=128):
    B, D_in = x.shape

    # --- zero-pad every weight/bias so all lane dims are multiples of 128 ----
    padded_w, padded_b = [], []
    for w, b in params:
        fi, fo = w.shape
        pfi, pfo = _pad_up(fi), _pad_up(fo)
        wp = jnp.zeros((pfi, pfo), jnp.float32).at[:fi, :fo].set(w)
        bp = jnp.zeros((1, pfo), jnp.float32).at[0, :fo].set(b)
        padded_w.append(wp)
        padded_b.append(bp)
    bias_slab = jnp.concatenate(padded_b, axis=1)   # single (1, sum_out) operand

    D_in_pad = padded_w[0].shape[0]
    D_out = params[-1][0].shape[1]
    D_out_pad = padded_w[-1].shape[1]

    # --- pad the activation tile (batch to a multiple of TB, features to 128s)
    TB = tile_batch if B >= tile_batch else _pad_up(B, 8)
    B_pad = ((B + TB - 1) // TB) * TB
    if (B_pad, D_in_pad) != (B, D_in):
        x = jnp.zeros((B_pad, D_in_pad), x.dtype).at[:B, :D_in].set(x)

    grid = (pl.cdiv(B_pad, TB),)

    # x/out tile over batch; weights + bias slab use a constant index_map so
    # they are fetched once and remain VMEM-resident across the batch loop.
    in_specs = [pl.BlockSpec((TB, D_in_pad), lambda i: (i, 0))]
    for wp in padded_w:
        in_specs.append(pl.BlockSpec(wp.shape, lambda i: (0, 0)))
    in_specs.append(pl.BlockSpec(bias_slab.shape, lambda i: (0, 0)))

    out = pl.pallas_call(
        _autoencoder_kernel,
        out_shape=jax.ShapeDtypeStruct((B_pad, D_out_pad), x.dtype),
        grid=grid,
        in_specs=in_specs,
        out_specs=pl.BlockSpec((TB, D_out_pad), lambda i: (i, 0)),
        compiler_params=pltpu.CompilerParams(
            dimension_semantics=("parallel",)),
    )(x, *padded_w, bias_slab)

    return out[:B, :D_out]


if __name__ == "__main__":
    # input_size=384, encoding_size=64 -> stepsize=64,
    # widths 384 -> 320 -> 256 -> 192 -> 128 -> 64 -> 128 -> ... -> 384
    # (padded internally to 384/384/256/256/128/128/... for lane density).
    # batch=256 so the grid has 2 batch tiles of 128 rows each.
    input_size, encoding_size, batch = 384, 64, 256

    key = jax.random.PRNGKey(0)
    kx, kp = jax.random.split(key)
    x = jax.random.normal(kx, (batch, input_size), jnp.float32)
    params = make_params(input_size, encoding_size, kp)

    out = jax.block_until_ready(autoencoder_forward(x, params))
    assert out.shape == (batch, input_size)

    # Pure-JAX reference for correctness.
    h = x
    for i, (w, b) in enumerate(params):
        h = h @ w + b
        if i not in (4, 9):
            h = jnp.maximum(h, 0.0)
    assert jnp.allclose(out, h, atol=2e-4, rtol=2e-4)

    print("KERNEL_OK")
</pallas_src>

<mosaic_0001>
module attributes {stable_mosaic.version = 11 : i64} {
  func.func @_autoencoder_kernel(%arg0: i32, %arg1: memref<128x384xf32, #tpu.memory_space<vmem>>, %arg2: memref<384x384xf32, #tpu.memory_space<vmem>>, %arg3: memref<384x256xf32, #tpu.memory_space<vmem>>, %arg4: memref<256x256xf32, #tpu.memory_space<vmem>>, %arg5: memref<256x128xf32, #tpu.memory_space<vmem>>, %arg6: memref<128x128xf32, #tpu.memory_space<vmem>>, %arg7: memref<128x128xf32, #tpu.memory_space<vmem>>, %arg8: memref<128x256xf32, #tpu.memory_space<vmem>>, %arg9: memref<256x256xf32, #tpu.memory_space<vmem>>, %arg10: memref<256x384xf32, #tpu.memory_space<vmem>>, %arg11: memref<384x384xf32, #tpu.memory_space<vmem>>, %arg12: memref<1x2560xf32, #tpu.memory_space<vmem>>, %arg13: memref<128x384xf32, #tpu.memory_space<vmem>>) attributes {dimension_semantics = [#tpu.dimension_semantics<parallel>], iteration_bounds = array<i64: 2>, scalar_prefetch = 0 : i64, scratch_operands = 0 : i64, tpu.core_type = #tpu.core_type<tc>, window_params = [{transform_indices = @transform_0, window_bounds = array<i64: 128, 384>}, {pipeline_mode = #tpu.pipeline_mode<synchronous>, transform_indices = @transform_1, window_bounds = array<i64: 384, 384>}, {pipeline_mode = #tpu.pipeline_mode<synchronous>, transform_indices = @transform_2, window_bounds = array<i64: 384, 256>}, {pipeline_mode = #tpu.pipeline_mode<synchronous>, transform_indices = @transform_3, window_bounds = array<i64: 256, 256>}, {pipeline_mode = #tpu.pipeline_mode<synchronous>, transform_indices = @transform_4, window_bounds = array<i64: 256, 128>}, {pipeline_mode = #tpu.pipeline_mode<synchronous>, transform_indices = @transform_5, window_bounds = array<i64: 128, 128>}, {pipeline_mode = #tpu.pipeline_mode<synchronous>, transform_indices = @transform_6, window_bounds = array<i64: 128, 128>}, {pipeline_mode = #tpu.pipeline_mode<synchronous>, transform_indices = @transform_7, window_bounds = array<i64: 128, 256>}, {pipeline_mode = #tpu.pipeline_mode<synchronous>, transform_indices = @transform_8, window_bounds = array<i64: 256, 256>}, {pipeline_mode = #tpu.pipeline_mode<synchronous>, transform_indices = @transform_9, window_bounds = array<i64: 256, 384>}, {pipeline_mode = #tpu.pipeline_mode<synchronous>, transform_indices = @transform_10, window_bounds = array<i64: 384, 384>}, {pipeline_mode = #tpu.pipeline_mode<synchronous>, transform_indices = @transform_11, window_bounds = array<i64: 1, 2560>}, {transform_indices = @transform_12, window_bounds = array<i64: 128, 384>}]} {
    %c0 = arith.constant 0 : index
    %c0_0 = arith.constant 0 : index
    %0 = vector.load %arg1[%c0, %c0_0] : memref<128x384xf32, #tpu.memory_space<vmem>>, vector<128x384xf32>
    %c0_1 = arith.constant 0 : index
    %c0_2 = arith.constant 0 : index
    %1 = vector.load %arg2[%c0_1, %c0_2] : memref<384x384xf32, #tpu.memory_space<vmem>>, vector<384x384xf32>
    %c0_3 = arith.constant 0 : index
    %c0_4 = arith.constant 0 : index
    %2 = vector.load %arg12[%c0_3, %c0_4] : memref<1x2560xf32, #tpu.memory_space<vmem>>, vector<1x384xf32>
    %cst = arith.constant dense<0.000000e+00> : vector<128x384xf32>
    %3 = tpu.matmul %0, %1, %cst {dimension_numbers = #tpu.dot_dimension_numbers<[1], [0], [0], [1], [0, 0, 1, 1], [], []>} : vector<128x384xf32>, vector<384x384xf32>, vector<128x384xf32> -> vector<128x384xf32>
    %4 = vector.broadcast %2 : vector<1x384xf32> to vector<128x384xf32>
    %5 = arith.addf %3, %4 : vector<128x384xf32>
    %cst_5 = arith.constant 0.000000e+00 : f32
    %6 = vector.broadcast %cst_5 : f32 to vector<128x384xf32>
    %7 = arith.maximumf %5, %6 : vector<128x384xf32>
    %c0_6 = arith.constant 0 : index
    %c0_7 = arith.constant 0 : index
    %8 = vector.load %arg3[%c0_6, %c0_7] : memref<384x256xf32, #tpu.memory_space<vmem>>, vector<384x256xf32>
    %c0_8 = arith.constant 0 : index
    %c384 = arith.constant 384 : index
    %9 = vector.load %arg12[%c0_8, %c384] : memref<1x2560xf32, #tpu.memory_space<vmem>>, vector<1x256xf32>
    %cst_9 = arith.constant dense<0.000000e+00> : vector<128x256xf32>
    %10 = tpu.matmul %7, %8, %cst_9 {dimension_numbers = #tpu.dot_dimension_numbers<[1], [0], [0], [1], [0, 0, 1, 1], [], []>} : vector<128x384xf32>, vector<384x256xf32>, vector<128x256xf32> -> vector<128x256xf32>
    %11 = vector.broadcast %9 : vector<1x256xf32> to vector<128x256xf32>
    %12 = arith.addf %10, %11 : vector<128x256xf32>
    %cst_10 = arith.constant 0.000000e+00 : f32
    %13 = vector.broadcast %cst_10 : f32 to vector<128x256xf32>
    %14 = arith.maximumf %12, %13 : vector<128x256xf32>
    %c0_11 = arith.constant 0 : index
    %c0_12 = arith.constant 0 : index
    %15 = vector.load %arg4[%c0_11, %c0_12] : memref<256x256xf32, #tpu.memory_space<vmem>>, vector<256x256xf32>
    %c0_13 = arith.constant 0 : index
    %c640 = arith.constant 640 : index
    %16 = vector.load %arg12[%c0_13, %c640] : memref<1x2560xf32, #tpu.memory_space<vmem>>, vector<1x256xf32>
    %cst_14 = arith.constant dense<0.000000e+00> : vector<128x256xf32>
    %17 = tpu.matmul %14, %15, %cst_14 {dimension_numbers = #tpu.dot_dimension_numbers<[1], [0], [0], [1], [0, 0, 1, 1], [], []>} : vector<128x256xf32>, vector<256x256xf32>, vector<128x256xf32> -> vector<128x256xf32>
    %18 = vector.broadcast %16 : vector<1x256xf32> to vector<128x256xf32>
    %19 = arith.addf %17, %18 : vector<128x256xf32>
    %cst_15 = arith.constant 0.000000e+00 : f32
    %20 = vector.broadcast %cst_15 : f32 to vector<128x256xf32>
    %21 = arith.maximumf %19, %20 : vector<128x256xf32>
    %c0_16 = arith.constant 0 : index
    %c0_17 = arith.constant 0 : index
    %22 = vector.load %arg5[%c0_16, %c0_17] : memref<256x128xf32, #tpu.memory_space<vmem>>, vector<256x128xf32>
    %c0_18 = arith.constant 0 : index
    %c896 = arith.constant 896 : index
    %23 = vector.load %arg12[%c0_18, %c896] : memref<1x2560xf32, #tpu.memory_space<vmem>>, vector<1x128xf32>
    %cst_19 = arith.constant dense<0.000000e+00> : vector<128x128xf32>
    %24 = tpu.matmul %21, %22, %cst_19 {dimension_numbers = #tpu.dot_dimension_numbers<[1], [0], [0], [1], [0, 0, 1, 1], [], []>} : vector<128x256xf32>, vector<256x128xf32>, vector<128x128xf32> -> vector<128x128xf32>
    %25 = vector.broadcast %23 : vector<1x128xf32> to vector<128x128xf32>
    %26 = arith.addf %24, %25 : vector<128x128xf32>
    %cst_20 = arith.constant 0.000000e+00 : f32
    %27 = vector.broadcast %cst_20 : f32 to vector<128x128xf32>
    %28 = arith.maximumf %26, %27 : vector<128x128xf32>
    %c0_21 = arith.constant 0 : index
    %c0_22 = arith.constant 0 : index
    %29 = vector.load %arg6[%c0_21, %c0_22] : memref<128x128xf32, #tpu.memory_space<vmem>>, vector<128x128xf32>
    %c0_23 = arith.constant 0 : index
    %c1024 = arith.constant 1024 : index
    %30 = vector.load %arg12[%c0_23, %c1024] : memref<1x2560xf32, #tpu.memory_space<vmem>>, vector<1x128xf32>
    %cst_24 = arith.constant dense<0.000000e+00> : vector<128x128xf32>
    %31 = tpu.matmul %28, %29, %cst_24 {dimension_numbers = #tpu.dot_dimension_numbers<[1], [0], [0], [1], [0, 0, 1, 1], [], []>} : vector<128x128xf32>, vector<128x128xf32>, vector<128x128xf32> -> vector<128x128xf32>
    %32 = vector.broadcast %30 : vector<1x128xf32> to vector<128x128xf32>
    %33 = arith.addf %31, %32 : vector<128x128xf32>
    %c0_25 = arith.constant 0 : index
    %c0_26 = arith.constant 0 : index
    %34 = vector.load %arg7[%c0_25, %c0_26] : memref<128x128xf32, #tpu.memory_space<vmem>>, vector<128x128xf32>
    %c0_27 = arith.constant 0 : index
    %c1152 = arith.constant 1152 : index
    %35 = vector.load %arg12[%c0_27, %c1152] : memref<1x2560xf32, #tpu.memory_space<vmem>>, vector<1x128xf32>
    %cst_28 = arith.constant dense<0.000000e+00> : vector<128x128xf32>
    %36 = tpu.matmul %33, %34, %cst_28 {dimension_numbers = #tpu.dot_dimension_numbers<[1], [0], [0], [1], [0, 0, 1, 1], [], []>} : vector<128x128xf32>, vector<128x128xf32>, vector<128x128xf32> -> vector<128x128xf32>
    %37 = vector.broadcast %35 : vector<1x128xf32> to vector<128x128xf32>
    %38 = arith.addf %36, %37 : vector<128x128xf32>
    %cst_29 = arith.constant 0.000000e+00 : f32
    %39 = vector.broadcast %cst_29 : f32 to vector<128x128xf32>
    %40 = arith.maximumf %38, %39 : vector<128x128xf32>
    %c0_30 = arith.constant 0 : index
    %c0_31 = arith.constant 0 : index
    %41 = vector.load %arg8[%c0_30, %c0_31] : memref<128x256xf32, #tpu.memory_space<vmem>>, vector<128x256xf32>
    %c0_32 = arith.constant 0 : index
    %c1280 = arith.constant 1280 : index
    %42 = vector.load %arg12[%c0_32, %c1280] : memref<1x2560xf32, #tpu.memory_space<vmem>>, vector<1x256xf32>
    %cst_33 = arith.constant dense<0.000000e+00> : vector<128x256xf32>
    %43 = tpu.matmul %40, %41, %cst_33 {dimension_numbers = #tpu.dot_dimension_numbers<[1], [0], [0], [1], [0, 0, 1, 1], [], []>} : vector<128x128xf32>, vector<128x256xf32>, vector<128x256xf32> -> vector<128x256xf32>
    %44 = vector.broadcast %42 : vector<1x256xf32> to vector<128x256xf32>
    %45 = arith.addf %43, %44 : vector<128x256xf32>
    %cst_34 = arith.constant 0.000000e+00 : f32
    %46 = vector.broadcast %cst_34 : f32 to vector<128x256xf32>
    %47 = arith.maximumf %45, %46 : vector<128x256xf32>
    %c0_35 = arith.constant 0 : index
    %c0_36 = arith.constant 0 : index
    %48 = vector.load %arg9[%c0_35, %c0_36] : memref<256x256xf32, #tpu.memory_space<vmem>>, vector<256x256xf32>
    %c0_37 = arith.constant 0 : index
    %c1536 = arith.constant 1536 : index
    %49 = vector.load %arg12[%c0_37, %c1536] : memref<1x2560xf32, #tpu.memory_space<vmem>>, vector<1x256xf32>
    %cst_38 = arith.constant dense<0.000000e+00> : vector<128x256xf32>
    %50 = tpu.matmul %47, %48, %cst_38 {dimension_numbers = #tpu.dot_dimension_numbers<[1], [0], [0], [1], [0, 0, 1, 1], [], []>} : vector<128x256xf32>, vector<256x256xf32>, vector<128x256xf32> -> vector<128x256xf32>
    %51 = vector.broadcast %49 : vector<1x256xf32> to vector<128x256xf32>
    %52 = arith.addf %50, %51 : vector<128x256xf32>
    %cst_39 = arith.constant 0.000000e+00 : f32
    %53 = vector.broadcast %cst_39 : f32 to vector<128x256xf32>
    %54 = arith.maximumf %52, %53 : vector<128x256xf32>
    %c0_40 = arith.constant 0 : index
    %c0_41 = arith.constant 0 : index
    %55 = vector.load %arg10[%c0_40, %c0_41] : memref<256x384xf32, #tpu.memory_space<vmem>>, vector<256x384xf32>
    %c0_42 = arith.constant 0 : index
    %c1792 = arith.constant 1792 : index
    %56 = vector.load %arg12[%c0_42, %c1792] : memref<1x2560xf32, #tpu.memory_space<vmem>>, vector<1x384xf32>
    %cst_43 = arith.constant dense<0.000000e+00> : vector<128x384xf32>
    %57 = tpu.matmul %54, %55, %cst_43 {dimension_numbers = #tpu.dot_dimension_numbers<[1], [0], [0], [1], [0, 0, 1, 1], [], []>} : vector<128x256xf32>, vector<256x384xf32>, vector<128x384xf32> -> vector<128x384xf32>
    %58 = vector.broadcast %56 : vector<1x384xf32> to vector<128x384xf32>
    %59 = arith.addf %57, %58 : vector<128x384xf32>
    %cst_44 = arith.constant 0.000000e+00 : f32
    %60 = vector.broadcast %cst_44 : f32 to vector<128x384xf32>
    %61 = arith.maximumf %59, %60 : vector<128x384xf32>
    %c0_45 = arith.constant 0 : index
    %c0_46 = arith.constant 0 : index
    %62 = vector.load %arg11[%c0_45, %c0_46] : memref<384x384xf32, #tpu.memory_space<vmem>>, vector<384x384xf32>
    %c0_47 = arith.constant 0 : index
    %c2176 = arith.constant 2176 : index
    %63 = vector.load %arg12[%c0_47, %c2176] : memref<1x2560xf32, #tpu.memory_space<vmem>>, vector<1x384xf32>
    %cst_48 = arith.constant dense<0.000000e+00> : vector<128x384xf32>
    %64 = tpu.matmul %61, %62, %cst_48 {dimension_numbers = #tpu.dot_dimension_numbers<[1], [0], [0], [1], [0, 0, 1, 1], [], []>} : vector<128x384xf32>, vector<384x384xf32>, vector<128x384xf32> -> vector<128x384xf32>
    %65 = vector.broadcast %63 : vector<1x384xf32> to vector<128x384xf32>
    %66 = arith.addf %64, %65 : vector<128x384xf32>
    %c0_49 = arith.constant 0 : index
    %c0_50 = arith.constant 0 : index
    %67 = vector.load %arg13[%c0_49, %c0_50] : memref<128x384xf32, #tpu.memory_space<vmem>>, vector<128x384xf32>
    tpu.vector_store %arg13[%c0_49, %c0_50], %66 {strides = array<i32>} : memref<128x384xf32, #tpu.memory_space<vmem>>, vector<128x384xf32>,
    return
  }
  func.func @transform_0(%arg0: i32) -> (i32, i32) {
    %c0_i32 = arith.constant 0 : i32
    %c0_i32_0 = arith.constant 0 : i32
    return %arg0, %c0_i32 : i32, i32
  }
  func.func @transform_1(%arg0: i32) -> (i32, i32) {
    %c0_i32 = arith.constant 0 : i32
    %c0_i32_0 = arith.constant 0 : i32
    %c0_i32_1 = arith.constant 0 : i32
    return %c0_i32, %c0_i32_0 : i32, i32
  }
  func.func @transform_2(%arg0: i32) -> (i32, i32) {
    %c0_i32 = arith.constant 0 : i32
    %c0_i32_0 = arith.constant 0 : i32
    %c0_i32_1 = arith.constant 0 : i32
    return %c0_i32, %c0_i32_0 : i32, i32
  }
  func.func @transform_3(%arg0: i32) -> (i32, i32) {
    %c0_i32 = arith.constant 0 : i32
    %c0_i32_0 = arith.constant 0 : i32
    %c0_i32_1 = arith.constant 0 : i32
    return %c0_i32, %c0_i32_0 : i32, i32
  }
  func.func @transform_4(%arg0: i32) -> (i32, i32) {
    %c0_i32 = arith.constant 0 : i32
    %c0_i32_0 = arith.constant 0 : i32
    %c0_i32_1 = arith.constant 0 : i32
    return %c0_i32, %c0_i32_0 : i32, i32
  }
  func.func @transform_5(%arg0: i32) -> (i32, i32) {
    %c0_i32 = arith.constant 0 : i32
    %c0_i32_0 = arith.constant 0 : i32
    %c0_i32_1 = arith.constant 0 : i32
    return %c0_i32, %c0_i32_0 : i32, i32
  }
  func.func @transform_6(%arg0: i32) -> (i32, i32) {
    %c0_i32 = arith.constant 0 : i32
    %c0_i32_0 = arith.constant 0 : i32
    %c0_i32_1 = arith.constant 0 : i32
    return %c0_i32, %c0_i32_0 : i32, i32
  }
  func.func @transform_7(%arg0: i32) -> (i32, i32) {
    %c0_i32 = arith.constant 0 : i32
    %c0_i32_0 = arith.constant 0 : i32
    %c0_i32_1 = arith.constant 0 : i32
    return %c0_i32, %c0_i32_0 : i32, i32
  }
  func.func @transform_8(%arg0: i32) -> (i32, i32) {
    %c0_i32 = arith.constant 0 : i32
    %c0_i32_0 = arith.constant 0 : i32
    %c0_i32_1 = arith.constant 0 : i32
    return %c0_i32, %c0_i32_0 : i32, i32
  }
  func.func @transform_9(%arg0: i32) -> (i32, i32) {
    %c0_i32 = arith.constant 0 : i32
    %c0_i32_0 = arith.constant 0 : i32
    %c0_i32_1 = arith.constant 0 : i32
    return %c0_i32, %c0_i32_0 : i32, i32
  }
  func.func @transform_10(%arg0: i32) -> (i32, i32) {
    %c0_i32 = arith.constant 0 : i32
    %c0_i32_0 = arith.constant 0 : i32
    %c0_i32_1 = arith.constant 0 : i32
    return %c0_i32, %c0_i32_0 : i32, i32
  }
  func.func @transform_11(%arg0: i32) -> (i32, i32) {
    %c0_i32 = arith.constant 0 : i32
    %c0_i32_0 = arith.constant 0 : i32
    %c0_i32_1 = arith.constant 0 : i32
    return %c0_i32, %c0_i32_0 : i32, i32
  }
  func.func @transform_12(%arg0: i32) -> (i32, i32) {
    %c0_i32 = arith.constant 0 : i32
    %c0_i32_0 = arith.constant 0 : i32
    return %arg0, %c0_i32 : i32, i32
  }
}

</mosaic_0001>

<llo_original>
// kernel: tpu_custom_call.1
$region0: #{tpu_custom_call.1}
  #allocation0 [shape = 'u32[]', space=smem, size = 0x4, offset = 0x4, fixed_abs, tag = 'smem constant byte address 0x4 - core index']
  #allocation1 [shape = 'u32[72,128]{1,0:T(1,128)}', space=vmem, size = 0x9000, scoped, tag = 'internal scratch']
  %s0 = inlined_call_operand.hbm [shape: f32[256,384], index: 0, kind: input, shape index: {}]
  %s1 = inlined_call_operand.hbm [shape: f32[384,384], index: 1, kind: input, shape index: {}]
  %s2 = inlined_call_operand.hbm [shape: f32[384,256], index: 2, kind: input, shape index: {}]
  %s3 = inlined_call_operand.hbm [shape: f32[256,256], index: 3, kind: input, shape index: {}]
  %s4 = inlined_call_operand.hbm [shape: f32[256,128], index: 4, kind: input, shape index: {}]
  %s5 = inlined_call_operand.hbm [shape: f32[128,128], index: 5, kind: input, shape index: {}]
  %s6 = inlined_call_operand.hbm [shape: f32[128,128], index: 6, kind: input, shape index: {}]
  %s7 = inlined_call_operand.hbm [shape: f32[128,256], index: 7, kind: input, shape index: {}]
  %s8 = inlined_call_operand.hbm [shape: f32[256,256], index: 8, kind: input, shape index: {}]
  %s9 = inlined_call_operand.hbm [shape: f32[256,384], index: 9, kind: input, shape index: {}]
  %s10 = inlined_call_operand.hbm [shape: f32[384,384], index: 10, kind: input, shape index: {}]
  %s11 = inlined_call_operand.hbm [shape: f32[1,2560], index: 11, kind: input, shape index: {}]
  %s12 = inlined_call_operand.hbm [shape: f32[256,384], index: 12, kind: output, shape index: {}]
  %s13 = sld [smem:[#allocation0]]
  $region129: #{tpu_custom_call.1} parent=0
    _
  %s15 = ssub.s32 1, %s13
  %s16 = scalar_select 0, %s15, %s13
  $region1: #{tpu_custom_call.1} parent=0
    #allocation2 [shape = 'u8[393216]{0}', space=vmem, size = 0x60000, scoped, tag = 'input window, operand 0']
    #allocation3 [shape = 's32[2]{0}', space=sflag, size = 0x8, scoped, tag = 'scoped memory for tpu_custom_call.1']
    #allocation4 [shape = 's32[2]{0}', space=sflag, size = 0x8, scoped, tag = 'scoped memory for tpu_custom_call.1']
    #allocation5 [shape = 'u8[589824]{0}', space=vmem, size = 0x90000, scoped, tag = 'input window, operand 1, single buffered']
    #allocation6 [shape = 's32[1]{0}', space=sflag, size = 0x4, scoped, tag = 'scoped memory for tpu_custom_call.1']
    #allocation7 [shape = 'u8[393216]{0}', space=vmem, size = 0x60000, scoped, tag = 'input window, operand 2, single buffered']
    #allocation8 [shape = 'u8[262144]{0}', space=vmem, size = 0x40000, scoped, tag = 'input window, operand 3, single buffered']
    #allocation9 [shape = 's32[1]{0}', space=sflag, size = 0x4, scoped, tag = 'scoped memory for tpu_custom_call.1']
    #allocation10 [shape = 'u8[131072]{0}', space=vmem, size = 0x20000, scoped, tag = 'input window, operand 4, single buffered']
    #allocation11 [shape = 'u8[65536]{0}', space=vmem, size = 0x10000, scoped, tag = 'input window, operand 5, single buffered']
    #allocation12 [shape = 's32[1]{0}', space=sflag, size = 0x4, scoped, tag = 'scoped memory for tpu_custom_call.1']
    #allocation13 [shape = 'u8[65536]{0}', space=vmem, size = 0x10000, scoped, tag = 'input window, operand 6, single buffered']
    #allocation14 [shape = 'u8[131072]{0}', space=vmem, size = 0x20000, scoped, tag = 'input window, operand 7, single buffered']
    #allocation15 [shape = 's32[1]{0}', space=sflag, size = 0x4, scoped, tag = 'scoped memory for tpu_custom_call.1']
    #allocation16 [shape = 'u8[262144]{0}', space=vmem, size = 0x40000, scoped, tag = 'input window, operand 8, single buffered']
    #allocation17 [shape = 'u8[393216]{0}', space=vmem, size = 0x60000, scoped, tag = 'input window, operand 9, single buffered']
    #allocation18 [shape = 's32[1]{0}', space=sflag, size = 0x4, scoped, tag = 'scoped memory for tpu_custom_call.1']
    #allocation19 [shape = 'u8[589824]{0}', space=vmem, size = 0x90000, scoped, tag = 'input window, operand 10, single buffered']
    #allocation20 [shape = 'u8[10240]{0}', space=vmem, size = 0x2800, scoped, tag = 'input window, operand 11, single buffered']
    #allocation21 [shape = 's32[1]{0}', space=sflag, size = 0x4, scoped, tag = 'scoped memory for tpu_custom_call.1']
    #allocation22 [shape = 'u8[393216]{0}', space=vmem, size = 0x60000, scoped, tag = 'output window, operand 0']
    %17 = vsyncpa [#allocation3], 0
    %s18 = scalar_lea.sflag [#allocation3], 1
    %19 = vsyncpa %s18, 0
    %20 = vsyncpa [#allocation6], 0
    %21 = vsyncpa [#allocation9], 0
    %22 = vsyncpa [#allocation12], 0
    %23 = vsyncpa [#allocation15], 0
    %24 = vsyncpa [#allocation18], 0
    %25 = vsyncpa [#allocation21], 0
    %26 = vsyncpa [#allocation4], 0
    %s27 = scalar_lea.sflag [#allocation4], 1
    %28 = vsyncpa %s27, 0
    loop: start=0, step=1, limit=4
    $region2: #{tpu_custom_call.1} parent=1 // loop_pre_header
      _
    $region3: #{tpu_custom_call.1} parent=1 // loop_header
      %s30 = sphi 0, %s34
      %p31 = scmp.ge.s32.totalorder %s30, 4
      %s40 = sphi 0, %s42
      %s43 = sphi 0, %s40
      %s44 = sphi 0, %s43
      %s60 = sphi 0, %s44
      %s64 = sphi 0, %s64
      %s66 = sphi 0, %s64
      %s67 = sphi 0, %s66
      %s81 = sphi 0, %s67
      %s85 = sphi 0, %s85
      %s87 = sphi 0, %s85
      %s88 = sphi 0, %s87
      %s102 = sphi 0, %s88
      %s106 = sphi 0, %s106
      %s108 = sphi 0, %s106
      %s109 = sphi 0, %s108
      %s123 = sphi 0, %s109
      %s127 = sphi 0, %s127
      %s129 = sphi 0, %s127
      %s130 = sphi 0, %s129
      %s144 = sphi 0, %s130
      %s148 = sphi 0, %s148
      %s150 = sphi 0, %s148
      %s151 = sphi 0, %s150
      %s165 = sphi 0, %s151
      %s169 = sphi 0, %s169
      %s171 = sphi 0, %s169
      %s172 = sphi 0, %s171
      %s186 = sphi 0, %s172
      %s190 = sphi 0, %s190
      %s192 = sphi 0, %s190
      %s193 = sphi 0, %s192
      %s207 = sphi 0, %s193
      %s211 = sphi 0, %s211
      %s213 = sphi 0, %s211
      %s214 = sphi 0, %s213
      %s228 = sphi 0, %s214
      %s232 = sphi 0, %s232
      %s234 = sphi 0, %s232
      %s235 = sphi 0, %s234
      %s249 = sphi 0, %s235
      %s253 = sphi 0, %s253
      %s255 = sphi 0, %s253
      %s256 = sphi 0, %s255
      %s270 = sphi 0, %s256
      %s274 = sphi 0, %s274
      %s276 = sphi 0, %s274
      %s277 = sphi 0, %s276
      %s291 = sphi 0, %s277
      %s297 = sphi 0, %s299
      %s300 = sphi 0, %s297
      %s301 = sphi 0, %s300
      %s317 = sphi 0, %s301
    $region4: #{tpu_custom_call.1} parent=1 // loop_header_branch
      %33 = sbr.rel (%p31) target = $region8
    $region5: #{tpu_custom_call.1} parent=1 // loop_body
      %s35 = ssub.s32 %s30, 1
      %s36 = ssub.s32 %s30, 2
      %s37 = sadd.s32 %s30, 1
      %s38 = ssub.s32 %s30, %s37
      %p39 = scmp.eq.s32.totalorder %s38, 0
      %s41 = sadd.s32 %s40, 1
      %s42 = scalar_select %p39, %s40, %s41
      %p45 = pneg %p39
      %p46 = scmp.eq.s32.totalorder %s30, 1
      %p47 = por %p45, %p46
      %p48 = scmp.ne.s32.totalorder %s40, %s43
      %p49 = scmp.eq.s32.totalorder %s30, 0
      %p50 = por %p48, %p49
      %p51 = scmp.ne.s32.totalorder %s40, %s43
      %p52 = scmp.eq.s32.totalorder %s35, 1
      %p53 = por %p51, %p52
      %p54 = scmp.ne.s32.totalorder %s43, %s44
      %p55 = scmp.eq.s32.totalorder %s35, 0
      %p56 = por %p54, %p55
      %p57 = scmp.ne.s32.totalorder %s43, %s44
      %p58 = scmp.eq.s32.totalorder %s36, 1
      %p59 = por %p57, %p58
      %p61 = scmp.ne.s32.totalorder %s44, %s60
      %p62 = scmp.eq.s32.totalorder %s36, 0
      %p63 = por %p61, %p62
      %s65 = sadd.s32 %s64, 1
      %p68 = scmp.eq.s32.totalorder %s30, 1
      %p69 = scmp.ne.s32.totalorder %s64, %s66
      %p70 = scmp.eq.s32.totalorder %s30, 0
      %p71 = por %p69, %p70
      %p72 = scmp.ne.s32.totalorder %s64, %s66
      %p73 = scmp.eq.s32.totalorder %s35, 1
      %p74 = por %p72, %p73
      %p75 = scmp.ne.s32.totalorder %s66, %s67
      %p76 = scmp.eq.s32.totalorder %s35, 0
      %p77 = por %p75, %p76
      %p78 = scmp.ne.s32.totalorder %s66, %s67
      %p79 = scmp.eq.s32.totalorder %s36, 1
      %p80 = por %p78, %p79
      %p82 = scmp.ne.s32.totalorder %s67, %s81
      %p83 = scmp.eq.s32.totalorder %s36, 0
      %p84 = por %p82, %p83
      %s86 = sadd.s32 %s85, 1
      %p89 = scmp.eq.s32.totalorder %s30, 1
      %p90 = scmp.ne.s32.totalorder %s85, %s87
      %p91 = scmp.eq.s32.totalorder %s30, 0
      %p92 = por %p90, %p91
      %p93 = scmp.ne.s32.totalorder %s85, %s87
      %p94 = scmp.eq.s32.totalorder %s35, 1
      %p95 = por %p93, %p94
      %p96 = scmp.ne.s32.totalorder %s87, %s88
      %p97 = scmp.eq.s32.totalorder %s35, 0
      %p98 = por %p96, %p97
      %p99 = scmp.ne.s32.totalorder %s87, %s88
      %p100 = scmp.eq.s32.totalorder %s36, 1
      %p101 = por %p99, %p100
      %p103 = scmp.ne.s32.totalorder %s88, %s102
      %p104 = scmp.eq.s32.totalorder %s36, 0
      %p105 = por %p103, %p104
      %s107 = sadd.s32 %s106, 1
      %p110 = scmp.eq.s32.totalorder %s30, 1
      %p111 = scmp.ne.s32.totalorder %s106, %s108
      %p112 = scmp.eq.s32.totalorder %s30, 0
      %p113 = por %p111, %p112
      %p114 = scmp.ne.s32.totalorder %s106, %s108
      %p115 = scmp.eq.s32.totalorder %s35, 1
      %p116 = por %p114, %p115
      %p117 = scmp.ne.s32.totalorder %s108, %s109
      %p118 = scmp.eq.s32.totalorder %s35, 0
      %p119 = por %p117, %p118
      %p120 = scmp.ne.s32.totalorder %s108, %s109
      %p121 = scmp.eq.s32.totalorder %s36, 1
      %p122 = por %p120, %p121
      %p124 = scmp.ne.s32.totalorder %s109, %s123
      %p125 = scmp.eq.s32.totalorder %s36, 0
      %p126 = por %p124, %p125
      %s128 = sadd.s32 %s127, 1
      %p131 = scmp.eq.s32.totalorder %s30, 1
      %p132 = scmp.ne.s32.totalorder %s127, %s129
      %p133 = scmp.eq.s32.totalorder %s30, 0
      %p134 = por %p132, %p133
      %p135 = scmp.ne.s32.totalorder %s127, %s129
      %p136 = scmp.eq.s32.totalorder %s35, 1
      %p137 = por %p135, %p136
      %p138 = scmp.ne.s32.totalorder %s129, %s130
      %p139 = scmp.eq.s32.totalorder %s35, 0
      %p140 = por %p138, %p139
      %p141 = scmp.ne.s32.totalorder %s129, %s130
      %p142 = scmp.eq.s32.totalorder %s36, 1
      %p143 = por %p141, %p142
      %p145 = scmp.ne.s32.totalorder %s130, %s144
      %p146 = scmp.eq.s32.totalorder %s36, 0
      %p147 = por %p145, %p146
      %s149 = sadd.s32 %s148, 1
      %p152 = scmp.eq.s32.totalorder %s30, 1
      %p153 = scmp.ne.s32.totalorder %s148, %s150
      %p154 = scmp.eq.s32.totalorder %s30, 0
      %p155 = por %p153, %p154
      %p156 = scmp.ne.s32.totalorder %s148, %s150
      %p157 = scmp.eq.s32.totalorder %s35, 1
      %p158 = por %p156, %p157
      %p159 = scmp.ne.s32.totalorder %s150, %s151
      %p160 = scmp.eq.s32.totalorder %s35, 0
      %p161 = por %p159, %p160
      %p162 = scmp.ne.s32.totalorder %s150, %s151
      %p163 = scmp.eq.s32.totalorder %s36, 1
      %p164 = por %p162, %p163
      %p166 = scmp.ne.s32.totalorder %s151, %s165
      %p167 = scmp.eq.s32.totalorder %s36, 0
      %p168 = por %p166, %p167
      %s170 = sadd.s32 %s169, 1
      %p173 = scmp.eq.s32.totalorder %s30, 1
      %p174 = scmp.ne.s32.totalorder %s169, %s171
      %p175 = scmp.eq.s32.totalorder %s30, 0
      %p176 = por %p174, %p175
      %p177 = scmp.ne.s32.totalorder %s169, %s171
      %p178 = scmp.eq.s32.totalorder %s35, 1
      %p179 = por %p177, %p178
      %p180 = scmp.ne.s32.totalorder %s171, %s172
      %p181 = scmp.eq.s32.totalorder %s35, 0
      %p182 = por %p180, %p181
      %p183 = scmp.ne.s32.totalorder %s171, %s172
      %p184 = scmp.eq.s32.totalorder %s36, 1
      %p185 = por %p183, %p184
      %p187 = scmp.ne.s32.totalorder %s172, %s186
      %p188 = scmp.eq.s32.totalorder %s36, 0
      %p189 = por %p187, %p188
      %s191 = sadd.s32 %s190, 1
      %p194 = scmp.eq.s32.totalorder %s30, 1
      %p195 = scmp.ne.s32.totalorder %s190, %s192
      %p196 = scmp.eq.s32.totalorder %s30, 0
      %p197 = por %p195, %p196
      %p198 = scmp.ne.s32.totalorder %s190, %s192
      %p199 = scmp.eq.s32.totalorder %s35, 1
      %p200 = por %p198, %p199
      %p201 = scmp.ne.s32.totalorder %s192, %s193
      %p202 = scmp.eq.s32.totalorder %s35, 0
      %p203 = por %p201, %p202
      %p204 = scmp.ne.s32.totalorder %s192, %s193
      %p205 = scmp.eq.s32.totalorder %s36, 1
      %p206 = por %p204, %p205
      %p208 = scmp.ne.s32.totalorder %s193, %s207
      %p209 = scmp.eq.s32.totalorder %s36, 0
      %p210 = por %p208, %p209
      %s212 = sadd.s32 %s211, 1
      %p215 = scmp.eq.s32.totalorder %s30, 1
      %p216 = scmp.ne.s32.totalorder %s211, %s213
      %p217 = scmp.eq.s32.totalorder %s30, 0
      %p218 = por %p216, %p217
      %p219 = scmp.ne.s32.totalorder %s211, %s213
      %p220 = scmp.eq.s32.totalorder %s35, 1
      %p221 = por %p219, %p220
      %p222 = scmp.ne.s32.totalorder %s213, %s214
      %p223 = scmp.eq.s32.totalorder %s35, 0
      %p224 = por %p222, %p223
      %p225 = scmp.ne.s32.totalorder %s213, %s214
      %p226 = scmp.eq.s32.totalorder %s36, 1
      %p227 = por %p225, %p226
      %p229 = scmp.ne.s32.totalorder %s214, %s228
      %p230 = scmp.eq.s32.totalorder %s36, 0
      %p231 = por %p229, %p230
      %s233 = sadd.s32 %s232, 1
      %p236 = scmp.eq.s32.totalorder %s30, 1
      %p237 = scmp.ne.s32.totalorder %s232, %s234
      %p238 = scmp.eq.s32.totalorder %s30, 0
      %p239 = por %p237, %p238
      %p240 = scmp.ne.s32.totalorder %s232, %s234
      %p241 = scmp.eq.s32.totalorder %s35, 1
      %p242 = por %p240, %p241
      %p243 = scmp.ne.s32.totalorder %s234, %s235
      %p244 = scmp.eq.s32.totalorder %s35, 0
      %p245 = por %p243, %p244
      %p246 = scmp.ne.s32.totalorder %s234, %s235
      %p247 = scmp.eq.s32.totalorder %s36, 1
      %p248 = por %p246, %p247
      %p250 = scmp.ne.s32.totalorder %s235, %s249
      %p251 = scmp.eq.s32.totalorder %s36, 0
      %p252 = por %p250, %p251
      %s254 = sadd.s32 %s253, 1
      %p257 = scmp.eq.s32.totalorder %s30, 1
      %p258 = scmp.ne.s32.totalorder %s253, %s255
      %p259 = scmp.eq.s32.totalorder %s30, 0
      %p260 = por %p258, %p259
      %p261 = scmp.ne.s32.totalorder %s253, %s255
      %p262 = scmp.eq.s32.totalorder %s35, 1
      %p263 = por %p261, %p262
      %p264 = scmp.ne.s32.totalorder %s255, %s256
      %p265 = scmp.eq.s32.totalorder %s35, 0
      %p266 = por %p264, %p265
      %p267 = scmp.ne.s32.totalorder %s255, %s256
      %p268 = scmp.eq.s32.totalorder %s36, 1
      %p269 = por %p267, %p268
      %p271 = scmp.ne.s32.totalorder %s256, %s270
      %p272 = scmp.eq.s32.totalorder %s36, 0
      %p273 = por %p271, %p272
      %s275 = sadd.s32 %s274, 1
      %p278 = scmp.eq.s32.totalorder %s30, 1
      %p279 = scmp.ne.s32.totalorder %s274, %s276
      %p280 = scmp.eq.s32.totalorder %s30, 0
      %p281 = por %p279, %p280
      %p282 = scmp.ne.s32.totalorder %s274, %s276
      %p283 = scmp.eq.s32.totalorder %s35, 1
      %p284 = por %p282, %p283
      %p285 = scmp.ne.s32.totalorder %s276, %s277
      %p286 = scmp.eq.s32.totalorder %s35, 0
      %p287 = por %p285, %p286
      %p288 = scmp.ne.s32.totalorder %s276, %s277
      %p289 = scmp.eq.s32.totalorder %s36, 1
      %p290 = por %p288, %p289
      %p292 = scmp.ne.s32.totalorder %s277, %s291
      %p293 = scmp.eq.s32.totalorder %s36, 0
      %p294 = por %p292, %p293
      %s295 = ssub.s32 %s30, %s37
      %p296 = scmp.eq.s32.totalorder %s295, 0
      %s298 = sadd.s32 %s297, 1
      %s299 = scalar_select %p296, %s297, %s298
      %p302 = pneg %p296
      %p303 = scmp.eq.s32.totalorder %s30, 1
      %p304 = por %p302, %p303
      %p305 = scmp.ne.s32.totalorder %s297, %s300
      %p306 = scmp.eq.s32.totalorder %s30, 0
      %p307 = por %p305, %p306
      %p308 = scmp.ne.s32.totalorder %s297, %s300
      %p309 = scmp.eq.s32.totalorder %s35, 1
      %p310 = por %p308, %p309
      %p311 = scmp.ne.s32.totalorder %s300, %s301
      %p312 = scmp.eq.s32.totalorder %s35, 0
      %p313 = por %p311, %p312
      %p314 = scmp.ne.s32.totalorder %s300, %s301
      %p315 = scmp.eq.s32.totalorder %s36, 1
      %p316 = por %p314, %p315
      %p318 = scmp.ne.s32.totalorder %s301, %s317
      %p319 = scmp.eq.s32.totalorder %s36, 0
      %p320 = por %p318, %p319
      %p321 = scmp.le.s32.totalorder 1, %s30
      %p322 = scmp.lt.s32.totalorder %s30, 3
      %p323 = pnand %p321, %p322
      %p324 = pneg %p323
      // Predicated region
      $region9: #{tpu_custom_call.1} parent=5 // pred_check
        _
      $region10: #{tpu_custom_call.1} parent=5 // pred_check_branch
        %326 = sbr.rel (%p323) target = $region12
      $region11: #{tpu_custom_call.1} parent=5 // pred_region
        %s327 = ssub.s32 %s30, 1
        // Predicated region
        $region13: #{tpu_custom_call.1} parent=11 // pred_check
          %p328 = pneg %p77
        $region14: #{tpu_custom_call.1} parent=11 // pred_check_branch
          %330 = sbr.rel (%p328) target = $region16
        $region15: #{tpu_custom_call.1} parent=11 // pred_region
          %332 = vsyncadd [#allocation6], 0
          %s333 = sshll.u32 %s1, 4
          %s334 = int_to_ptr.hbm [resolvable:$true] %s333
          %s335 = sshll.u32 [#allocation5], 4
          %s336 = int_to_ptr.vmem [resolvable:$true] %s335
          %341 = dma.hbm_to_vmem [thread:$0]  %s334, 18432, %s336, [#allocation6], 384, 384, 24
        $region16: #{tpu_custom_call.1} parent=11 // pred_fallthru
          _
        // Predicated region
        $region17: #{tpu_custom_call.1} parent=11 // pred_check
          %p342 = pneg %p98
        $region18: #{tpu_custom_call.1} parent=11 // pred_check_branch
          %344 = sbr.rel (%p342) target = $region20
        $region19: #{tpu_custom_call.1} parent=11 // pred_region
          %346 = vsyncadd [#allocation6], 0
          %s347 = sshll.u32 %s2, 4
          %s348 = int_to_ptr.hbm [resolvable:$true] %s347
          %s349 = sshll.u32 [#allocation7], 4
          %s350 = int_to_ptr.vmem [resolvable:$true] %s349
          %355 = dma.hbm_to_vmem [thread:$0]  %s348, 12288, %s350, [#allocation6], 256, 256, 16
        $region20: #{tpu_custom_call.1} parent=11 // pred_fallthru
          _
        // Predicated region
        $region21: #{tpu_custom_call.1} parent=11 // pred_check
          %p356 = pneg %p119
        $region22: #{tpu_custom_call.1} parent=11 // pred_check_branch
          %358 = sbr.rel (%p356) target = $region24
        $region23: #{tpu_custom_call.1} parent=11 // pred_region
          %360 = vsyncadd [#allocation9], 0
          %s361 = sshll.u32 %s3, 4
          %s362 = int_to_ptr.hbm [resolvable:$true] %s361
          %s363 = sshll.u32 [#allocation8], 4
          %s364 = int_to_ptr.vmem [resolvable:$true] %s363
          %369 = dma.hbm_to_vmem [thread:$0]  %s362, 8192, %s364, [#allocation9], 256, 256, 16
        $region24: #{tpu_custom_call.1} parent=11 // pred_fallthru
          _
        // Predicated region
        $region25: #{tpu_custom_call.1} parent=11 // pred_check
          %p370 = pneg %p140
        $region26: #{tpu_custom_call.1} parent=11 // pred_check_branch
          %372 = sbr.rel (%p370) target = $region28
        $region27: #{tpu_custom_call.1} parent=11 // pred_region
          %374 = vsyncadd [#allocation9], 0
          %s375 = sshll.u32 %s4, 4
          %s376 = int_to_ptr.hbm [resolvable:$true] %s375
          %s377 = sshll.u32 [#allocation10], 4
          %s378 = int_to_ptr.vmem [resolvable:$true] %s377
          %383 = dma.hbm_to_vmem [thread:$0]  %s376, 4096, %s378, [#allocation9], 128, 128, 8
        $region28: #{tpu_custom_call.1} parent=11 // pred_fallthru
          _
        // Predicated region
        $region29: #{tpu_custom_call.1} parent=11 // pred_check
          %p384 = pneg %p161
        $region30: #{tpu_custom_call.1} parent=11 // pred_check_branch
          %386 = sbr.rel (%p384) target = $region32
        $region31: #{tpu_custom_call.1} parent=11 // pred_region
          %388 = vsyncadd [#allocation12], 0
          %s389 = sshll.u32 %s5, 4
          %s390 = int_to_ptr.hbm [resolvable:$true] %s389
          %s391 = sshll.u32 [#allocation11], 4
          %s392 = int_to_ptr.vmem [resolvable:$true] %s391
          %397 = dma.hbm_to_vmem [thread:$0]  %s390, 2048, %s392, [#allocation12], 128, 128, 8
        $region32: #{tpu_custom_call.1} parent=11 // pred_fallthru
          _
        // Predicated region
        $region33: #{tpu_custom_call.1} parent=11 // pred_check
          %p398 = pneg %p182
        $region34: #{tpu_custom_call.1} parent=11 // pred_check_branch
          %400 = sbr.rel (%p398) target = $region36
        $region35: #{tpu_custom_call.1} parent=11 // pred_region
          %402 = vsyncadd [#allocation12], 0
          %s403 = sshll.u32 %s6, 4
          %s404 = int_to_ptr.hbm [resolvable:$true] %s403
          %s405 = sshll.u32 [#allocation13], 4
          %s406 = int_to_ptr.vmem [resolvable:$true] %s405
          %411 = dma.hbm_to_vmem [thread:$0]  %s404, 2048, %s406, [#allocation12], 128, 128, 8
        $region36: #{tpu_custom_call.1} parent=11 // pred_fallthru
          _
        // Predicated region
        $region37: #{tpu_custom_call.1} parent=11 // pred_check
          %p412 = pneg %p203
        $region38: #{tpu_custom_call.1} parent=11 // pred_check_branch
          %414 = sbr.rel (%p412) target = $region40
        $region39: #{tpu_custom_call.1} parent=11 // pred_region
          %416 = vsyncadd [#allocation15], 0
          %s417 = sshll.u32 %s7, 4
          %s418 = int_to_ptr.hbm [resolvable:$true] %s417
          %s419 = sshll.u32 [#allocation14], 4
          %s420 = int_to_ptr.vmem [resolvable:$true] %s419
          %425 = dma.hbm_to_vmem [thread:$0]  %s418, 4096, %s420, [#allocation15], 256, 256, 16
        $region40: #{tpu_custom_call.1} parent=11 // pred_fallthru
          _
        // Predicated region
        $region41: #{tpu_custom_call.1} parent=11 // pred_check
          %p426 = pneg %p224
        $region42: #{tpu_custom_call.1} parent=11 // pred_check_branch
          %428 = sbr.rel (%p426) target = $region44
        $region43: #{tpu_custom_call.1} parent=11 // pred_region
          %430 = vsyncadd [#allocation15], 0
          %s431 = sshll.u32 %s8, 4
          %s432 = int_to_ptr.hbm [resolvable:$true] %s431
          %s433 = sshll.u32 [#allocation16], 4
          %s434 = int_to_ptr.vmem [resolvable:$true] %s433
          %439 = dma.hbm_to_vmem [thread:$0]  %s432, 8192, %s434, [#allocation15], 256, 256, 16
        $region44: #{tpu_custom_call.1} parent=11 // pred_fallthru
          _
        // Predicated region
        $region45: #{tpu_custom_call.1} parent=11 // pred_check
          %p440 = pneg %p245
        $region46: #{tpu_custom_call.1} parent=11 // pred_check_branch
          %442 = sbr.rel (%p440) target = $region48
        $region47: #{tpu_custom_call.1} parent=11 // pred_region
          %444 = vsyncadd [#allocation18], 0
          %s445 = sshll.u32 %s9, 4
          %s446 = int_to_ptr.hbm [resolvable:$true] %s445
          %s447 = sshll.u32 [#allocation17], 4
          %s448 = int_to_ptr.vmem [resolvable:$true] %s447
          %453 = dma.hbm_to_vmem [thread:$0]  %s446, 12288, %s448, [#allocation18], 384, 384, 24
        $region48: #{tpu_custom_call.1} parent=11 // pred_fallthru
          _
        // Predicated region
        $region49: #{tpu_custom_call.1} parent=11 // pred_check
          %p454 = pneg %p266
        $region50: #{tpu_custom_call.1} parent=11 // pred_check_branch
          %456 = sbr.rel (%p454) target = $region52
        $region51: #{tpu_custom_call.1} parent=11 // pred_region
          %458 = vsyncadd [#allocation18], 0
          %s459 = sshll.u32 %s10, 4
          %s460 = int_to_ptr.hbm [resolvable:$true] %s459
          %s461 = sshll.u32 [#allocation19], 4
          %s462 = int_to_ptr.vmem [resolvable:$true] %s461
          %467 = dma.hbm_to_vmem [thread:$0]  %s460, 18432, %s462, [#allocation18], 384, 384, 24
        $region52: #{tpu_custom_call.1} parent=11 // pred_fallthru
          _
        // Predicated region
        $region53: #{tpu_custom_call.1} parent=11 // pred_check
          %p468 = pneg %p287
        $region54: #{tpu_custom_call.1} parent=11 // pred_check_branch
          %470 = sbr.rel (%p468) target = $region56
        $region55: #{tpu_custom_call.1} parent=11 // pred_region
          %472 = vsyncadd [#allocation21], 0
          %s474 = sshll.u32 %s11, 4
          %s475 = int_to_ptr.hbm [resolvable:$true] %s474
          %s476 = sshll.u32 [#allocation20], 4
          %s477 = int_to_ptr.vmem [resolvable:$true] %s476
          %479 = dma.hbm_to_vmem [thread:$0]  %s475, 320, %s477, [#allocation21]
        $region56: #{tpu_custom_call.1} parent=11 // pred_fallthru
          _
      $region12: #{tpu_custom_call.1} parent=5 // pred_fallthru
        _
      %p480 = scmp.lt.s32.totalorder %s30, 2
      // Predicated region
      $region57: #{tpu_custom_call.1} parent=5 // pred_check
        %p481 = pneg %p480
      $region58: #{tpu_custom_call.1} parent=5 // pred_check_branch
        %483 = sbr.rel (%p481) target = $region60
      $region59: #{tpu_custom_call.1} parent=5 // pred_region
        // Predicated region
        $region61: #{tpu_custom_call.1} parent=59 // pred_check
          %p484 = pneg %p50
        $region62: #{tpu_custom_call.1} parent=59 // pred_check_branch
          %486 = sbr.rel (%p484) target = $region64
        $region63: #{tpu_custom_call.1} parent=59 // pred_region
          %s487 = sand.u32 %s40, 1
          %s488 = scalar_lea.sflag [#allocation3], %s487
          %s489 = sand.u32 %s40, 1
          %s490 = smul.addr %s489, 384
          %s491 = scalar_lea.vmem [#allocation2], %s490
          %s492 = smul.u32 16, %s30
          %494 = vsyncadd %s488, 0
          %s495 = smul.addr %s492, 3
          %s496 = smul.addr %s495, 8
          %s497 = scalar_lea.hbm %s0, %s496
          %s498 = sshll.u32 %s497, 4
          %s499 = int_to_ptr.hbm [resolvable:$true] %s498
          %s500 = sshll.u32 %s491, 4
          %s501 = int_to_ptr.vmem [resolvable:$true] %s500
          %506 = dma.hbm_to_vmem [thread:$0]  %s499, 6144, %s501, %s488, 384, 384, 24
        $region64: #{tpu_custom_call.1} parent=59 // pred_fallthru
          _
      $region60: #{tpu_custom_call.1} parent=5 // pred_fallthru
        _
      %p507 = scmp.le.s32.totalorder 1, %s30
      %p508 = scmp.lt.s32.totalorder %s30, 3
      %p509 = pnand %p507, %p508
      %p510 = pneg %p509
      // Predicated region
      $region65: #{tpu_custom_call.1} parent=5 // pred_check
        _
      $region66: #{tpu_custom_call.1} parent=5 // pred_check_branch
        %512 = sbr.rel (%p509) target = $region68
      $region67: #{tpu_custom_call.1} parent=5 // pred_region
        %s513 = ssub.s32 %s30, 1
        %s514 = sand.u32 %s43, 1
        %s515 = scalar_lea.sflag [#allocation3], %s514
        %s516 = sand.u32 %s43, 1
        %s517 = smul.addr %s516, 384
        %s518 = scalar_lea.vmem [#allocation2], %s517
        // Predicated region
        $region69: #{tpu_custom_call.1} parent=67 // pred_check
          %p519 = pneg %p56
        $region70: #{tpu_custom_call.1} parent=67 // pred_check_branch
          %521 = sbr.rel (%p519) target = $region72
        $region71: #{tpu_custom_call.1} parent=67 // pred_region
          %523 = dma.done %s515, 6144
        $region72: #{tpu_custom_call.1} parent=67 // pred_fallthru
          _
        // Predicated region
        $region73: #{tpu_custom_call.1} parent=67 // pred_check
          %p524 = pneg %p77
        $region74: #{tpu_custom_call.1} parent=67 // pred_check_branch
          %526 = sbr.rel (%p524) target = $region76
        $region75: #{tpu_custom_call.1} parent=67 // pred_region
          %528 = dma.done [#allocation6], 18432
        $region76: #{tpu_custom_call.1} parent=67 // pred_fallthru
          _
        // Predicated region
        $region77: #{tpu_custom_call.1} parent=67 // pred_check
          %p529 = pneg %p98
        $region78: #{tpu_custom_call.1} parent=67 // pred_check_branch
          %531 = sbr.rel (%p529) target = $region80
        $region79: #{tpu_custom_call.1} parent=67 // pred_region
          %533 = dma.done [#allocation6], 12288
        $region80: #{tpu_custom_call.1} parent=67 // pred_fallthru
          _
        // Predicated region
        $region81: #{tpu_custom_call.1} parent=67 // pred_check
          %p534 = pneg %p119
        $region82: #{tpu_custom_call.1} parent=67 // pred_check_branch
          %536 = sbr.rel (%p534) target = $region84
        $region83: #{tpu_custom_call.1} parent=67 // pred_region
          %538 = dma.done [#allocation9], 8192
        $region84: #{tpu_custom_call.1} parent=67 // pred_fallthru
          _
        // Predicated region
        $region85: #{tpu_custom_call.1} parent=67 // pred_check
          %p539 = pneg %p140
        $region86: #{tpu_custom_call.1} parent=67 // pred_check_branch
          %541 = sbr.rel (%p539) target = $region88
        $region87: #{tpu_custom_call.1} parent=67 // pred_region
          %543 = dma.done [#allocation9], 4096
        $region88: #{tpu_custom_call.1} parent=67 // pred_fallthru
          _
        // Predicated region
        $region89: #{tpu_custom_call.1} parent=67 // pred_check
          %p544 = pneg %p161
        $region90: #{tpu_custom_call.1} parent=67 // pred_check_branch
          %546 = sbr.rel (%p544) target = $region92
        $region91: #{tpu_custom_call.1} parent=67 // pred_region
          %548 = dma.done [#allocation12], 2048
        $region92: #{tpu_custom_call.1} parent=67 // pred_fallthru
          _
        // Predicated region
        $region93: #{tpu_custom_call.1} parent=67 // pred_check
          %p549 = pneg %p182
        $region94: #{tpu_custom_call.1} parent=67 // pred_check_branch
          %551 = sbr.rel (%p549) target = $region96
        $region95: #{tpu_custom_call.1} parent=67 // pred_region
          %553 = dma.done [#allocation12], 2048
        $region96: #{tpu_custom_call.1} parent=67 // pred_fallthru
          _
        // Predicated region
        $region97: #{tpu_custom_call.1} parent=67 // pred_check
          %p554 = pneg %p203
        $region98: #{tpu_custom_call.1} parent=67 // pred_check_branch
          %556 = sbr.rel (%p554) target = $region100
        $region99: #{tpu_custom_call.1} parent=67 // pred_region
          %558 = dma.done [#allocation15], 4096
        $region100: #{tpu_custom_call.1} parent=67 // pred_fallthru
          _
        // Predicated region
        $region101: #{tpu_custom_call.1} parent=67 // pred_check
          %p559 = pneg %p224
        $region102: #{tpu_custom_call.1} parent=67 // pred_check_branch
          %561 = sbr.rel (%p559) target = $region104
        $region103: #{tpu_custom_call.1} parent=67 // pred_region
          %563 = dma.done [#allocation15], 8192
        $region104: #{tpu_custom_call.1} parent=67 // pred_fallthru
          _
        // Predicated region
        $region105: #{tpu_custom_call.1} parent=67 // pred_check
          %p564 = pneg %p245
        $region106: #{tpu_custom_call.1} parent=67 // pred_check_branch
          %566 = sbr.rel (%p564) target = $region108
        $region107: #{tpu_custom_call.1} parent=67 // pred_region
          %568 = dma.done [#allocation18], 12288
        $region108: #{tpu_custom_call.1} parent=67 // pred_fallthru
          _
        // Predicated region
        $region109: #{tpu_custom_call.1} parent=67 // pred_check
          %p569 = pneg %p266
        $region110: #{tpu_custom_call.1} parent=67 // pred_check_branch
          %571 = sbr.rel (%p569) target = $region112
        $region111: #{tpu_custom_call.1} parent=67 // pred_region
          %573 = dma.done [#allocation18], 18432
        $region112: #{tpu_custom_call.1} parent=67 // pred_fallthru
          _
        // Predicated region
        $region113: #{tpu_custom_call.1} parent=67 // pred_check
          %p574 = pneg %p287
        $region114: #{tpu_custom_call.1} parent=67 // pred_check_branch
          %576 = sbr.rel (%p574) target = $region116
        $region115: #{tpu_custom_call.1} parent=67 // pred_region
          %578 = dma.done [#allocation21], 320
        $region116: #{tpu_custom_call.1} parent=67 // pred_fallthru
          _
        %s579 = sand.u32 %s43, 1
        %s580 = scalar_lea.sflag [#allocation3], %s579
        %s581 = sand.u32 %s43, 1
        %s582 = smul.addr %s581, 384
        %s583 = scalar_lea.vmem [#allocation2], %s582
        %p584 = pneg %p56
        %p585 = pneg %p53
        %p586 = pneg %p77
        %p587 = pneg %p74
        %p588 = pneg %p98
        %p589 = pneg %p95
        %p590 = pneg %p119
        %p591 = pneg %p116
        %p592 = pneg %p140
        %p593 = pneg %p137
        %p594 = pneg %p161
        %p595 = pneg %p158
        %p596 = pneg %p182
        %p597 = pneg %p179
        %p598 = pneg %p203
        %p599 = pneg %p200
        %p600 = pneg %p224
        %p601 = pneg %p221
        %p602 = pneg %p245
        %p603 = pneg %p242
        %p604 = pneg %p266
        %p605 = pneg %p263
        %p606 = pneg %p287
        %p607 = pneg %p284
        %p608 = pneg %p313
        %p609 = pneg %p310
        %s610 = sand.u32 %s300, 1
        %s611 = scalar_lea.sflag [#allocation4], %s610
        %s612 = sand.u32 %s300, 1
        %s613 = smul.addr %s612, 384
        %s614 = scalar_lea.vmem [#allocation22], %s613
        %s615 = smul.u32 16, %s35
        %s616 = smul.u32 16, %s35
        %v617 = vld [vmem:[%s518] sm:$0xff]
        %v618 = vld [vmem:[%s518 + $0x8] sm:$0xff]
        %v619 = vld [vmem:[%s518 + $0x10] sm:$0xff]
        %v620 = vld [vmem:[%s518 + $0x18] sm:$0xff]
        %v621 = vld [vmem:[%s518 + $0x20] sm:$0xff]
        %v622 = vld [vmem:[%s518 + $0x28] sm:$0xff]
        %v623 = vld [vmem:[%s518 + $0x30] sm:$0xff]
        %v624 = vld [vmem:[%s518 + $0x38] sm:$0xff]
        %v625 = vld [vmem:[%s518 + $0x40] sm:$0xff]
        %v626 = vld [vmem:[%s518 + $0x48] sm:$0xff]
        %v627 = vld [vmem:[%s518 + $0x50] sm:$0xff]
        %v628 = vld [vmem:[%s518 + $0x58] sm:$0xff]
        %v629 = vld [vmem:[%s518 + $0x60] sm:$0xff]
        %v630 = vld [vmem:[%s518 + $0x68] sm:$0xff]
        %v631 = vld [vmem:[%s518 + $0x70] sm:$0xff]
        %v632 = vld [vmem:[%s518 + $0x78] sm:$0xff]
        %v633 = vld [vmem:[%s518 + $0x80] sm:$0xff]
        %v634 = vld [vmem:[%s518 + $0x88] sm:$0xff]
        %v635 = vld [vmem:[%s518 + $0x90] sm:$0xff]
        %v636 = vld [vmem:[%s518 + $0x98] sm:$0xff]
        %v637 = vld [vmem:[%s518 + $0xa0] sm:$0xff]
        %v638 = vld [vmem:[%s518 + $0xa8] sm:$0xff]
        %v639 = vld [vmem:[%s518 + $0xb0] sm:$0xff]
        %v640 = vld [vmem:[%s518 + $0xb8] sm:$0xff]
        %v641 = vld [vmem:[%s518 + $0xc0] sm:$0xff]
        %v642 = vld [vmem:[%s518 + $0xc8] sm:$0xff]
        %v643 = vld [vmem:[%s518 + $0xd0] sm:$0xff]
        %v644 = vld [vmem:[%s518 + $0xd8] sm:$0xff]
        %v645 = vld [vmem:[%s518 + $0xe0] sm:$0xff]
        %v646 = vld [vmem:[%s518 + $0xe8] sm:$0xff]
        %v647 = vld [vmem:[%s518 + $0xf0] sm:$0xff]
        %v648 = vld [vmem:[%s518 + $0xf8] sm:$0xff]
        %v649 = vld [vmem:[%s518 + $0x100] sm:$0xff]
        %v650 = vld [vmem:[%s518 + $0x108] sm:$0xff]
        %v651 = vld [vmem:[%s518 + $0x110] sm:$0xff]
        %v652 = vld [vmem:[%s518 + $0x118] sm:$0xff]
        %v653 = vld [vmem:[%s518 + $0x120] sm:$0xff]
        %v654 = vld [vmem:[%s518 + $0x128] sm:$0xff]
        %v655 = vld [vmem:[%s518 + $0x130] sm:$0xff]
        %v656 = vld [vmem:[%s518 + $0x138] sm:$0xff]
        %v657 = vld [vmem:[%s518 + $0x140] sm:$0xff]
        %v658 = vld [vmem:[%s518 + $0x148] sm:$0xff]
        %v659 = vld [vmem:[%s518 + $0x150] sm:$0xff]
        %v660 = vld [vmem:[%s518 + $0x158] sm:$0xff]
        %v661 = vld [vmem:[%s518 + $0x160] sm:$0xff]
        %v662 = vld [vmem:[%s518 + $0x168] sm:$0xff]
        %v663 = vld [vmem:[%s518 + $0x170] sm:$0xff]
        %v664 = vld [vmem:[%s518 + $0x178] sm:$0xff]
        %v665 = vld [vmem:[#allocation5] sm:$0xff]
        %v666 = vld [vmem:[#allocation5 + $0x8] sm:$0xff]
        %v667 = vld [vmem:[#allocation5 + $0x10] sm:$0xff]
        %v668 = vld [vmem:[#allocation5 + $0x18] sm:$0xff]
        %v669 = vld [vmem:[#allocation5 + $0x20] sm:$0xff]
        %v670 = vld [vmem:[#allocation5 + $0x28] sm:$0xff]
        %v671 = vld [vmem:[#allocation5 + $0x30] sm:$0xff]
        %v672 = vld [vmem:[#allocation5 + $0x38] sm:$0xff]
        %v673 = vld [vmem:[#allocation5 + $0x40] sm:$0xff]
        %v674 = vld [vmem:[#allocation5 + $0x48] sm:$0xff]
        %v675 = vld [vmem:[#allocation5 + $0x50] sm:$0xff]
        %v676 = vld [vmem:[#allocation5 + $0x58] sm:$0xff]
        %v677 = vld [vmem:[#allocation5 + $0x60] sm:$0xff]
        %v678 = vld [vmem:[#allocation5 + $0x68] sm:$0xff]
        %v679 = vld [vmem:[#allocation5 + $0x70] sm:$0xff]
        %v680 = vld [vmem:[#allocation5 + $0x78] sm:$0xff]
        %v681 = vld [vmem:[#allocation5 + $0x80] sm:$0xff]
        %v682 = vld [vmem:[#allocation5 + $0x88] sm:$0xff]
        %v683 = vld [vmem:[#allocation5 + $0x90] sm:$0xff]
        %v684 = vld [vmem:[#allocation5 + $0x98] sm:$0xff]
        %v685 = vld [vmem:[#allocation5 + $0xa0] sm:$0xff]
        %v686 = vld [vmem:[#allocation5 + $0xa8] sm:$0xff]
        %v687 = vld [vmem:[#allocation5 + $0xb0] sm:$0xff]
        %v688 = vld [vmem:[#allocation5 + $0xb8] sm:$0xff]
        %v689 = vld [vmem:[#allocation5 + $0xc0] sm:$0xff]
        %v690 = vld [vmem:[#allocation5 + $0xc8] sm:$0xff]
        %v691 = vld [vmem:[#allocation5 + $0xd0] sm:$0xff]
        %v692 = vld [vmem:[#allocation5 + $0xd8] sm:$0xff]
        %v693 = vld [vmem:[#allocation5 + $0xe0] sm:$0xff]
        %v694 = vld [vmem:[#allocation5 + $0xe8] sm:$0xff]
        %v695 = vld [vmem:[#allocation5 + $0xf0] sm:$0xff]
        %v696 = vld [vmem:[#allocation5 + $0xf8] sm:$0xff]
        %v697 = vld [vmem:[#allocation5 + $0x100] sm:$0xff]
        %v698 = vld [vmem:[#allocation5 + $0x108] sm:$0xff]
        %v699 = vld [vmem:[#allocation5 + $0x110] sm:$0xff]
        %v700 = vld [vmem:[#allocation5 + $0x118] sm:$0xff]
        %v701 = vld [vmem:[#allocation5 + $0x120] sm:$0xff]
        %v702 = vld [vmem:[#allocation5 + $0x128] sm:$0xff]
        %v703 = vld [vmem:[#allocation5 + $0x130] sm:$0xff]
        %v704 = vld [vmem:[#allocation5 + $0x138] sm:$0xff]
        %v705 = vld [vmem:[#allocation5 + $0x140] sm:$0xff]
        %v706 = vld [vmem:[#allocation5 + $0x148] sm:$0xff]
        %v707 = vld [vmem:[#allocation5 + $0x150] sm:$0xff]
        %v708 = vld [vmem:[#allocation5 + $0x158] sm:$0xff]
        %v709 = vld [vmem:[#allocation5 + $0x160] sm:$0xff]
        %v710 = vld [vmem:[#allocation5 + $0x168] sm:$0xff]
        %v711 = vld [vmem:[#allocation5 + $0x170] sm:$0xff]
        %v712 = vld [vmem:[#allocation5 + $0x178] sm:$0xff]
        %v713 = vld [vmem:[#allocation5 + $0x180] sm:$0xff]
        %v714 = vld [vmem:[#allocation5 + $0x188] sm:$0xff]
        %v715 = vld [vmem:[#allocation5 + $0x190] sm:$0xff]
        %v716 = vld [vmem:[#allocation5 + $0x198] sm:$0xff]
        %v717 = vld [vmem:[#allocation5 + $0x1a0] sm:$0xff]
        %v718 = vld [vmem:[#allocation5 + $0x1a8] sm:$0xff]
        %v719 = vld [vmem:[#allocation5 + $0x1b0] sm:$0xff]
        %v720 = vld [vmem:[#allocation5 + $0x1b8] sm:$0xff]
        %v721 = vld [vmem:[#allocation5 + $0x1c0] sm:$0xff]
        %v722 = vld [vmem:[#allocation5 + $0x1c8] sm:$0xff]
        %v723 = vld [vmem:[#allocation5 + $0x1d0] sm:$0xff]
        %v724 = vld [vmem:[#allocation5 + $0x1d8] sm:$0xff]
        %v725 = vld [vmem:[#allocation5 + $0x1e0] sm:$0xff]
        %v726 = vld [vmem:[#allocation5 + $0x1e8] sm:$0xff]
        %v727 = vld [vmem:[#allocation5 + $0x1f0] sm:$0xff]
        %v728 = vld [vmem:[#allocation5 + $0x1f8] sm:$0xff]
        %v729 = vld [vmem:[#allocation5 + $0x200] sm:$0xff]
        %v730 = vld [vmem:[#allocation5 + $0x208] sm:$0xff]
        %v731 = vld [vmem:[#allocation5 + $0x210] sm:$0xff]
        %v732 = vld [vmem:[#allocation5 + $0x218] sm:$0xff]
        %v733 = vld [vmem:[#allocation5 + $0x220] sm:$0xff]
        %v734 = vld [vmem:[#allocation5 + $0x228] sm:$0xff]
        %v735 = vld [vmem:[#allocation5 + $0x230] sm:$0xff]
        %v736 = vld [vmem:[#allocation5 + $0x238] sm:$0xff]
        %v737 = vld [vmem:[#allocation5 + $0x240] sm:$0xff]
        %v738 = vld [vmem:[#allocation5 + $0x248] sm:$0xff]
        %v739 = vld [vmem:[#allocation5 + $0x250] sm:$0xff]
        %v740 = vld [vmem:[#allocation5 + $0x258] sm:$0xff]
        %v741 = vld [vmem:[#allocation5 + $0x260] sm:$0xff]
        %v742 = vld [vmem:[#allocation5 + $0x268] sm:$0xff]
        %v743 = vld [vmem:[#allocation5 + $0x270] sm:$0xff]
        %v744 = vld [vmem:[#allocation5 + $0x278] sm:$0xff]
        %v745 = vld [vmem:[#allocation5 + $0x280] sm:$0xff]
        %v746 = vld [vmem:[#allocation5 + $0x288] sm:$0xff]
        %v747 = vld [vmem:[#allocation5 + $0x290] sm:$0xff]
        %v748 = vld [vmem:[#allocation5 + $0x298] sm:$0xff]
        %v749 = vld [vmem:[#allocation5 + $0x2a0] sm:$0xff]
        %v750 = vld [vmem:[#allocation5 + $0x2a8] sm:$0xff]
        %v751 = vld [vmem:[#allocation5 + $0x2b0] sm:$0xff]
        %v752 = vld [vmem:[#allocation5 + $0x2b8] sm:$0xff]
        %v753 = vld [vmem:[#allocation5 + $0x2c0] sm:$0xff]
        %v754 = vld [vmem:[#allocation5 + $0x2c8] sm:$0xff]
        %v755 = vld [vmem:[#allocation5 + $0x2d0] sm:$0xff]
        %v756 = vld [vmem:[#allocation5 + $0x2d8] sm:$0xff]
        %v757 = vld [vmem:[#allocation5 + $0x2e0] sm:$0xff]
        %v758 = vld [vmem:[#allocation5 + $0x2e8] sm:$0xff]
        %v759 = vld [vmem:[#allocation5 + $0x2f0] sm:$0xff]
        %v760 = vld [vmem:[#allocation5 + $0x2f8] sm:$0xff]
        %v761 = vld [vmem:[#allocation5 + $0x300] sm:$0xff]
        %v762 = vld [vmem:[#allocation5 + $0x308] sm:$0xff]
        %v763 = vld [vmem:[#allocation5 + $0x310] sm:$0xff]
        %v764 = vld [vmem:[#allocation5 + $0x318] sm:$0xff]
        %v765 = vld [vmem:[#allocation5 + $0x320] sm:$0xff]
        %v766 = vld [vmem:[#allocation5 + $0x328] sm:$0xff]
        %v767 = vld [vmem:[#allocation5 + $0x330] sm:$0xff]
        %v768 = vld [vmem:[#allocation5 + $0x338] sm:$0xff]
        %v769 = vld [vmem:[#allocation5 + $0x340] sm:$0xff]
        %v770 = vld [vmem:[#allocation5 + $0x348] sm:$0xff]
        %v771 = vld [vmem:[#allocation5 + $0x350] sm:$0xff]
        %v772 = vld [vmem:[#allocation5 + $0x358] sm:$0xff]
        %v773 = vld [vmem:[#allocation5 + $0x360] sm:$0xff]
        %v774 = vld [vmem:[#allocation5 + $0x368] sm:$0xff]
        %v775 = vld [vmem:[#allocation5 + $0x370] sm:$0xff]
        %v776 = vld [vmem:[#allocation5 + $0x378] sm:$0xff]
        %v777 = vld [vmem:[#allocation5 + $0x380] sm:$0xff]
        %v778 = vld [vmem:[#allocation5 + $0x388] sm:$0xff]
        %v779 = vld [vmem:[#allocation5 + $0x390] sm:$0xff]
        %v780 = vld [vmem:[#allocation5 + $0x398] sm:$0xff]
        %v781 = vld [vmem:[#allocation5 + $0x3a0] sm:$0xff]
        %v782 = vld [vmem:[#allocation5 + $0x3a8] sm:$0xff]
        %v783 = vld [vmem:[#allocation5 + $0x3b0] sm:$0xff]
        %v784 = vld [vmem:[#allocation5 + $0x3b8] sm:$0xff]
        %v785 = vld [vmem:[#allocation5 + $0x3c0] sm:$0xff]
        %v786 = vld [vmem:[#allocation5 + $0x3c8] sm:$0xff]
        %v787 = vld [vmem:[#allocation5 + $0x3d0] sm:$0xff]
        %v788 = vld [vmem:[#allocation5 + $0x3d8] sm:$0xff]
        %v789 = vld [vmem:[#allocation5 + $0x3e0] sm:$0xff]
        %v790 = vld [vmem:[#allocation5 + $0x3e8] sm:$0xff]
        %v791 = vld [vmem:[#allocation5 + $0x3f0] sm:$0xff]
        %v792 = vld [vmem:[#allocation5 + $0x3f8] sm:$0xff]
        %v793 = vld [vmem:[#allocation5 + $0x400] sm:$0xff]
        %v794 = vld [vmem:[#allocation5 + $0x408] sm:$0xff]
        %v795 = vld [vmem:[#allocation5 + $0x410] sm:$0xff]
        %v796 = vld [vmem:[#allocation5 + $0x418] sm:$0xff]
        %v797 = vld [vmem:[#allocation5 + $0x420] sm:$0xff]
        %v798 = vld [vmem:[#allocation5 + $0x428] sm:$0xff]
        %v799 = vld [vmem:[#allocation5 + $0x430] sm:$0xff]
        %v800 = vld [vmem:[#allocation5 + $0x438] sm:$0xff]
        %v801 = vld [vmem:[#allocation5 + $0x440] sm:$0xff]
        %v802 = vld [vmem:[#allocation5 + $0x448] sm:$0xff]
        %v803 = vld [vmem:[#allocation5 + $0x450] sm:$0xff]
        %v804 = vld [vmem:[#allocation5 + $0x458] sm:$0xff]
        %v805 = vld [vmem:[#allocation5 + $0x460] sm:$0xff]
        %v806 = vld [vmem:[#allocation5 + $0x468] sm:$0xff]
        %v807 = vld [vmem:[#allocation5 + $0x470] sm:$0xff]
        %v808 = vld [vmem:[#allocation5 + $0x478] sm:$0xff]
        %v809 = vld [vmem:[#allocation20] sm:$0x7]
        %v811 = vperm.slane %v809, 0
        %v812 = vperm.slane %v809, 1
        %v813 = vperm.slane %v809, 2
        %817 = vmatpush.msra.mxu0 %v710
        %818 = vmatpush.msra.mxu0 %v707
        %819 = vmatpush.msra.mxu0 %v704
        %820 = vmatpush.msra.mxu0 %v701
        %821 = vmatpush.msra.mxu0 %v698
        %822 = vmatpush.msra.mxu0 %v695
        %823 = vmatpush.msra.mxu0 %v692
        %824 = vmatpush.msra.mxu0 %v689
        %825 = vmatpush.msra.mxu0 %v686
        %826 = vmatpush.msra.mxu0 %v683
        %827 = vmatpush.msra.mxu0 %v680
        %828 = vmatpush.msra.mxu0 %v677
        %829 = vmatpush.msra.mxu0 %v674
        %830 = vmatpush.msra.mxu0 %v671
        %831 = vmatpush.msra.mxu0 %v668
        %832 = vmatpush.msra.mxu0 %v665
        %833 = vmatmul.f32.gmra.mxu0 %v617
        %v834 = vpop.f32.mrf.mxu0
        %v835 = vadd.f32 %v811, %v834
        %836 = vmatmul.f32.gmra.mxu0 %v620
        %v837 = vpop.f32.mrf.mxu0
        %v838 = vadd.f32 %v811, %v837
        %839 = vmatmul.f32.gmra.mxu0 %v623
        %v840 = vpop.f32.mrf.mxu0
        %v841 = vadd.f32 %v811, %v840
        %842 = vmatmul.f32.gmra.mxu0 %v626
        %v843 = vpop.f32.mrf.mxu0
        %v844 = vadd.f32 %v811, %v843
        %845 = vmatmul.f32.gmra.mxu0 %v629
        %v846 = vpop.f32.mrf.mxu0
        %v847 = vadd.f32 %v811, %v846
        %848 = vmatmul.f32.gmra.mxu0 %v632
        %v849 = vpop.f32.mrf.mxu0
        %v850 = vadd.f32 %v811, %v849
        %851 = vmatmul.f32.gmra.mxu0 %v635
        %v852 = vpop.f32.mrf.mxu0
        %v853 = vadd.f32 %v811, %v852
        %854 = vmatmul.f32.gmra.mxu0 %v638
        %v855 = vpop.f32.mrf.mxu0
        %v856 = vadd.f32 %v811, %v855
        %857 = vmatmul.f32.gmra.mxu0 %v641
        %v858 = vpop.f32.mrf.mxu0
        %v859 = vadd.f32 %v811, %v858
        %860 = vmatmul.f32.gmra.mxu0 %v644
        %v861 = vpop.f32.mrf.mxu0
        %v862 = vadd.f32 %v811, %v861
        %863 = vmatmul.f32.gmra.mxu0 %v647
        %v864 = vpop.f32.mrf.mxu0
        %v865 = vadd.f32 %v811, %v864
        %866 = vmatmul.f32.gmra.mxu0 %v650
        %v867 = vpop.f32.mrf.mxu0
        %v868 = vadd.f32 %v811, %v867
        %869 = vmatmul.f32.gmra.mxu0 %v653
        %v870 = vpop.f32.mrf.mxu0
        %v871 = vadd.f32 %v811, %v870
        %872 = vmatmul.f32.gmra.mxu0 %v656
        %v873 = vpop.f32.mrf.mxu0
        %v874 = vadd.f32 %v811, %v873
        %875 = vmatmul.f32.gmra.mxu0 %v659
        %v876 = vpop.f32.mrf.mxu0
        %v877 = vadd.f32 %v811, %v876
        %878 = vmatmul.f32.gmra.mxu0 %v662
        %v879 = vpop.f32.mrf.mxu0
        %v880 = vadd.f32 %v811, %v879
        %881 = vdwg.mxu0
        %882 = vmatpush.msra.mxu0 %v758
        %883 = vmatpush.msra.mxu0 %v755
        %884 = vmatpush.msra.mxu0 %v752
        %885 = vmatpush.msra.mxu0 %v749
        %886 = vmatpush.msra.mxu0 %v746
        %887 = vmatpush.msra.mxu0 %v743
        %888 = vmatpush.msra.mxu0 %v740
        %889 = vmatpush.msra.mxu0 %v737
        %890 = vmatpush.msra.mxu0 %v734
        %891 = vmatpush.msra.mxu0 %v731
        %892 = vmatpush.msra.mxu0 %v728
        %893 = vmatpush.msra.mxu0 %v725
        %894 = vmatpush.msra.mxu0 %v722
        %895 = vmatpush.msra.mxu0 %v719
        %896 = vmatpush.msra.mxu0 %v716
        %897 = vmatpush.msra.mxu0 %v713
        %898 = vmatmul.f32.gmra.mxu0 %v618
        %v899 = vpop.f32.mrf.mxu0
        %v900 = vadd.f32 %v835, %v899
        %901 = vmatmul.f32.gmra.mxu0 %v621
        %v902 = vpop.f32.mrf.mxu0
        %v903 = vadd.f32 %v838, %v902
        %904 = vmatmul.f32.gmra.mxu0 %v624
        %v905 = vpop.f32.mrf.mxu0
        %v906 = vadd.f32 %v841, %v905
        %907 = vmatmul.f32.gmra.mxu0 %v627
        %v908 = vpop.f32.mrf.mxu0
        %v909 = vadd.f32 %v844, %v908
        %910 = vmatmul.f32.gmra.mxu0 %v630
        %v911 = vpop.f32.mrf.mxu0
        %v912 = vadd.f32 %v847, %v911
        %913 = vmatmul.f32.gmra.mxu0 %v633
        %v914 = vpop.f32.mrf.mxu0
        %v915 = vadd.f32 %v850, %v914
        %916 = vmatmul.f32.gmra.mxu0 %v636
        %v917 = vpop.f32.mrf.mxu0
        %v918 = vadd.f32 %v853, %v917
        %919 = vmatmul.f32.gmra.mxu0 %v639
        %v920 = vpop.f32.mrf.mxu0
        %v921 = vadd.f32 %v856, %v920
        %922 = vmatmul.f32.gmra.mxu0 %v642
        %v923 = vpop.f32.mrf.mxu0
        %v924 = vadd.f32 %v859, %v923
        %925 = vmatmul.f32.gmra.mxu0 %v645
        %v926 = vpop.f32.mrf.mxu0
        %v927 = vadd.f32 %v862, %v926
        %928 = vmatmul.f32.gmra.mxu0 %v648
        %v929 = vpop.f32.mrf.mxu0
        %v930 = vadd.f32 %v865, %v929
        %931 = vmatmul.f32.gmra.mxu0 %v651
        %v932 = vpop.f32.mrf.mxu0
        %v933 = vadd.f32 %v868, %v932
        %934 = vmatmul.f32.gmra.mxu0 %v654
        %v935 = vpop.f32.mrf.mxu0
        %v936 = vadd.f32 %v871, %v935
        %937 = vmatmul.f32.gmra.mxu0 %v657
        %v938 = vpop.f32.mrf.mxu0
        %v939 = vadd.f32 %v874, %v938
        %940 = vmatmul.f32.gmra.mxu0 %v660
        %v941 = vpop.f32.mrf.mxu0
        %v942 = vadd.f32 %v877, %v941
        %943 = vmatmul.f32.gmra.mxu0 %v663
        %v944 = vpop.f32.mrf.mxu0
        %v945 = vadd.f32 %v880, %v944
        %946 = vdwg.mxu0
        %947 = vmatpush.msra.mxu0 %v806
        %948 = vmatpush.msra.mxu0 %v803
        %949 = vmatpush.msra.mxu0 %v800
        %950 = vmatpush.msra.mxu0 %v797
        %951 = vmatpush.msra.mxu0 %v794
        %952 = vmatpush.msra.mxu0 %v791
        %953 = vmatpush.msra.mxu0 %v788
        %954 = vmatpush.msra.mxu0 %v785
        %955 = vmatpush.msra.mxu0 %v782
        %956 = vmatpush.msra.mxu0 %v779
        %957 = vmatpush.msra.mxu0 %v776
        %958 = vmatpush.msra.mxu0 %v773
        %959 = vmatpush.msra.mxu0 %v770
        %960 = vmatpush.msra.mxu0 %v767
        %961 = vmatpush.msra.mxu0 %v764
        %962 = vmatpush.msra.mxu0 %v761
        %963 = vmatmul.f32.gmra.mxu0 %v619
        %v964 = vpop.f32.mrf.mxu0
        %v965 = vadd.f32 %v900, %v964
        %966 = vmatmul.f32.gmra.mxu0 %v622
        %v967 = vpop.f32.mrf.mxu0
        %v968 = vadd.f32 %v903, %v967
        %969 = vmatmul.f32.gmra.mxu0 %v625
        %v970 = vpop.f32.mrf.mxu0
        %v971 = vadd.f32 %v906, %v970
        %972 = vmatmul.f32.gmra.mxu0 %v628
        %v973 = vpop.f32.mrf.mxu0
        %v974 = vadd.f32 %v909, %v973
        %975 = vmatmul.f32.gmra.mxu0 %v631
        %v976 = vpop.f32.mrf.mxu0
        %v977 = vadd.f32 %v912, %v976
        %978 = vmatmul.f32.gmra.mxu0 %v634
        %v979 = vpop.f32.mrf.mxu0
        %v980 = vadd.f32 %v915, %v979
        %981 = vmatmul.f32.gmra.mxu0 %v637
        %v982 = vpop.f32.mrf.mxu0
        %v983 = vadd.f32 %v918, %v982
        %984 = vmatmul.f32.gmra.mxu0 %v640
        %v985 = vpop.f32.mrf.mxu0
        %v986 = vadd.f32 %v921, %v985
        %987 = vmatmul.f32.gmra.mxu0 %v643
        %v988 = vpop.f32.mrf.mxu0
        %v989 = vadd.f32 %v924, %v988
        %990 = vmatmul.f32.gmra.mxu0 %v646
        %v991 = vpop.f32.mrf.mxu0
        %v992 = vadd.f32 %v927, %v991
        %993 = vmatmul.f32.gmra.mxu0 %v649
        %v994 = vpop.f32.mrf.mxu0
        %v995 = vadd.f32 %v930, %v994
        %996 = vmatmul.f32.gmra.mxu0 %v652
        %v997 = vpop.f32.mrf.mxu0
        %v998 = vadd.f32 %v933, %v997
        %999 = vmatmul.f32.gmra.mxu0 %v655
        %v1000 = vpop.f32.mrf.mxu0
        %v1001 = vadd.f32 %v936, %v1000
        %1002 = vmatmul.f32.gmra.mxu0 %v658
        %v1003 = vpop.f32.mrf.mxu0
        %v1004 = vadd.f32 %v939, %v1003
        %1005 = vmatmul.f32.gmra.mxu0 %v661
        %v1006 = vpop.f32.mrf.mxu0
        %v1007 = vadd.f32 %v942, %v1006
        %1008 = vmatmul.f32.gmra.mxu0 %v664
        %v1009 = vpop.f32.mrf.mxu0
        %v1010 = vadd.f32 %v945, %v1009
        %1011 = vdwg.mxu0
        %1012 = vmatpush.msra.mxu0 %v711
        %1013 = vmatpush.msra.mxu0 %v708
        %1014 = vmatpush.msra.mxu0 %v705
        %1015 = vmatpush.msra.mxu0 %v702
        %1016 = vmatpush.msra.mxu0 %v699
        %1017 = vmatpush.msra.mxu0 %v696
        %1018 = vmatpush.msra.mxu0 %v693
        %1019 = vmatpush.msra.mxu0 %v690
        %1020 = vmatpush.msra.mxu0 %v687
        %1021 = vmatpush.msra.mxu0 %v684
        %1022 = vmatpush.msra.mxu0 %v681
        %1023 = vmatpush.msra.mxu0 %v678
        %1024 = vmatpush.msra.mxu0 %v675
        %1025 = vmatpush.msra.mxu0 %v672
        %1026 = vmatpush.msra.mxu0 %v669
        %1027 = vmatpush.msra.mxu0 %v666
        %1028 = vmatmul.f32.gmra.mxu0 %v617
        %v1029 = vpop.f32.mrf.mxu0
        %v1030 = vadd.f32 %v812, %v1029
        %1031 = vmatmul.f32.gmra.mxu0 %v620
        %v1032 = vpop.f32.mrf.mxu0
        %v1033 = vadd.f32 %v812, %v1032
        %1034 = vmatmul.f32.gmra.mxu0 %v623
        %v1035 = vpop.f32.mrf.mxu0
        %v1036 = vadd.f32 %v812, %v1035
        %1037 = vmatmul.f32.gmra.mxu0 %v626
        %v1038 = vpop.f32.mrf.mxu0
        %v1039 = vadd.f32 %v812, %v1038
        %1040 = vmatmul.f32.gmra.mxu0 %v629
        %v1041 = vpop.f32.mrf.mxu0
        %v1042 = vadd.f32 %v812, %v1041
        %1043 = vmatmul.f32.gmra.mxu0 %v632
        %v1044 = vpop.f32.mrf.mxu0
        %v1045 = vadd.f32 %v812, %v1044
        %1046 = vmatmul.f32.gmra.mxu0 %v635
        %v1047 = vpop.f32.mrf.mxu0
        %v1048 = vadd.f32 %v812, %v1047
        %1049 = vmatmul.f32.gmra.mxu0 %v638
        %v1050 = vpop.f32.mrf.mxu0
        %v1051 = vadd.f32 %v812, %v1050
        %1052 = vmatmul.f32.gmra.mxu0 %v641
        %v1053 = vpop.f32.mrf.mxu0
        %v1054 = vadd.f32 %v812, %v1053
        %1055 = vmatmul.f32.gmra.mxu0 %v644
        %v1056 = vpop.f32.mrf.mxu0
        %v1057 = vadd.f32 %v812, %v1056
        %1058 = vmatmul.f32.gmra.mxu0 %v647
        %v1059 = vpop.f32.mrf.mxu0
        %v1060 = vadd.f32 %v812, %v1059
        %1061 = vmatmul.f32.gmra.mxu0 %v650
        %v1062 = vpop.f32.mrf.mxu0
        %v1063 = vadd.f32 %v812, %v1062
        %1064 = vmatmul.f32.gmra.mxu0 %v653
        %v1065 = vpop.f32.mrf.mxu0
        %v1066 = vadd.f32 %v812, %v1065
        %1067 = vmatmul.f32.gmra.mxu0 %v656
        %v1068 = vpop.f32.mrf.mxu0
        %v1069 = vadd.f32 %v812, %v1068
        %1070 = vmatmul.f32.gmra.mxu0 %v659
        %v1071 = vpop.f32.mrf.mxu0
        %v1072 = vadd.f32 %v812, %v1071
        %1073 = vmatmul.f32.gmra.mxu0 %v662
        %v1074 = vpop.f32.mrf.mxu0
        %v1075 = vadd.f32 %v812, %v1074
        %1076 = vdwg.mxu0
        %1077 = vmatpush.msra.mxu0 %v759
        %1078 = vmatpush.msra.mxu0 %v756
        %1079 = vmatpush.msra.mxu0 %v753
        %1080 = vmatpush.msra.mxu0 %v750
        %1081 = vmatpush.msra.mxu0 %v747
        %1082 = vmatpush.msra.mxu0 %v744
        %1083 = vmatpush.msra.mxu0 %v741
        %1084 = vmatpush.msra.mxu0 %v738
        %1085 = vmatpush.msra.mxu0 %v735
        %1086 = vmatpush.msra.mxu0 %v732
        %1087 = vmatpush.msra.mxu0 %v729
        %1088 = vmatpush.msra.mxu0 %v726
        %1089 = vmatpush.msra.mxu0 %v723
        %1090 = vmatpush.msra.mxu0 %v720
        %1091 = vmatpush.msra.mxu0 %v717
        %1092 = vmatpush.msra.mxu0 %v714
        %1093 = vmatmul.f32.gmra.mxu0 %v618
        %v1094 = vpop.f32.mrf.mxu0
        %v1095 = vadd.f32 %v1030, %v1094
        %1096 = vmatmul.f32.gmra.mxu0 %v621
        %v1097 = vpop.f32.mrf.mxu0
        %v1098 = vadd.f32 %v1033, %v1097
        %1099 = vmatmul.f32.gmra.mxu0 %v624
        %v1100 = vpop.f32.mrf.mxu0
        %v1101 = vadd.f32 %v1036, %v1100
        %1102 = vmatmul.f32.gmra.mxu0 %v627
        %v1103 = vpop.f32.mrf.mxu0
        %v1104 = vadd.f32 %v1039, %v1103
        %1105 = vmatmul.f32.gmra.mxu0 %v630
        %v1106 = vpop.f32.mrf.mxu0
        %v1107 = vadd.f32 %v1042, %v1106
        %1108 = vmatmul.f32.gmra.mxu0 %v633
        %v1109 = vpop.f32.mrf.mxu0
        %v1110 = vadd.f32 %v1045, %v1109
        %1111 = vmatmul.f32.gmra.mxu0 %v636
        %v1112 = vpop.f32.mrf.mxu0
        %v1113 = vadd.f32 %v1048, %v1112
        %1114 = vmatmul.f32.gmra.mxu0 %v639
        %v1115 = vpop.f32.mrf.mxu0
        %v1116 = vadd.f32 %v1051, %v1115
        %1117 = vmatmul.f32.gmra.mxu0 %v642
        %v1118 = vpop.f32.mrf.mxu0
        %v1119 = vadd.f32 %v1054, %v1118
        %1120 = vmatmul.f32.gmra.mxu0 %v645
        %v1121 = vpop.f32.mrf.mxu0
        %v1122 = vadd.f32 %v1057, %v1121
        %1123 = vmatmul.f32.gmra.mxu0 %v648
        %v1124 = vpop.f32.mrf.mxu0
        %v1125 = vadd.f32 %v1060, %v1124
        %1126 = vmatmul.f32.gmra.mxu0 %v651
        %v1127 = vpop.f32.mrf.mxu0
        %v1128 = vadd.f32 %v1063, %v1127
        %1129 = vmatmul.f32.gmra.mxu0 %v654
        %v1130 = vpop.f32.mrf.mxu0
        %v1131 = vadd.f32 %v1066, %v1130
        %1132 = vmatmul.f32.gmra.mxu0 %v657
        %v1133 = vpop.f32.mrf.mxu0
        %v1134 = vadd.f32 %v1069, %v1133
        %1135 = vmatmul.f32.gmra.mxu0 %v660
        %v1136 = vpop.f32.mrf.mxu0
        %v1137 = vadd.f32 %v1072, %v1136
        %1138 = vmatmul.f32.gmra.mxu0 %v663
        %v1139 = vpop.f32.mrf.mxu0
        %v1140 = vadd.f32 %v1075, %v1139
        %1141 = vdwg.mxu0
        %1142 = vmatpush.msra.mxu0 %v807
        %1143 = vmatpush.msra.mxu0 %v804
        %1144 = vmatpush.msra.mxu0 %v801
        %1145 = vmatpush.msra.mxu0 %v798
        %1146 = vmatpush.msra.mxu0 %v795
        %1147 = vmatpush.msra.mxu0 %v792
        %1148 = vmatpush.msra.mxu0 %v789
        %1149 = vmatpush.msra.mxu0 %v786
        %1150 = vmatpush.msra.mxu0 %v783
        %1151 = vmatpush.msra.mxu0 %v780
        %1152 = vmatpush.msra.mxu0 %v777
        %1153 = vmatpush.msra.mxu0 %v774
        %1154 = vmatpush.msra.mxu0 %v771
        %1155 = vmatpush.msra.mxu0 %v768
        %1156 = vmatpush.msra.mxu0 %v765
        %1157 = vmatpush.msra.mxu0 %v762
        %1158 = vmatmul.f32.gmra.mxu0 %v619
        %v1159 = vpop.f32.mrf.mxu0
        %v1160 = vadd.f32 %v1095, %v1159
        %1161 = vmatmul.f32.gmra.mxu0 %v622
        %v1162 = vpop.f32.mrf.mxu0
        %v1163 = vadd.f32 %v1098, %v1162
        %1164 = vmatmul.f32.gmra.mxu0 %v625
        %v1165 = vpop.f32.mrf.mxu0
        %v1166 = vadd.f32 %v1101, %v1165
        %1167 = vmatmul.f32.gmra.mxu0 %v628
        %v1168 = vpop.f32.mrf.mxu0
        %v1169 = vadd.f32 %v1104, %v1168
        %1170 = vmatmul.f32.gmra.mxu0 %v631
        %v1171 = vpop.f32.mrf.mxu0
        %v1172 = vadd.f32 %v1107, %v1171
        %1173 = vmatmul.f32.gmra.mxu0 %v634
        %v1174 = vpop.f32.mrf.mxu0
        %v1175 = vadd.f32 %v1110, %v1174
        %1176 = vmatmul.f32.gmra.mxu0 %v637
        %v1177 = vpop.f32.mrf.mxu0
        %v1178 = vadd.f32 %v1113, %v1177
        %1179 = vmatmul.f32.gmra.mxu0 %v640
        %v1180 = vpop.f32.mrf.mxu0
        %v1181 = vadd.f32 %v1116, %v1180
        %1182 = vmatmul.f32.gmra.mxu0 %v643
        %v1183 = vpop.f32.mrf.mxu0
        %v1184 = vadd.f32 %v1119, %v1183
        %1185 = vmatmul.f32.gmra.mxu0 %v646
        %v1186 = vpop.f32.mrf.mxu0
        %v1187 = vadd.f32 %v1122, %v1186
        %1188 = vmatmul.f32.gmra.mxu0 %v649
        %v1189 = vpop.f32.mrf.mxu0
        %v1190 = vadd.f32 %v1125, %v1189
        %1191 = vmatmul.f32.gmra.mxu0 %v652
        %v1192 = vpop.f32.mrf.mxu0
        %v1193 = vadd.f32 %v1128, %v1192
        %1194 = vmatmul.f32.gmra.mxu0 %v655
        %v1195 = vpop.f32.mrf.mxu0
        %v1196 = vadd.f32 %v1131, %v1195
        %1197 = vmatmul.f32.gmra.mxu0 %v658
        %v1198 = vpop.f32.mrf.mxu0
        %v1199 = vadd.f32 %v1134, %v1198
        %1200 = vmatmul.f32.gmra.mxu0 %v661
        %v1201 = vpop.f32.mrf.mxu0
        %v1202 = vadd.f32 %v1137, %v1201
        %1203 = vmatmul.f32.gmra.mxu0 %v664
        %v1204 = vpop.f32.mrf.mxu0
        %v1205 = vadd.f32 %v1140, %v1204
        %1206 = vdwg.mxu0
        %1207 = vmatpush.msra.mxu0 %v712
        %1208 = vmatpush.msra.mxu0 %v709
        %1209 = vmatpush.msra.mxu0 %v706
        %1210 = vmatpush.msra.mxu0 %v703
        %1211 = vmatpush.msra.mxu0 %v700
        %1212 = vmatpush.msra.mxu0 %v697
        %1213 = vmatpush.msra.mxu0 %v694
        %1214 = vmatpush.msra.mxu0 %v691
        %1215 = vmatpush.msra.mxu0 %v688
        %1216 = vmatpush.msra.mxu0 %v685
        %1217 = vmatpush.msra.mxu0 %v682
        %1218 = vmatpush.msra.mxu0 %v679
        %1219 = vmatpush.msra.mxu0 %v676
        %1220 = vmatpush.msra.mxu0 %v673
        %1221 = vmatpush.msra.mxu0 %v670
        %1222 = vmatpush.msra.mxu0 %v667
        %1223 = vmatmul.f32.gmra.mxu0 %v617
        %v1224 = vpop.f32.mrf.mxu0
        %v1225 = vadd.f32 %v813, %v1224
        %1226 = vmatmul.f32.gmra.mxu0 %v620
        %v1227 = vpop.f32.mrf.mxu0
        %v1228 = vadd.f32 %v813, %v1227
        %1229 = vmatmul.f32.gmra.mxu0 %v623
        %v1230 = vpop.f32.mrf.mxu0
        %v1231 = vadd.f32 %v813, %v1230
        %1232 = vmatmul.f32.gmra.mxu0 %v626
        %v1233 = vpop.f32.mrf.mxu0
        %v1234 = vadd.f32 %v813, %v1233
        %1235 = vmatmul.f32.gmra.mxu0 %v629
        %v1236 = vpop.f32.mrf.mxu0
        %v1237 = vadd.f32 %v813, %v1236
        %1238 = vmatmul.f32.gmra.mxu0 %v632
        %v1239 = vpop.f32.mrf.mxu0
        %v1240 = vadd.f32 %v813, %v1239
        %1241 = vmatmul.f32.gmra.mxu0 %v635
        %v1242 = vpop.f32.mrf.mxu0
        %v1243 = vadd.f32 %v813, %v1242
        %1244 = vmatmul.f32.gmra.mxu0 %v638
        %v1245 = vpop.f32.mrf.mxu0
        %v1246 = vadd.f32 %v813, %v1245
        %1247 = vmatmul.f32.gmra.mxu0 %v641
        %v1248 = vpop.f32.mrf.mxu0
        %v1249 = vadd.f32 %v813, %v1248
        %1250 = vmatmul.f32.gmra.mxu0 %v644
        %v1251 = vpop.f32.mrf.mxu0
        %v1252 = vadd.f32 %v813, %v1251
        %1253 = vmatmul.f32.gmra.mxu0 %v647
        %v1254 = vpop.f32.mrf.mxu0
        %v1255 = vadd.f32 %v813, %v1254
        %1256 = vmatmul.f32.gmra.mxu0 %v650
        %v1257 = vpop.f32.mrf.mxu0
        %v1258 = vadd.f32 %v813, %v1257
        %1259 = vmatmul.f32.gmra.mxu0 %v653
        %v1260 = vpop.f32.mrf.mxu0
        %v1261 = vadd.f32 %v813, %v1260
        %1262 = vmatmul.f32.gmra.mxu0 %v656
        %v1263 = vpop.f32.mrf.mxu0
        %v1264 = vadd.f32 %v813, %v1263
        %1265 = vmatmul.f32.gmra.mxu0 %v659
        %v1266 = vpop.f32.mrf.mxu0
        %v1267 = vadd.f32 %v813, %v1266
        %1268 = vmatmul.f32.gmra.mxu0 %v662
        %v1269 = vpop.f32.mrf.mxu0
        %v1270 = vadd.f32 %v813, %v1269
        %1271 = vdwg.mxu0
        %1272 = vmatpush.msra.mxu0 %v760
        %1273 = vmatpush.msra.mxu0 %v757
        %1274 = vmatpush.msra.mxu0 %v754
        %1275 = vmatpush.msra.mxu0 %v751
        %1276 = vmatpush.msra.mxu0 %v748
        %1277 = vmatpush.msra.mxu0 %v745
        %1278 = vmatpush.msra.mxu0 %v742
        %1279 = vmatpush.msra.mxu0 %v739
        %1280 = vmatpush.msra.mxu0 %v736
        %1281 = vmatpush.msra.mxu0 %v733
        %1282 = vmatpush.msra.mxu0 %v730
        %1283 = vmatpush.msra.mxu0 %v727
        %1284 = vmatpush.msra.mxu0 %v724
        %1285 = vmatpush.msra.mxu0 %v721
        %1286 = vmatpush.msra.mxu0 %v718
        %1287 = vmatpush.msra.mxu0 %v715
        %1288 = vmatmul.f32.gmra.mxu0 %v618
        %v1289 = vpop.f32.mrf.mxu0
        %v1290 = vadd.f32 %v1225, %v1289
        %1291 = vmatmul.f32.gmra.mxu0 %v621
        %v1292 = vpop.f32.mrf.mxu0
        %v1293 = vadd.f32 %v1228, %v1292
        %1294 = vmatmul.f32.gmra.mxu0 %v624
        %v1295 = vpop.f32.mrf.mxu0
        %v1296 = vadd.f32 %v1231, %v1295
        %1297 = vmatmul.f32.gmra.mxu0 %v627
        %v1298 = vpop.f32.mrf.mxu0
        %v1299 = vadd.f32 %v1234, %v1298
        %1300 = vmatmul.f32.gmra.mxu0 %v630
        %v1301 = vpop.f32.mrf.mxu0
        %v1302 = vadd.f32 %v1237, %v1301
        %1303 = vmatmul.f32.gmra.mxu0 %v633
        %v1304 = vpop.f32.mrf.mxu0
        %v1305 = vadd.f32 %v1240, %v1304
        %1306 = vmatmul.f32.gmra.mxu0 %v636
        %v1307 = vpop.f32.mrf.mxu0
        %v1308 = vadd.f32 %v1243, %v1307
        %1309 = vmatmul.f32.gmra.mxu0 %v639
        %v1310 = vpop.f32.mrf.mxu0
        %v1311 = vadd.f32 %v1246, %v1310
        %1312 = vmatmul.f32.gmra.mxu0 %v642
        %v1313 = vpop.f32.mrf.mxu0
        %v1314 = vadd.f32 %v1249, %v1313
        %1315 = vmatmul.f32.gmra.mxu0 %v645
        %v1316 = vpop.f32.mrf.mxu0
        %v1317 = vadd.f32 %v1252, %v1316
        %1318 = vmatmul.f32.gmra.mxu0 %v648
        %v1319 = vpop.f32.mrf.mxu0
        %v1320 = vadd.f32 %v1255, %v1319
        %1321 = vmatmul.f32.gmra.mxu0 %v651
        %v1322 = vpop.f32.mrf.mxu0
        %v1323 = vadd.f32 %v1258, %v1322
        %1324 = vmatmul.f32.gmra.mxu0 %v654
        %v1325 = vpop.f32.mrf.mxu0
        %v1326 = vadd.f32 %v1261, %v1325
        %1327 = vmatmul.f32.gmra.mxu0 %v657
        %v1328 = vpop.f32.mrf.mxu0
        %v1329 = vadd.f32 %v1264, %v1328
        %1330 = vmatmul.f32.gmra.mxu0 %v660
        %v1331 = vpop.f32.mrf.mxu0
        %v1332 = vadd.f32 %v1267, %v1331
        %1333 = vmatmul.f32.gmra.mxu0 %v663
        %v1334 = vpop.f32.mrf.mxu0
        %v1335 = vadd.f32 %v1270, %v1334
        %1336 = vdwg.mxu0
        %1337 = vmatpush.msra.mxu0 %v808
        %1338 = vmatpush.msra.mxu0 %v805
        %1339 = vmatpush.msra.mxu0 %v802
        %1340 = vmatpush.msra.mxu0 %v799
        %1341 = vmatpush.msra.mxu0 %v796
        %1342 = vmatpush.msra.mxu0 %v793
        %1343 = vmatpush.msra.mxu0 %v790
        %1344 = vmatpush.msra.mxu0 %v787
        %1345 = vmatpush.msra.mxu0 %v784
        %1346 = vmatpush.msra.mxu0 %v781
        %1347 = vmatpush.msra.mxu0 %v778
        %1348 = vmatpush.msra.mxu0 %v775
        %1349 = vmatpush.msra.mxu0 %v772
        %1350 = vmatpush.msra.mxu0 %v769
        %1351 = vmatpush.msra.mxu0 %v766
        %1352 = vmatpush.msra.mxu0 %v763
        %1353 = vmatmul.f32.gmra.mxu0 %v619
        %v1354 = vpop.f32.mrf.mxu0
        %v1355 = vadd.f32 %v1290, %v1354
        %1356 = vmatmul.f32.gmra.mxu0 %v622
        %v1357 = vpop.f32.mrf.mxu0
        %v1358 = vadd.f32 %v1293, %v1357
        %1359 = vmatmul.f32.gmra.mxu0 %v625
        %v1360 = vpop.f32.mrf.mxu0
        %v1361 = vadd.f32 %v1296, %v1360
        %1362 = vmatmul.f32.gmra.mxu0 %v628
        %v1363 = vpop.f32.mrf.mxu0
        %v1364 = vadd.f32 %v1299, %v1363
        %1365 = vmatmul.f32.gmra.mxu0 %v631
        %v1366 = vpop.f32.mrf.mxu0
        %v1367 = vadd.f32 %v1302, %v1366
        %1368 = vmatmul.f32.gmra.mxu0 %v634
        %v1369 = vpop.f32.mrf.mxu0
        %v1370 = vadd.f32 %v1305, %v1369
        %1371 = vmatmul.f32.gmra.mxu0 %v637
        %v1372 = vpop.f32.mrf.mxu0
        %v1373 = vadd.f32 %v1308, %v1372
        %1374 = vmatmul.f32.gmra.mxu0 %v640
        %v1375 = vpop.f32.mrf.mxu0
        %v1376 = vadd.f32 %v1311, %v1375
        %1377 = vmatmul.f32.gmra.mxu0 %v643
        %v1378 = vpop.f32.mrf.mxu0
        %v1379 = vadd.f32 %v1314, %v1378
        %1380 = vmatmul.f32.gmra.mxu0 %v646
        %v1381 = vpop.f32.mrf.mxu0
        %v1382 = vadd.f32 %v1317, %v1381
        %1383 = vmatmul.f32.gmra.mxu0 %v649
        %v1384 = vpop.f32.mrf.mxu0
        %v1385 = vadd.f32 %v1320, %v1384
        %1386 = vmatmul.f32.gmra.mxu0 %v652
        %v1387 = vpop.f32.mrf.mxu0
        %v1388 = vadd.f32 %v1323, %v1387
        %1389 = vmatmul.f32.gmra.mxu0 %v655
        %v1390 = vpop.f32.mrf.mxu0
        %v1391 = vadd.f32 %v1326, %v1390
        %1392 = vmatmul.f32.gmra.mxu0 %v658
        %v1393 = vpop.f32.mrf.mxu0
        %v1394 = vadd.f32 %v1329, %v1393
        %1395 = vmatmul.f32.gmra.mxu0 %v661
        %v1396 = vpop.f32.mrf.mxu0
        %v1397 = vadd.f32 %v1332, %v1396
        %1398 = vmatmul.f32.gmra.mxu0 %v664
        %v1399 = vpop.f32.mrf.mxu0
        %v1400 = vadd.f32 %v1335, %v1399
        %1401 = vdwg.mxu0
        %v1402 = vmax.f32 %v965, 0.0
        %v1403 = vmax.f32 %v1160, 0.0
        %v1404 = vmax.f32 %v1355, 0.0
        %v1405 = vmax.f32 %v968, 0.0
        %v1406 = vmax.f32 %v1163, 0.0
        %v1407 = vmax.f32 %v1358, 0.0
        %v1408 = vmax.f32 %v971, 0.0
        %v1409 = vmax.f32 %v1166, 0.0
        %v1410 = vmax.f32 %v1361, 0.0
        %v1411 = vmax.f32 %v974, 0.0
        %v1412 = vmax.f32 %v1169, 0.0
        %v1413 = vmax.f32 %v1364, 0.0
        %v1414 = vmax.f32 %v977, 0.0
        %v1415 = vmax.f32 %v1172, 0.0
        %v1416 = vmax.f32 %v1367, 0.0
        %v1417 = vmax.f32 %v980, 0.0
        %v1418 = vmax.f32 %v1175, 0.0
        %v1419 = vmax.f32 %v1370, 0.0
        %v1420 = vmax.f32 %v983, 0.0
        %v1421 = vmax.f32 %v1178, 0.0
        %v1422 = vmax.f32 %v1373, 0.0
        %v1423 = vmax.f32 %v986, 0.0
        %v1424 = vmax.f32 %v1181, 0.0
        %v1425 = vmax.f32 %v1376, 0.0
        %v1426 = vmax.f32 %v989, 0.0
        %v1427 = vmax.f32 %v1184, 0.0
        %v1428 = vmax.f32 %v1379, 0.0
        %v1429 = vmax.f32 %v992, 0.0
        %v1430 = vmax.f32 %v1187, 0.0
        %v1431 = vmax.f32 %v1382, 0.0
        %v1432 = vmax.f32 %v995, 0.0
        %v1433 = vmax.f32 %v1190, 0.0
        %v1434 = vmax.f32 %v1385, 0.0
        %v1435 = vmax.f32 %v998, 0.0
        %v1436 = vmax.f32 %v1193, 0.0
        %v1437 = vmax.f32 %v1388, 0.0
        %v1438 = vmax.f32 %v1001, 0.0
        %v1439 = vmax.f32 %v1196, 0.0
        %v1440 = vmax.f32 %v1391, 0.0
        %v1441 = vmax.f32 %v1004, 0.0
        %v1442 = vmax.f32 %v1199, 0.0
        %v1443 = vmax.f32 %v1394, 0.0
        %v1444 = vmax.f32 %v1007, 0.0
        %v1445 = vmax.f32 %v1202, 0.0
        %v1446 = vmax.f32 %v1397, 0.0
        %v1447 = vmax.f32 %v1010, 0.0
        %v1448 = vmax.f32 %v1205, 0.0
        %v1449 = vmax.f32 %v1400, 0.0
        %v1450 = vld [vmem:[#allocation7] sm:$0xff]
        %v1451 = vld [vmem:[#allocation7 + $0x8] sm:$0xff]
        %v1452 = vld [vmem:[#allocation7 + $0x10] sm:$0xff]
        %v1453 = vld [vmem:[#allocation7 + $0x18] sm:$0xff]
        %v1454 = vld [vmem:[#allocation7 + $0x20] sm:$0xff]
        %v1455 = vld [vmem:[#allocation7 + $0x28] sm:$0xff]
        %v1456 = vld [vmem:[#allocation7 + $0x30] sm:$0xff]
        %v1457 = vld [vmem:[#allocation7 + $0x38] sm:$0xff]
        %v1458 = vld [vmem:[#allocation7 + $0x40] sm:$0xff]
        %v1459 = vld [vmem:[#allocation7 + $0x48] sm:$0xff]
        %v1460 = vld [vmem:[#allocation7 + $0x50] sm:$0xff]
        %v1461 = vld [vmem:[#allocation7 + $0x58] sm:$0xff]
        %v1462 = vld [vmem:[#allocation7 + $0x60] sm:$0xff]
        %v1463 = vld [vmem:[#allocation7 + $0x68] sm:$0xff]
        %v1464 = vld [vmem:[#allocation7 + $0x70] sm:$0xff]
        %v1465 = vld [vmem:[#allocation7 + $0x78] sm:$0xff]
        %v1466 = vld [vmem:[#allocation7 + $0x80] sm:$0xff]
        %v1467 = vld [vmem:[#allocation7 + $0x88] sm:$0xff]
        %v1468 = vld [vmem:[#allocation7 + $0x90] sm:$0xff]
        %v1469 = vld [vmem:[#allocation7 + $0x98] sm:$0xff]
        %v1470 = vld [vmem:[#allocation7 + $0xa0] sm:$0xff]
        %v1471 = vld [vmem:[#allocation7 + $0xa8] sm:$0xff]
        %v1472 = vld [vmem:[#allocation7 + $0xb0] sm:$0xff]
        %v1473 = vld [vmem:[#allocation7 + $0xb8] sm:$0xff]
        %v1474 = vld [vmem:[#allocation7 + $0xc0] sm:$0xff]
        %v1475 = vld [vmem:[#allocation7 + $0xc8] sm:$0xff]
        %v1476 = vld [vmem:[#allocation7 + $0xd0] sm:$0xff]
        %v1477 = vld [vmem:[#allocation7 + $0xd8] sm:$0xff]
        %v1478 = vld [vmem:[#allocation7 + $0xe0] sm:$0xff]
        %v1479 = vld [vmem:[#allocation7 + $0xe8] sm:$0xff]
        %v1480 = vld [vmem:[#allocation7 + $0xf0] sm:$0xff]
        %v1481 = vld [vmem:[#allocation7 + $0xf8] sm:$0xff]
        %v1482 = vld [vmem:[#allocation7 + $0x100] sm:$0xff]
        %v1483 = vld [vmem:[#allocation7 + $0x108] sm:$0xff]
        %v1484 = vld [vmem:[#allocation7 + $0x110] sm:$0xff]
        %v1485 = vld [vmem:[#allocation7 + $0x118] sm:$0xff]
        %v1486 = vld [vmem:[#allocation7 + $0x120] sm:$0xff]
        %v1487 = vld [vmem:[#allocation7 + $0x128] sm:$0xff]
        %v1488 = vld [vmem:[#allocation7 + $0x130] sm:$0xff]
        %v1489 = vld [vmem:[#allocation7 + $0x138] sm:$0xff]
        %v1490 = vld [vmem:[#allocation7 + $0x140] sm:$0xff]
        %v1491 = vld [vmem:[#allocation7 + $0x148] sm:$0xff]
        %v1492 = vld [vmem:[#allocation7 + $0x150] sm:$0xff]
        %v1493 = vld [vmem:[#allocation7 + $0x158] sm:$0xff]
        %v1494 = vld [vmem:[#allocation7 + $0x160] sm:$0xff]
        %v1495 = vld [vmem:[#allocation7 + $0x168] sm:$0xff]
        %v1496 = vld [vmem:[#allocation7 + $0x170] sm:$0xff]
        %v1497 = vld [vmem:[#allocation7 + $0x178] sm:$0xff]
        %v1498 = vld [vmem:[#allocation7 + $0x180] sm:$0xff]
        %v1499 = vld [vmem:[#allocation7 + $0x188] sm:$0xff]
        %v1500 = vld [vmem:[#allocation7 + $0x190] sm:$0xff]
        %v1501 = vld [vmem:[#allocation7 + $0x198] sm:$0xff]
        %v1502 = vld [vmem:[#allocation7 + $0x1a0] sm:$0xff]
        %v1503 = vld [vmem:[#allocation7 + $0x1a8] sm:$0xff]
        %v1504 = vld [vmem:[#allocation7 + $0x1b0] sm:$0xff]
        %v1505 = vld [vmem:[#allocation7 + $0x1b8] sm:$0xff]
        %v1506 = vld [vmem:[#allocation7 + $0x1c0] sm:$0xff]
        %v1507 = vld [vmem:[#allocation7 + $0x1c8] sm:$0xff]
        %v1508 = vld [vmem:[#allocation7 + $0x1d0] sm:$0xff]
        %v1509 = vld [vmem:[#allocation7 + $0x1d8] sm:$0xff]
        %v1510 = vld [vmem:[#allocation7 + $0x1e0] sm:$0xff]
        %v1511 = vld [vmem:[#allocation7 + $0x1e8] sm:$0xff]
        %v1512 = vld [vmem:[#allocation7 + $0x1f0] sm:$0xff]
        %v1513 = vld [vmem:[#allocation7 + $0x1f8] sm:$0xff]
        %v1514 = vld [vmem:[#allocation7 + $0x200] sm:$0xff]
        %v1515 = vld [vmem:[#allocation7 + $0x208] sm:$0xff]
        %v1516 = vld [vmem:[#allocation7 + $0x210] sm:$0xff]
        %v1517 = vld [vmem:[#allocation7 + $0x218] sm:$0xff]
        %v1518 = vld [vmem:[#allocation7 + $0x220] sm:$0xff]
        %v1519 = vld [vmem:[#allocation7 + $0x228] sm:$0xff]
        %v1520 = vld [vmem:[#allocation7 + $0x230] sm:$0xff]
        %v1521 = vld [vmem:[#allocation7 + $0x238] sm:$0xff]
        %v1522 = vld [vmem:[#allocation7 + $0x240] sm:$0xff]
        %v1523 = vld [vmem:[#allocation7 + $0x248] sm:$0xff]
        %v1524 = vld [vmem:[#allocation7 + $0x250] sm:$0xff]
        %v1525 = vld [vmem:[#allocation7 + $0x258] sm:$0xff]
        %v1526 = vld [vmem:[#allocation7 + $0x260] sm:$0xff]
        %v1527 = vld [vmem:[#allocation7 + $0x268] sm:$0xff]
        %v1528 = vld [vmem:[#allocation7 + $0x270] sm:$0xff]
        %v1529 = vld [vmem:[#allocation7 + $0x278] sm:$0xff]
        %v1530 = vld [vmem:[#allocation7 + $0x280] sm:$0xff]
        %v1531 = vld [vmem:[#allocation7 + $0x288] sm:$0xff]
        %v1532 = vld [vmem:[#allocation7 + $0x290] sm:$0xff]
        %v1533 = vld [vmem:[#allocation7 + $0x298] sm:$0xff]
        %v1534 = vld [vmem:[#allocation7 + $0x2a0] sm:$0xff]
        %v1535 = vld [vmem:[#allocation7 + $0x2a8] sm:$0xff]
        %v1536 = vld [vmem:[#allocation7 + $0x2b0] sm:$0xff]
        %v1537 = vld [vmem:[#allocation7 + $0x2b8] sm:$0xff]
        %v1538 = vld [vmem:[#allocation7 + $0x2c0] sm:$0xff]
        %v1539 = vld [vmem:[#allocation7 + $0x2c8] sm:$0xff]
        %v1540 = vld [vmem:[#allocation7 + $0x2d0] sm:$0xff]
        %v1541 = vld [vmem:[#allocation7 + $0x2d8] sm:$0xff]
        %v1542 = vld [vmem:[#allocation7 + $0x2e0] sm:$0xff]
        %v1543 = vld [vmem:[#allocation7 + $0x2e8] sm:$0xff]
        %v1544 = vld [vmem:[#allocation7 + $0x2f0] sm:$0xff]
        %v1545 = vld [vmem:[#allocation7 + $0x2f8] sm:$0xff]
        %v1546 = vld [vmem:[#allocation20 + $0x3] sm:$0x3]
        %v1548 = vperm.slane %v1546, 0
        %v1549 = vperm.slane %v1546, 1
        %1552 = vmatpush.msra.mxu0 %v1480
        %1553 = vmatpush.msra.mxu0 %v1478
        %1554 = vmatpush.msra.mxu0 %v1476
        %1555 = vmatpush.msra.mxu0 %v1474
        %1556 = vmatpush.msra.mxu0 %v1472
        %1557 = vmatpush.msra.mxu0 %v1470
        %1558 = vmatpush.msra.mxu0 %v1468
        %1559 = vmatpush.msra.mxu0 %v1466
        %1560 = vmatpush.msra.mxu0 %v1464
        %1561 = vmatpush.msra.mxu0 %v1462
        %1562 = vmatpush.msra.mxu0 %v1460
        %1563 = vmatpush.msra.mxu0 %v1458
        %1564 = vmatpush.msra.mxu0 %v1456
        %1565 = vmatpush.msra.mxu0 %v1454
        %1566 = vmatpush.msra.mxu0 %v1452
        %1567 = vmatpush.msra.mxu0 %v1450
        %1568 = vmatmul.f32.gmra.mxu0 %v1402
        %v1569 = vpop.f32.mrf.mxu0
        %v1570 = vadd.f32 %v1548, %v1569
        %1571 = vmatmul.f32.gmra.mxu0 %v1405
        %v1572 = vpop.f32.mrf.mxu0
        %v1573 = vadd.f32 %v1548, %v1572
        %1574 = vmatmul.f32.gmra.mxu0 %v1408
        %v1575 = vpop.f32.mrf.mxu0
        %v1576 = vadd.f32 %v1548, %v1575
        %1577 = vmatmul.f32.gmra.mxu0 %v1411
        %v1578 = vpop.f32.mrf.mxu0
        %v1579 = vadd.f32 %v1548, %v1578
        %1580 = vmatmul.f32.gmra.mxu0 %v1414
        %v1581 = vpop.f32.mrf.mxu0
        %v1582 = vadd.f32 %v1548, %v1581
        %1583 = vmatmul.f32.gmra.mxu0 %v1417
        %v1584 = vpop.f32.mrf.mxu0
        %v1585 = vadd.f32 %v1548, %v1584
        %1586 = vmatmul.f32.gmra.mxu0 %v1420
        %v1587 = vpop.f32.mrf.mxu0
        %v1588 = vadd.f32 %v1548, %v1587
        %1589 = vmatmul.f32.gmra.mxu0 %v1423
        %v1590 = vpop.f32.mrf.mxu0
        %v1591 = vadd.f32 %v1548, %v1590
        %1592 = vmatmul.f32.gmra.mxu0 %v1426
        %v1593 = vpop.f32.mrf.mxu0
        %v1594 = vadd.f32 %v1548, %v1593
        %1595 = vmatmul.f32.gmra.mxu0 %v1429
        %v1596 = vpop.f32.mrf.mxu0
        %v1597 = vadd.f32 %v1548, %v1596
        %1598 = vmatmul.f32.gmra.mxu0 %v1432
        %v1599 = vpop.f32.mrf.mxu0
        %v1600 = vadd.f32 %v1548, %v1599
        %1601 = vmatmul.f32.gmra.mxu0 %v1435
        %v1602 = vpop.f32.mrf.mxu0
        %v1603 = vadd.f32 %v1548, %v1602
        %1604 = vmatmul.f32.gmra.mxu0 %v1438
        %v1605 = vpop.f32.mrf.mxu0
        %v1606 = vadd.f32 %v1548, %v1605
        %1607 = vmatmul.f32.gmra.mxu0 %v1441
        %v1608 = vpop.f32.mrf.mxu0
        %v1609 = vadd.f32 %v1548, %v1608
        %1610 = vmatmul.f32.gmra.mxu0 %v1444
        %v1611 = vpop.f32.mrf.mxu0
        %v1612 = vadd.f32 %v1548, %v1611
        %1613 = vmatmul.f32.gmra.mxu0 %v1447
        %v1614 = vpop.f32.mrf.mxu0
        %v1615 = vadd.f32 %v1548, %v1614
        %1616 = vdwg.mxu0
        %1617 = vmatpush.msra.mxu0 %v1512
        %1618 = vmatpush.msra.mxu0 %v1510
        %1619 = vmatpush.msra.mxu0 %v1508
        %1620 = vmatpush.msra.mxu0 %v1506
        %1621 = vmatpush.msra.mxu0 %v1504
        %1622 = vmatpush.msra.mxu0 %v1502
        %1623 = vmatpush.msra.mxu0 %v1500
        %1624 = vmatpush.msra.mxu0 %v1498
        %1625 = vmatpush.msra.mxu0 %v1496
        %1626 = vmatpush.msra.mxu0 %v1494
        %1627 = vmatpush.msra.mxu0 %v1492
        %1628 = vmatpush.msra.mxu0 %v1490
        %1629 = vmatpush.msra.mxu0 %v1488
        %1630 = vmatpush.msra.mxu0 %v1486
        %1631 = vmatpush.msra.mxu0 %v1484
        %1632 = vmatpush.msra.mxu0 %v1482
        %1633 = vmatmul.f32.gmra.mxu0 %v1403
        %v1634 = vpop.f32.mrf.mxu0
        %v1635 = vadd.f32 %v1570, %v1634
        %1636 = vmatmul.f32.gmra.mxu0 %v1406
        %v1637 = vpop.f32.mrf.mxu0
        %v1638 = vadd.f32 %v1573, %v1637
        %1639 = vmatmul.f32.gmra.mxu0 %v1409
        %v1640 = vpop.f32.mrf.mxu0
        %v1641 = vadd.f32 %v1576, %v1640
        %1642 = vmatmul.f32.gmra.mxu0 %v1412
        %v1643 = vpop.f32.mrf.mxu0
        %v1644 = vadd.f32 %v1579, %v1643
        %1645 = vmatmul.f32.gmra.mxu0 %v1415
        %v1646 = vpop.f32.mrf.mxu0
        %v1647 = vadd.f32 %v1582, %v1646
        %1648 = vmatmul.f32.gmra.mxu0 %v1418
        %v1649 = vpop.f32.mrf.mxu0
        %v1650 = vadd.f32 %v1585, %v1649
        %1651 = vmatmul.f32.gmra.mxu0 %v1421
        %v1652 = vpop.f32.mrf.mxu0
        %v1653 = vadd.f32 %v1588, %v1652
        %1654 = vmatmul.f32.gmra.mxu0 %v1424
        %v1655 = vpop.f32.mrf.mxu0
        %v1656 = vadd.f32 %v1591, %v1655
        %1657 = vmatmul.f32.gmra.mxu0 %v1427
        %v1658 = vpop.f32.mrf.mxu0
        %v1659 = vadd.f32 %v1594, %v1658
        %1660 = vmatmul.f32.gmra.mxu0 %v1430
        %v1661 = vpop.f32.mrf.mxu0
        %v1662 = vadd.f32 %v1597, %v1661
        %1663 = vmatmul.f32.gmra.mxu0 %v1433
        %v1664 = vpop.f32.mrf.mxu0
        %v1665 = vadd.f32 %v1600, %v1664
        %1666 = vmatmul.f32.gmra.mxu0 %v1436
        %v1667 = vpop.f32.mrf.mxu0
        %v1668 = vadd.f32 %v1603, %v1667
        %1669 = vmatmul.f32.gmra.mxu0 %v1439
        %v1670 = vpop.f32.mrf.mxu0
        %v1671 = vadd.f32 %v1606, %v1670
        %1672 = vmatmul.f32.gmra.mxu0 %v1442
        %v1673 = vpop.f32.mrf.mxu0
        %v1674 = vadd.f32 %v1609, %v1673
        %1675 = vmatmul.f32.gmra.mxu0 %v1445
        %v1676 = vpop.f32.mrf.mxu0
        %v1677 = vadd.f32 %v1612, %v1676
        %1678 = vmatmul.f32.gmra.mxu0 %v1448
        %v1679 = vpop.f32.mrf.mxu0
        %v1680 = vadd.f32 %v1615, %v1679
        %1681 = vdwg.mxu0
        %1682 = vmatpush.msra.mxu0 %v1544
        %1683 = vmatpush.msra.mxu0 %v1542
        %1684 = vmatpush.msra.mxu0 %v1540
        %1685 = vmatpush.msra.mxu0 %v1538
        %1686 = vmatpush.msra.mxu0 %v1536
        %1687 = vmatpush.msra.mxu0 %v1534
        %1688 = vmatpush.msra.mxu0 %v1532
        %1689 = vmatpush.msra.mxu0 %v1530
        %1690 = vmatpush.msra.mxu0 %v1528
        %1691 = vmatpush.msra.mxu0 %v1526
        %1692 = vmatpush.msra.mxu0 %v1524
        %1693 = vmatpush.msra.mxu0 %v1522
        %1694 = vmatpush.msra.mxu0 %v1520
        %1695 = vmatpush.msra.mxu0 %v1518
        %1696 = vmatpush.msra.mxu0 %v1516
        %1697 = vmatpush.msra.mxu0 %v1514
        %1698 = vmatmul.f32.gmra.mxu0 %v1404
        %v1699 = vpop.f32.mrf.mxu0
        %v1700 = vadd.f32 %v1635, %v1699
        %1701 = vmatmul.f32.gmra.mxu0 %v1407
        %v1702 = vpop.f32.mrf.mxu0
        %v1703 = vadd.f32 %v1638, %v1702
        %1704 = vmatmul.f32.gmra.mxu0 %v1410
        %v1705 = vpop.f32.mrf.mxu0
        %v1706 = vadd.f32 %v1641, %v1705
        %1707 = vmatmul.f32.gmra.mxu0 %v1413
        %v1708 = vpop.f32.mrf.mxu0
        %v1709 = vadd.f32 %v1644, %v1708
        %1710 = vmatmul.f32.gmra.mxu0 %v1416
        %v1711 = vpop.f32.mrf.mxu0
        %v1712 = vadd.f32 %v1647, %v1711
        %1713 = vmatmul.f32.gmra.mxu0 %v1419
        %v1714 = vpop.f32.mrf.mxu0
        %v1715 = vadd.f32 %v1650, %v1714
        %1716 = vmatmul.f32.gmra.mxu0 %v1422
        %v1717 = vpop.f32.mrf.mxu0
        %v1718 = vadd.f32 %v1653, %v1717
        %1719 = vmatmul.f32.gmra.mxu0 %v1425
        %v1720 = vpop.f32.mrf.mxu0
        %v1721 = vadd.f32 %v1656, %v1720
        %1722 = vmatmul.f32.gmra.mxu0 %v1428
        %v1723 = vpop.f32.mrf.mxu0
        %v1724 = vadd.f32 %v1659, %v1723
        %1725 = vmatmul.f32.gmra.mxu0 %v1431
        %v1726 = vpop.f32.mrf.mxu0
        %v1727 = vadd.f32 %v1662, %v1726
        %1728 = vmatmul.f32.gmra.mxu0 %v1434
        %v1729 = vpop.f32.mrf.mxu0
        %v1730 = vadd.f32 %v1665, %v1729
        %1731 = vmatmul.f32.gmra.mxu0 %v1437
        %v1732 = vpop.f32.mrf.mxu0
        %v1733 = vadd.f32 %v1668, %v1732
        %1734 = vmatmul.f32.gmra.mxu0 %v1440
        %v1735 = vpop.f32.mrf.mxu0
        %v1736 = vadd.f32 %v1671, %v1735
        %1737 = vmatmul.f32.gmra.mxu0 %v1443
        %v1738 = vpop.f32.mrf.mxu0
        %v1739 = vadd.f32 %v1674, %v1738
        %1740 = vmatmul.f32.gmra.mxu0 %v1446
        %v1741 = vpop.f32.mrf.mxu0
        %v1742 = vadd.f32 %v1677, %v1741
        %1743 = vmatmul.f32.gmra.mxu0 %v1449
        %v1744 = vpop.f32.mrf.mxu0
        %v1745 = vadd.f32 %v1680, %v1744
        %1746 = vdwg.mxu0
        %1747 = vmatpush.msra.mxu0 %v1481
        %1748 = vmatpush.msra.mxu0 %v1479
        %1749 = vmatpush.msra.mxu0 %v1477
        %1750 = vmatpush.msra.mxu0 %v1475
        %1751 = vmatpush.msra.mxu0 %v1473
        %1752 = vmatpush.msra.mxu0 %v1471
        %1753 = vmatpush.msra.mxu0 %v1469
        %1754 = vmatpush.msra.mxu0 %v1467
        %1755 = vmatpush.msra.mxu0 %v1465
        %1756 = vmatpush.msra.mxu0 %v1463
        %1757 = vmatpush.msra.mxu0 %v1461
        %1758 = vmatpush.msra.mxu0 %v1459
        %1759 = vmatpush.msra.mxu0 %v1457
        %1760 = vmatpush.msra.mxu0 %v1455
        %1761 = vmatpush.msra.mxu0 %v1453
        %1762 = vmatpush.msra.mxu0 %v1451
        %1763 = vmatmul.f32.gmra.mxu0 %v1402
        %v1764 = vpop.f32.mrf.mxu0
        %v1765 = vadd.f32 %v1549, %v1764
        %1766 = vmatmul.f32.gmra.mxu0 %v1405
        %v1767 = vpop.f32.mrf.mxu0
        %v1768 = vadd.f32 %v1549, %v1767
        %1769 = vmatmul.f32.gmra.mxu0 %v1408
        %v1770 = vpop.f32.mrf.mxu0
        %v1771 = vadd.f32 %v1549, %v1770
        %1772 = vmatmul.f32.gmra.mxu0 %v1411
        %v1773 = vpop.f32.mrf.mxu0
        %v1774 = vadd.f32 %v1549, %v1773
        %1775 = vmatmul.f32.gmra.mxu0 %v1414
        %v1776 = vpop.f32.mrf.mxu0
        %v1777 = vadd.f32 %v1549, %v1776
        %1778 = vmatmul.f32.gmra.mxu0 %v1417
        %v1779 = vpop.f32.mrf.mxu0
        %v1780 = vadd.f32 %v1549, %v1779
        %1781 = vmatmul.f32.gmra.mxu0 %v1420
        %v1782 = vpop.f32.mrf.mxu0
        %v1783 = vadd.f32 %v1549, %v1782
        %1784 = vmatmul.f32.gmra.mxu0 %v1423
        %v1785 = vpop.f32.mrf.mxu0
        %v1786 = vadd.f32 %v1549, %v1785
        %1787 = vmatmul.f32.gmra.mxu0 %v1426
        %v1788 = vpop.f32.mrf.mxu0
        %v1789 = vadd.f32 %v1549, %v1788
        %1790 = vmatmul.f32.gmra.mxu0 %v1429
        %v1791 = vpop.f32.mrf.mxu0
        %v1792 = vadd.f32 %v1549, %v1791
        %1793 = vmatmul.f32.gmra.mxu0 %v1432
        %v1794 = vpop.f32.mrf.mxu0
        %v1795 = vadd.f32 %v1549, %v1794
        %1796 = vmatmul.f32.gmra.mxu0 %v1435
        %v1797 = vpop.f32.mrf.mxu0
        %v1798 = vadd.f32 %v1549, %v1797
        %1799 = vmatmul.f32.gmra.mxu0 %v1438
        %v1800 = vpop.f32.mrf.mxu0
        %v1801 = vadd.f32 %v1549, %v1800
        %1802 = vmatmul.f32.gmra.mxu0 %v1441
        %v1803 = vpop.f32.mrf.mxu0
        %v1804 = vadd.f32 %v1549, %v1803
        %1805 = vmatmul.f32.gmra.mxu0 %v1444
        %v1806 = vpop.f32.mrf.mxu0
        %v1807 = vadd.f32 %v1549, %v1806
        %1808 = vmatmul.f32.gmra.mxu0 %v1447
        %v1809 = vpop.f32.mrf.mxu0
        %v1810 = vadd.f32 %v1549, %v1809
        %1811 = vdwg.mxu0
        %1812 = vmatpush.msra.mxu0 %v1513
        %1813 = vmatpush.msra.mxu0 %v1511
        %1814 = vmatpush.msra.mxu0 %v1509
        %1815 = vmatpush.msra.mxu0 %v1507
        %1816 = vmatpush.msra.mxu0 %v1505
        %1817 = vmatpush.msra.mxu0 %v1503
        %1818 = vmatpush.msra.mxu0 %v1501
        %1819 = vmatpush.msra.mxu0 %v1499
        %1820 = vmatpush.msra.mxu0 %v1497
        %1821 = vmatpush.msra.mxu0 %v1495
        %1822 = vmatpush.msra.mxu0 %v1493
        %1823 = vmatpush.msra.mxu0 %v1491
        %1824 = vmatpush.msra.mxu0 %v1489
        %1825 = vmatpush.msra.mxu0 %v1487
        %1826 = vmatpush.msra.mxu0 %v1485
        %1827 = vmatpush.msra.mxu0 %v1483
        %1828 = vmatmul.f32.gmra.mxu0 %v1403
        %v1829 = vpop.f32.mrf.mxu0
        %v1830 = vadd.f32 %v1765, %v1829
        %1831 = vmatmul.f32.gmra.mxu0 %v1406
        %v1832 = vpop.f32.mrf.mxu0
        %v1833 = vadd.f32 %v1768, %v1832
        %1834 = vmatmul.f32.gmra.mxu0 %v1409
        %v1835 = vpop.f32.mrf.mxu0
        %v1836 = vadd.f32 %v1771, %v1835
        %1837 = vmatmul.f32.gmra.mxu0 %v1412
        %v1838 = vpop.f32.mrf.mxu0
        %v1839 = vadd.f32 %v1774, %v1838
        %1840 = vmatmul.f32.gmra.mxu0 %v1415
        %v1841 = vpop.f32.mrf.mxu0
        %v1842 = vadd.f32 %v1777, %v1841
        %1843 = vmatmul.f32.gmra.mxu0 %v1418
        %v1844 = vpop.f32.mrf.mxu0
        %v1845 = vadd.f32 %v1780, %v1844
        %1846 = vmatmul.f32.gmra.mxu0 %v1421
        %v1847 = vpop.f32.mrf.mxu0
        %v1848 = vadd.f32 %v1783, %v1847
        %1849 = vmatmul.f32.gmra.mxu0 %v1424
        %v1850 = vpop.f32.mrf.mxu0
        %v1851 = vadd.f32 %v1786, %v1850
        %1852 = vmatmul.f32.gmra.mxu0 %v1427
        %v1853 = vpop.f32.mrf.mxu0
        %v1854 = vadd.f32 %v1789, %v1853
        %1855 = vmatmul.f32.gmra.mxu0 %v1430
        %v1856 = vpop.f32.mrf.mxu0
        %v1857 = vadd.f32 %v1792, %v1856
        %1858 = vmatmul.f32.gmra.mxu0 %v1433
        %v1859 = vpop.f32.mrf.mxu0
        %v1860 = vadd.f32 %v1795, %v1859
        %1861 = vmatmul.f32.gmra.mxu0 %v1436
        %v1862 = vpop.f32.mrf.mxu0
        %v1863 = vadd.f32 %v1798, %v1862
        %1864 = vmatmul.f32.gmra.mxu0 %v1439
        %v1865 = vpop.f32.mrf.mxu0
        %v1866 = vadd.f32 %v1801, %v1865
        %1867 = vmatmul.f32.gmra.mxu0 %v1442
        %v1868 = vpop.f32.mrf.mxu0
        %v1869 = vadd.f32 %v1804, %v1868
        %1870 = vmatmul.f32.gmra.mxu0 %v1445
        %v1871 = vpop.f32.mrf.mxu0
        %v1872 = vadd.f32 %v1807, %v1871
        %1873 = vmatmul.f32.gmra.mxu0 %v1448
        %v1874 = vpop.f32.mrf.mxu0
        %v1875 = vadd.f32 %v1810, %v1874
        %1876 = vdwg.mxu0
        %1877 = vmatpush.msra.mxu0 %v1545
        %1878 = vmatpush.msra.mxu0 %v1543
        %1879 = vmatpush.msra.mxu0 %v1541
        %1880 = vmatpush.msra.mxu0 %v1539
        %1881 = vmatpush.msra.mxu0 %v1537
        %1882 = vmatpush.msra.mxu0 %v1535
        %1883 = vmatpush.msra.mxu0 %v1533
        %1884 = vmatpush.msra.mxu0 %v1531
        %1885 = vmatpush.msra.mxu0 %v1529
        %1886 = vmatpush.msra.mxu0 %v1527
        %1887 = vmatpush.msra.mxu0 %v1525
        %1888 = vmatpush.msra.mxu0 %v1523
        %1889 = vmatpush.msra.mxu0 %v1521
        %1890 = vmatpush.msra.mxu0 %v1519
        %1891 = vmatpush.msra.mxu0 %v1517
        %1892 = vmatpush.msra.mxu0 %v1515
        %1893 = vmatmul.f32.gmra.mxu0 %v1404
        %v1894 = vpop.f32.mrf.mxu0
        %v1895 = vadd.f32 %v1830, %v1894
        %1896 = vmatmul.f32.gmra.mxu0 %v1407
        %v1897 = vpop.f32.mrf.mxu0
        %v1898 = vadd.f32 %v1833, %v1897
        %1899 = vmatmul.f32.gmra.mxu0 %v1410
        %v1900 = vpop.f32.mrf.mxu0
        %v1901 = vadd.f32 %v1836, %v1900
        %1902 = vmatmul.f32.gmra.mxu0 %v1413
        %v1903 = vpop.f32.mrf.mxu0
        %v1904 = vadd.f32 %v1839, %v1903
        %1905 = vmatmul.f32.gmra.mxu0 %v1416
        %v1906 = vpop.f32.mrf.mxu0
        %v1907 = vadd.f32 %v1842, %v1906
        %1908 = vmatmul.f32.gmra.mxu0 %v1419
        %v1909 = vpop.f32.mrf.mxu0
        %v1910 = vadd.f32 %v1845, %v1909
        %1911 = vmatmul.f32.gmra.mxu0 %v1422
        %v1912 = vpop.f32.mrf.mxu0
        %v1913 = vadd.f32 %v1848, %v1912
        %1914 = vmatmul.f32.gmra.mxu0 %v1425
        %v1915 = vpop.f32.mrf.mxu0
        %v1916 = vadd.f32 %v1851, %v1915
        %1917 = vmatmul.f32.gmra.mxu0 %v1428
        %v1918 = vpop.f32.mrf.mxu0
        %v1919 = vadd.f32 %v1854, %v1918
        %1920 = vmatmul.f32.gmra.mxu0 %v1431
        %v1921 = vpop.f32.mrf.mxu0
        %v1922 = vadd.f32 %v1857, %v1921
        %1923 = vmatmul.f32.gmra.mxu0 %v1434
        %v1924 = vpop.f32.mrf.mxu0
        %v1925 = vadd.f32 %v1860, %v1924
        %1926 = vmatmul.f32.gmra.mxu0 %v1437
        %v1927 = vpop.f32.mrf.mxu0
        %v1928 = vadd.f32 %v1863, %v1927
        %1929 = vmatmul.f32.gmra.mxu0 %v1440
        %v1930 = vpop.f32.mrf.mxu0
        %v1931 = vadd.f32 %v1866, %v1930
        %1932 = vmatmul.f32.gmra.mxu0 %v1443
        %v1933 = vpop.f32.mrf.mxu0
        %v1934 = vadd.f32 %v1869, %v1933
        %1935 = vmatmul.f32.gmra.mxu0 %v1446
        %v1936 = vpop.f32.mrf.mxu0
        %v1937 = vadd.f32 %v1872, %v1936
        %1938 = vmatmul.f32.gmra.mxu0 %v1449
        %v1939 = vpop.f32.mrf.mxu0
        %v1940 = vadd.f32 %v1875, %v1939
        %1941 = vdwg.mxu0
        %v1942 = vmax.f32 %v1700, 0.0
        %v1943 = vmax.f32 %v1895, 0.0
        %v1944 = vmax.f32 %v1703, 0.0
        %v1945 = vmax.f32 %v1898, 0.0
        %v1946 = vmax.f32 %v1706, 0.0
        %v1947 = vmax.f32 %v1901, 0.0
        %v1948 = vmax.f32 %v1709, 0.0
        %v1949 = vmax.f32 %v1904, 0.0
        %v1950 = vmax.f32 %v1712, 0.0
        %v1951 = vmax.f32 %v1907, 0.0
        %v1952 = vmax.f32 %v1715, 0.0
        %v1953 = vmax.f32 %v1910, 0.0
        %v1954 = vmax.f32 %v1718, 0.0
        %v1955 = vmax.f32 %v1913, 0.0
        %v1956 = vmax.f32 %v1721, 0.0
        %v1957 = vmax.f32 %v1916, 0.0
        %v1958 = vmax.f32 %v1724, 0.0
        %v1959 = vmax.f32 %v1919, 0.0
        %v1960 = vmax.f32 %v1727, 0.0
        %v1961 = vmax.f32 %v1922, 0.0
        %v1962 = vmax.f32 %v1730, 0.0
        %v1963 = vmax.f32 %v1925, 0.0
        %v1964 = vmax.f32 %v1733, 0.0
        %v1965 = vmax.f32 %v1928, 0.0
        %v1966 = vmax.f32 %v1736, 0.0
        %v1967 = vmax.f32 %v1931, 0.0
        %v1968 = vmax.f32 %v1739, 0.0
        %v1969 = vmax.f32 %v1934, 0.0
        %v1970 = vmax.f32 %v1742, 0.0
        %v1971 = vmax.f32 %v1937, 0.0
        %v1972 = vmax.f32 %v1745, 0.0
        %v1973 = vmax.f32 %v1940, 0.0
        %v1974 = vld [vmem:[#allocation8] sm:$0xff]
        %v1975 = vld [vmem:[#allocation8 + $0x8] sm:$0xff]
        %v1976 = vld [vmem:[#allocation8 + $0x10] sm:$0xff]
        %v1977 = vld [vmem:[#allocation8 + $0x18] sm:$0xff]
        %v1978 = vld [vmem:[#allocation8 + $0x20] sm:$0xff]
        %v1979 = vld [vmem:[#allocation8 + $0x28] sm:$0xff]
        %v1980 = vld [vmem:[#allocation8 + $0x30] sm:$0xff]
        %v1981 = vld [vmem:[#allocation8 + $0x38] sm:$0xff]
        %v1982 = vld [vmem:[#allocation8 + $0x40] sm:$0xff]
        %v1983 = vld [vmem:[#allocation8 + $0x48] sm:$0xff]
        %v1984 = vld [vmem:[#allocation8 + $0x50] sm:$0xff]
        %v1985 = vld [vmem:[#allocation8 + $0x58] sm:$0xff]
        %v1986 = vld [vmem:[#allocation8 + $0x60] sm:$0xff]
        %v1987 = vld [vmem:[#allocation8 + $0x68] sm:$0xff]
        %v1988 = vld [vmem:[#allocation8 + $0x70] sm:$0xff]
        %v1989 = vld [vmem:[#allocation8 + $0x78] sm:$0xff]
        %v1990 = vld [vmem:[#allocation8 + $0x80] sm:$0xff]
        %v1991 = vld [vmem:[#allocation8 + $0x88] sm:$0xff]
        %v1992 = vld [vmem:[#allocation8 + $0x90] sm:$0xff]
        %v1993 = vld [vmem:[#allocation8 + $0x98] sm:$0xff]
        %v1994 = vld [vmem:[#allocation8 + $0xa0] sm:$0xff]
        %v1995 = vld [vmem:[#allocation8 + $0xa8] sm:$0xff]
        %v1996 = vld [vmem:[#allocation8 + $0xb0] sm:$0xff]
        %v1997 = vld [vmem:[#allocation8 + $0xb8] sm:$0xff]
        %v1998 = vld [vmem:[#allocation8 + $0xc0] sm:$0xff]
        %v1999 = vld [vmem:[#allocation8 + $0xc8] sm:$0xff]
        %v2000 = vld [vmem:[#allocation8 + $0xd0] sm:$0xff]
        %v2001 = vld [vmem:[#allocation8 + $0xd8] sm:$0xff]
        %v2002 = vld [vmem:[#allocation8 + $0xe0] sm:$0xff]
        %v2003 = vld [vmem:[#allocation8 + $0xe8] sm:$0xff]
        %v2004 = vld [vmem:[#allocation8 + $0xf0] sm:$0xff]
        %v2005 = vld [vmem:[#allocation8 + $0xf8] sm:$0xff]
        %v2006 = vld [vmem:[#allocation8 + $0x100] sm:$0xff]
        %v2007 = vld [vmem:[#allocation8 + $0x108] sm:$0xff]
        %v2008 = vld [vmem:[#allocation8 + $0x110] sm:$0xff]
        %v2009 = vld [vmem:[#allocation8 + $0x118] sm:$0xff]
        %v2010 = vld [vmem:[#allocation8 + $0x120] sm:$0xff]
        %v2011 = vld [vmem:[#allocation8 + $0x128] sm:$0xff]
        %v2012 = vld [vmem:[#allocation8 + $0x130] sm:$0xff]
        %v2013 = vld [vmem:[#allocation8 + $0x138] sm:$0xff]
        %v2014 = vld [vmem:[#allocation8 + $0x140] sm:$0xff]
        %v2015 = vld [vmem:[#allocation8 + $0x148] sm:$0xff]
        %v2016 = vld [vmem:[#allocation8 + $0x150] sm:$0xff]
        %v2017 = vld [vmem:[#allocation8 + $0x158] sm:$0xff]
        %v2018 = vld [vmem:[#allocation8 + $0x160] sm:$0xff]
        %v2019 = vld [vmem:[#allocation8 + $0x168] sm:$0xff]
        %v2020 = vld [vmem:[#allocation8 + $0x170] sm:$0xff]
        %v2021 = vld [vmem:[#allocation8 + $0x178] sm:$0xff]
        %v2022 = vld [vmem:[#allocation8 + $0x180] sm:$0xff]
        %v2023 = vld [vmem:[#allocation8 + $0x188] sm:$0xff]
        %v2024 = vld [vmem:[#allocation8 + $0x190] sm:$0xff]
        %v2025 = vld [vmem:[#allocation8 + $0x198] sm:$0xff]
        %v2026 = vld [vmem:[#allocation8 + $0x1a0] sm:$0xff]
        %v2027 = vld [vmem:[#allocation8 + $0x1a8] sm:$0xff]
        %v2028 = vld [vmem:[#allocation8 + $0x1b0] sm:$0xff]
        %v2029 = vld [vmem:[#allocation8 + $0x1b8] sm:$0xff]
        %v2030 = vld [vmem:[#allocation8 + $0x1c0] sm:$0xff]
        %v2031 = vld [vmem:[#allocation8 + $0x1c8] sm:$0xff]
        %v2032 = vld [vmem:[#allocation8 + $0x1d0] sm:$0xff]
        %v2033 = vld [vmem:[#allocation8 + $0x1d8] sm:$0xff]
        %v2034 = vld [vmem:[#allocation8 + $0x1e0] sm:$0xff]
        %v2035 = vld [vmem:[#allocation8 + $0x1e8] sm:$0xff]
        %v2036 = vld [vmem:[#allocation8 + $0x1f0] sm:$0xff]
        %v2037 = vld [vmem:[#allocation8 + $0x1f8] sm:$0xff]
        %v2038 = vld [vmem:[#allocation20 + $0x5] sm:$0x3]
        %v2040 = vperm.slane %v2038, 0
        %v2041 = vperm.slane %v2038, 1
        %2044 = vmatpush.msra.mxu0 %v2004
        %2045 = vmatpush.msra.mxu0 %v2002
        %2046 = vmatpush.msra.mxu0 %v2000
        %2047 = vmatpush.msra.mxu0 %v1998
        %2048 = vmatpush.msra.mxu0 %v1996
        %2049 = vmatpush.msra.mxu0 %v1994
        %2050 = vmatpush.msra.mxu0 %v1992
        %2051 = vmatpush.msra.mxu0 %v1990
        %2052 = vmatpush.msra.mxu0 %v1988
        %2053 = vmatpush.msra.mxu0 %v1986
        %2054 = vmatpush.msra.mxu0 %v1984
        %2055 = vmatpush.msra.mxu0 %v1982
        %2056 = vmatpush.msra.mxu0 %v1980
        %2057 = vmatpush.msra.mxu0 %v1978
        %2058 = vmatpush.msra.mxu0 %v1976
        %2059 = vmatpush.msra.mxu0 %v1974
        %2060 = vmatmul.f32.gmra.mxu0 %v1942
        %v2061 = vpop.f32.mrf.mxu0
        %v2062 = vadd.f32 %v2040, %v2061
        %2063 = vmatmul.f32.gmra.mxu0 %v1944
        %v2064 = vpop.f32.mrf.mxu0
        %v2065 = vadd.f32 %v2040, %v2064
        %2066 = vmatmul.f32.gmra.mxu0 %v1946
        %v2067 = vpop.f32.mrf.mxu0
        %v2068 = vadd.f32 %v2040, %v2067
        %2069 = vmatmul.f32.gmra.mxu0 %v1948
        %v2070 = vpop.f32.mrf.mxu0
        %v2071 = vadd.f32 %v2040, %v2070
        %2072 = vmatmul.f32.gmra.mxu0 %v1950
        %v2073 = vpop.f32.mrf.mxu0
        %v2074 = vadd.f32 %v2040, %v2073
        %2075 = vmatmul.f32.gmra.mxu0 %v1952
        %v2076 = vpop.f32.mrf.mxu0
        %v2077 = vadd.f32 %v2040, %v2076
        %2078 = vmatmul.f32.gmra.mxu0 %v1954
        %v2079 = vpop.f32.mrf.mxu0
        %v2080 = vadd.f32 %v2040, %v2079
        %2081 = vmatmul.f32.gmra.mxu0 %v1956
        %v2082 = vpop.f32.mrf.mxu0
        %v2083 = vadd.f32 %v2040, %v2082
        %2084 = vmatmul.f32.gmra.mxu0 %v1958
        %v2085 = vpop.f32.mrf.mxu0
        %v2086 = vadd.f32 %v2040, %v2085
        %2087 = vmatmul.f32.gmra.mxu0 %v1960
        %v2088 = vpop.f32.mrf.mxu0
        %v2089 = vadd.f32 %v2040, %v2088
        %2090 = vmatmul.f32.gmra.mxu0 %v1962
        %v2091 = vpop.f32.mrf.mxu0
        %v2092 = vadd.f32 %v2040, %v2091
        %2093 = vmatmul.f32.gmra.mxu0 %v1964
        %v2094 = vpop.f32.mrf.mxu0
        %v2095 = vadd.f32 %v2040, %v2094
        %2096 = vmatmul.f32.gmra.mxu0 %v1966
        %v2097 = vpop.f32.mrf.mxu0
        %v2098 = vadd.f32 %v2040, %v2097
        %2099 = vmatmul.f32.gmra.mxu0 %v1968
        %v2100 = vpop.f32.mrf.mxu0
        %v2101 = vadd.f32 %v2040, %v2100
        %2102 = vmatmul.f32.gmra.mxu0 %v1970
        %v2103 = vpop.f32.mrf.mxu0
        %v2104 = vadd.f32 %v2040, %v2103
        %2105 = vmatmul.f32.gmra.mxu0 %v1972
        %v2106 = vpop.f32.mrf.mxu0
        %v2107 = vadd.f32 %v2040, %v2106
        %2108 = vdwg.mxu0
        %2109 = vmatpush.msra.mxu0 %v2036
        %2110 = vmatpush.msra.mxu0 %v2034
        %2111 = vmatpush.msra.mxu0 %v2032
        %2112 = vmatpush.msra.mxu0 %v2030
        %2113 = vmatpush.msra.mxu0 %v2028
        %2114 = vmatpush.msra.mxu0 %v2026
        %2115 = vmatpush.msra.mxu0 %v2024
        %2116 = vmatpush.msra.mxu0 %v2022
        %2117 = vmatpush.msra.mxu0 %v2020
        %2118 = vmatpush.msra.mxu0 %v2018
        %2119 = vmatpush.msra.mxu0 %v2016
        %2120 = vmatpush.msra.mxu0 %v2014
        %2121 = vmatpush.msra.mxu0 %v2012
        %2122 = vmatpush.msra.mxu0 %v2010
        %2123 = vmatpush.msra.mxu0 %v2008
        %2124 = vmatpush.msra.mxu0 %v2006
        %2125 = vmatmul.f32.gmra.mxu0 %v1943
        %v2126 = vpop.f32.mrf.mxu0
        %v2127 = vadd.f32 %v2062, %v2126
        %2128 = vmatmul.f32.gmra.mxu0 %v1945
        %v2129 = vpop.f32.mrf.mxu0
        %v2130 = vadd.f32 %v2065, %v2129
        %2131 = vmatmul.f32.gmra.mxu0 %v1947
        %v2132 = vpop.f32.mrf.mxu0
        %v2133 = vadd.f32 %v2068, %v2132
        %2134 = vmatmul.f32.gmra.mxu0 %v1949
        %v2135 = vpop.f32.mrf.mxu0
        %v2136 = vadd.f32 %v2071, %v2135
        %2137 = vmatmul.f32.gmra.mxu0 %v1951
        %v2138 = vpop.f32.mrf.mxu0
        %v2139 = vadd.f32 %v2074, %v2138
        %2140 = vmatmul.f32.gmra.mxu0 %v1953
        %v2141 = vpop.f32.mrf.mxu0
        %v2142 = vadd.f32 %v2077, %v2141
        %2143 = vmatmul.f32.gmra.mxu0 %v1955
        %v2144 = vpop.f32.mrf.mxu0
        %v2145 = vadd.f32 %v2080, %v2144
        %2146 = vmatmul.f32.gmra.mxu0 %v1957
        %v2147 = vpop.f32.mrf.mxu0
        %v2148 = vadd.f32 %v2083, %v2147
        %2149 = vmatmul.f32.gmra.mxu0 %v1959
        %v2150 = vpop.f32.mrf.mxu0
        %v2151 = vadd.f32 %v2086, %v2150
        %2152 = vmatmul.f32.gmra.mxu0 %v1961
        %v2153 = vpop.f32.mrf.mxu0
        %v2154 = vadd.f32 %v2089, %v2153
        %2155 = vmatmul.f32.gmra.mxu0 %v1963
        %v2156 = vpop.f32.mrf.mxu0
        %v2157 = vadd.f32 %v2092, %v2156
        %2158 = vmatmul.f32.gmra.mxu0 %v1965
        %v2159 = vpop.f32.mrf.mxu0
        %v2160 = vadd.f32 %v2095, %v2159
        %2161 = vmatmul.f32.gmra.mxu0 %v1967
        %v2162 = vpop.f32.mrf.mxu0
        %v2163 = vadd.f32 %v2098, %v2162
        %2164 = vmatmul.f32.gmra.mxu0 %v1969
        %v2165 = vpop.f32.mrf.mxu0
        %v2166 = vadd.f32 %v2101, %v2165
        %2167 = vmatmul.f32.gmra.mxu0 %v1971
        %v2168 = vpop.f32.mrf.mxu0
        %v2169 = vadd.f32 %v2104, %v2168
        %2170 = vmatmul.f32.gmra.mxu0 %v1973
        %v2171 = vpop.f32.mrf.mxu0
        %v2172 = vadd.f32 %v2107, %v2171
        %2173 = vdwg.mxu0
        %2174 = vmatpush.msra.mxu0 %v2005
        %2175 = vmatpush.msra.mxu0 %v2003
        %2176 = vmatpush.msra.mxu0 %v2001
        %2177 = vmatpush.msra.mxu0 %v1999
        %2178 = vmatpush.msra.mxu0 %v1997
        %2179 = vmatpush.msra.mxu0 %v1995
        %2180 = vmatpush.msra.mxu0 %v1993
        %2181 = vmatpush.msra.mxu0 %v1991
        %2182 = vmatpush.msra.mxu0 %v1989
        %2183 = vmatpush.msra.mxu0 %v1987
        %2184 = vmatpush.msra.mxu0 %v1985
        %2185 = vmatpush.msra.mxu0 %v1983
        %2186 = vmatpush.msra.mxu0 %v1981
        %2187 = vmatpush.msra.mxu0 %v1979
        %2188 = vmatpush.msra.mxu0 %v1977
        %2189 = vmatpush.msra.mxu0 %v1975
        %2190 = vmatmul.f32.gmra.mxu0 %v1942
        %v2191 = vpop.f32.mrf.mxu0
        %v2192 = vadd.f32 %v2041, %v2191
        %2193 = vmatmul.f32.gmra.mxu0 %v1944
        %v2194 = vpop.f32.mrf.mxu0
        %v2195 = vadd.f32 %v2041, %v2194
        %2196 = vmatmul.f32.gmra.mxu0 %v1946
        %v2197 = vpop.f32.mrf.mxu0
        %v2198 = vadd.f32 %v2041, %v2197
        %2199 = vmatmul.f32.gmra.mxu0 %v1948
        %v2200 = vpop.f32.mrf.mxu0
        %v2201 = vadd.f32 %v2041, %v2200
        %2202 = vmatmul.f32.gmra.mxu0 %v1950
        %v2203 = vpop.f32.mrf.mxu0
        %v2204 = vadd.f32 %v2041, %v2203
        %2205 = vmatmul.f32.gmra.mxu0 %v1952
        %v2206 = vpop.f32.mrf.mxu0
        %v2207 = vadd.f32 %v2041, %v2206
        %2208 = vmatmul.f32.gmra.mxu0 %v1954
        %v2209 = vpop.f32.mrf.mxu0
        %v2210 = vadd.f32 %v2041, %v2209
        %2211 = vmatmul.f32.gmra.mxu0 %v1956
        %v2212 = vpop.f32.mrf.mxu0
        %v2213 = vadd.f32 %v2041, %v2212
        %2214 = vmatmul.f32.gmra.mxu0 %v1958
        %v2215 = vpop.f32.mrf.mxu0
        %v2216 = vadd.f32 %v2041, %v2215
        %2217 = vmatmul.f32.gmra.mxu0 %v1960
        %v2218 = vpop.f32.mrf.mxu0
        %v2219 = vadd.f32 %v2041, %v2218
        %2220 = vmatmul.f32.gmra.mxu0 %v1962
        %v2221 = vpop.f32.mrf.mxu0
        %v2222 = vadd.f32 %v2041, %v2221
        %2223 = vmatmul.f32.gmra.mxu0 %v1964
        %v2224 = vpop.f32.mrf.mxu0
        %v2225 = vadd.f32 %v2041, %v2224
        %2226 = vmatmul.f32.gmra.mxu0 %v1966
        %v2227 = vpop.f32.mrf.mxu0
        %v2228 = vadd.f32 %v2041, %v2227
        %2229 = vmatmul.f32.gmra.mxu0 %v1968
        %v2230 = vpop.f32.mrf.mxu0
        %v2231 = vadd.f32 %v2041, %v2230
        %2232 = vmatmul.f32.gmra.mxu0 %v1970
        %v2233 = vpop.f32.mrf.mxu0
        %v2234 = vadd.f32 %v2041, %v2233
        %2235 = vmatmul.f32.gmra.mxu0 %v1972
        %v2236 = vpop.f32.mrf.mxu0
        %v2237 = vadd.f32 %v2041, %v2236
        %2238 = vdwg.mxu0
        %2239 = vmatpush.msra.mxu0 %v2037
        %2240 = vmatpush.msra.mxu0 %v2035
        %2241 = vmatpush.msra.mxu0 %v2033
        %2242 = vmatpush.msra.mxu0 %v2031
        %2243 = vmatpush.msra.mxu0 %v2029
        %2244 = vmatpush.msra.mxu0 %v2027
        %2245 = vmatpush.msra.mxu0 %v2025
        %2246 = vmatpush.msra.mxu0 %v2023
        %2247 = vmatpush.msra.mxu0 %v2021
        %2248 = vmatpush.msra.mxu0 %v2019
        %2249 = vmatpush.msra.mxu0 %v2017
        %2250 = vmatpush.msra.mxu0 %v2015
        %2251 = vmatpush.msra.mxu0 %v2013
        %2252 = vmatpush.msra.mxu0 %v2011
        %2253 = vmatpush.msra.mxu0 %v2009
        %2254 = vmatpush.msra.mxu0 %v2007
        %2255 = vmatmul.f32.gmra.mxu0 %v1943
        %v2256 = vpop.f32.mrf.mxu0
        %v2257 = vadd.f32 %v2192, %v2256
        %2258 = vmatmul.f32.gmra.mxu0 %v1945
        %v2259 = vpop.f32.mrf.mxu0
        %v2260 = vadd.f32 %v2195, %v2259
        %2261 = vmatmul.f32.gmra.mxu0 %v1947
        %v2262 = vpop.f32.mrf.mxu0
        %v2263 = vadd.f32 %v2198, %v2262
        %2264 = vmatmul.f32.gmra.mxu0 %v1949
        %v2265 = vpop.f32.mrf.mxu0
        %v2266 = vadd.f32 %v2201, %v2265
        %2267 = vmatmul.f32.gmra.mxu0 %v1951
        %v2268 = vpop.f32.mrf.mxu0
        %v2269 = vadd.f32 %v2204, %v2268
        %2270 = vmatmul.f32.gmra.mxu0 %v1953
        %v2271 = vpop.f32.mrf.mxu0
        %v2272 = vadd.f32 %v2207, %v2271
        %2273 = vmatmul.f32.gmra.mxu0 %v1955
        %v2274 = vpop.f32.mrf.mxu0
        %v2275 = vadd.f32 %v2210, %v2274
        %2276 = vmatmul.f32.gmra.mxu0 %v1957
        %v2277 = vpop.f32.mrf.mxu0
        %v2278 = vadd.f32 %v2213, %v2277
        %2279 = vmatmul.f32.gmra.mxu0 %v1959
        %v2280 = vpop.f32.mrf.mxu0
        %v2281 = vadd.f32 %v2216, %v2280
        %2282 = vmatmul.f32.gmra.mxu0 %v1961
        %v2283 = vpop.f32.mrf.mxu0
        %v2284 = vadd.f32 %v2219, %v2283
        %2285 = vmatmul.f32.gmra.mxu0 %v1963
        %v2286 = vpop.f32.mrf.mxu0
        %v2287 = vadd.f32 %v2222, %v2286
        %2288 = vmatmul.f32.gmra.mxu0 %v1965
        %v2289 = vpop.f32.mrf.mxu0
        %v2290 = vadd.f32 %v2225, %v2289
        %2291 = vmatmul.f32.gmra.mxu0 %v1967
        %v2292 = vpop.f32.mrf.mxu0
        %v2293 = vadd.f32 %v2228, %v2292
        %2294 = vmatmul.f32.gmra.mxu0 %v1969
        %v2295 = vpop.f32.mrf.mxu0
        %v2296 = vadd.f32 %v2231, %v2295
        %2297 = vmatmul.f32.gmra.mxu0 %v1971
        %v2298 = vpop.f32.mrf.mxu0
        %v2299 = vadd.f32 %v2234, %v2298
        %2300 = vmatmul.f32.gmra.mxu0 %v1973
        %v2301 = vpop.f32.mrf.mxu0
        %v2302 = vadd.f32 %v2237, %v2301
        %2303 = vdwg.mxu0
        %v2304 = vmax.f32 %v2127, 0.0
        %v2305 = vmax.f32 %v2257, 0.0
        %v2306 = vmax.f32 %v2130, 0.0
        %v2307 = vmax.f32 %v2260, 0.0
        %v2308 = vmax.f32 %v2133, 0.0
        %v2309 = vmax.f32 %v2263, 0.0
        %v2310 = vmax.f32 %v2136, 0.0
        %v2311 = vmax.f32 %v2266, 0.0
        %v2312 = vmax.f32 %v2139, 0.0
        %v2313 = vmax.f32 %v2269, 0.0
        %v2314 = vmax.f32 %v2142, 0.0
        %v2315 = vmax.f32 %v2272, 0.0
        %v2316 = vmax.f32 %v2145, 0.0
        %v2317 = vmax.f32 %v2275, 0.0
        %v2318 = vmax.f32 %v2148, 0.0
        %v2319 = vmax.f32 %v2278, 0.0
        %v2320 = vmax.f32 %v2151, 0.0
        %v2321 = vmax.f32 %v2281, 0.0
        %v2322 = vmax.f32 %v2154, 0.0
        %v2323 = vmax.f32 %v2284, 0.0
        %v2324 = vmax.f32 %v2157, 0.0
        %v2325 = vmax.f32 %v2287, 0.0
        %v2326 = vmax.f32 %v2160, 0.0
        %v2327 = vmax.f32 %v2290, 0.0
        %v2328 = vmax.f32 %v2163, 0.0
        %v2329 = vmax.f32 %v2293, 0.0
        %v2330 = vmax.f32 %v2166, 0.0
        %v2331 = vmax.f32 %v2296, 0.0
        %v2332 = vmax.f32 %v2169, 0.0
        %v2333 = vmax.f32 %v2299, 0.0
        %v2334 = vmax.f32 %v2172, 0.0
        %v2335 = vmax.f32 %v2302, 0.0
        %v2336 = vld [vmem:[#allocation10] sm:$0xff]
        %v2337 = vld [vmem:[#allocation10 + $0x8] sm:$0xff]
        %v2338 = vld [vmem:[#allocation10 + $0x10] sm:$0xff]
        %v2339 = vld [vmem:[#allocation10 + $0x18] sm:$0xff]
        %v2340 = vld [vmem:[#allocation10 + $0x20] sm:$0xff]
        %v2341 = vld [vmem:[#allocation10 + $0x28] sm:$0xff]
        %v2342 = vld [vmem:[#allocation10 + $0x30] sm:$0xff]
        %v2343 = vld [vmem:[#allocation10 + $0x38] sm:$0xff]
        %v2344 = vld [vmem:[#allocation10 + $0x40] sm:$0xff]
        %v2345 = vld [vmem:[#allocation10 + $0x48] sm:$0xff]
        %v2346 = vld [vmem:[#allocation10 + $0x50] sm:$0xff]
        %v2347 = vld [vmem:[#allocation10 + $0x58] sm:$0xff]
        %v2348 = vld [vmem:[#allocation10 + $0x60] sm:$0xff]
        %v2349 = vld [vmem:[#allocation10 + $0x68] sm:$0xff]
        %v2350 = vld [vmem:[#allocation10 + $0x70] sm:$0xff]
        %v2351 = vld [vmem:[#allocation10 + $0x78] sm:$0xff]
        %v2352 = vld [vmem:[#allocation10 + $0x80] sm:$0xff]
        %v2353 = vld [vmem:[#allocation10 + $0x88] sm:$0xff]
        %v2354 = vld [vmem:[#allocation10 + $0x90] sm:$0xff]
        %v2355 = vld [vmem:[#allocation10 + $0x98] sm:$0xff]
        %v2356 = vld [vmem:[#allocation10 + $0xa0] sm:$0xff]
        %v2357 = vld [vmem:[#allocation10 + $0xa8] sm:$0xff]
        %v2358 = vld [vmem:[#allocation10 + $0xb0] sm:$0xff]
        %v2359 = vld [vmem:[#allocation10 + $0xb8] sm:$0xff]
        %v2360 = vld [vmem:[#allocation10 + $0xc0] sm:$0xff]
        %v2361 = vld [vmem:[#allocation10 + $0xc8] sm:$0xff]
        %v2362 = vld [vmem:[#allocation10 + $0xd0] sm:$0xff]
        %v2363 = vld [vmem:[#allocation10 + $0xd8] sm:$0xff]
        %v2364 = vld [vmem:[#allocation10 + $0xe0] sm:$0xff]
        %v2365 = vld [vmem:[#allocation10 + $0xe8] sm:$0xff]
        %v2366 = vld [vmem:[#allocation10 + $0xf0] sm:$0xff]
        %v2367 = vld [vmem:[#allocation10 + $0xf8] sm:$0xff]
        %v2368 = vld [vmem:[#allocation20 + $0x7] sm:$0x1]
        %v2370 = vperm.slane %v2368, 0
        %2372 = vmatpush.msra.mxu0 %v2351
        %2373 = vmatpush.msra.mxu0 %v2350
        %2374 = vmatpush.msra.mxu0 %v2349
        %2375 = vmatpush.msra.mxu0 %v2348
        %2376 = vmatpush.msra.mxu0 %v2347
        %2377 = vmatpush.msra.mxu0 %v2346
        %2378 = vmatpush.msra.mxu0 %v2345
        %2379 = vmatpush.msra.mxu0 %v2344
        %2380 = vmatpush.msra.mxu0 %v2343
        %2381 = vmatpush.msra.mxu0 %v2342
        %2382 = vmatpush.msra.mxu0 %v2341
        %2383 = vmatpush.msra.mxu0 %v2340
        %2384 = vmatpush.msra.mxu0 %v2339
        %2385 = vmatpush.msra.mxu0 %v2338
        %2386 = vmatpush.msra.mxu0 %v2337
        %2387 = vmatpush.msra.mxu0 %v2336
        %2388 = vmatmul.f32.gmra.mxu0 %v2304
        %v2389 = vpop.f32.mrf.mxu0
        %v2390 = vadd.f32 %v2370, %v2389
        %2391 = vmatmul.f32.gmra.mxu0 %v2306
        %v2392 = vpop.f32.mrf.mxu0
        %v2393 = vadd.f32 %v2370, %v2392
        %2394 = vmatmul.f32.gmra.mxu0 %v2308
        %v2395 = vpop.f32.mrf.mxu0
        %v2396 = vadd.f32 %v2370, %v2395
        %2397 = vmatmul.f32.gmra.mxu0 %v2310
        %v2398 = vpop.f32.mrf.mxu0
        %v2399 = vadd.f32 %v2370, %v2398
        %2400 = vmatmul.f32.gmra.mxu0 %v2312
        %v2401 = vpop.f32.mrf.mxu0
        %v2402 = vadd.f32 %v2370, %v2401
        %2403 = vmatmul.f32.gmra.mxu0 %v2314
        %v2404 = vpop.f32.mrf.mxu0
        %v2405 = vadd.f32 %v2370, %v2404
        %2406 = vmatmul.f32.gmra.mxu0 %v2316
        %v2407 = vpop.f32.mrf.mxu0
        %v2408 = vadd.f32 %v2370, %v2407
        %2409 = vmatmul.f32.gmra.mxu0 %v2318
        %v2410 = vpop.f32.mrf.mxu0
        %v2411 = vadd.f32 %v2370, %v2410
        %2412 = vmatmul.f32.gmra.mxu0 %v2320
        %v2413 = vpop.f32.mrf.mxu0
        %v2414 = vadd.f32 %v2370, %v2413
        %2415 = vmatmul.f32.gmra.mxu0 %v2322
        %v2416 = vpop.f32.mrf.mxu0
        %v2417 = vadd.f32 %v2370, %v2416
        %2418 = vmatmul.f32.gmra.mxu0 %v2324
        %v2419 = vpop.f32.mrf.mxu0
        %v2420 = vadd.f32 %v2370, %v2419
        %2421 = vmatmul.f32.gmra.mxu0 %v2326
        %v2422 = vpop.f32.mrf.mxu0
        %v2423 = vadd.f32 %v2370, %v2422
        %2424 = vmatmul.f32.gmra.mxu0 %v2328
        %v2425 = vpop.f32.mrf.mxu0
        %v2426 = vadd.f32 %v2370, %v2425
        %2427 = vmatmul.f32.gmra.mxu0 %v2330
        %v2428 = vpop.f32.mrf.mxu0
        %v2429 = vadd.f32 %v2370, %v2428
        %2430 = vmatmul.f32.gmra.mxu0 %v2332
        %v2431 = vpop.f32.mrf.mxu0
        %v2432 = vadd.f32 %v2370, %v2431
        %2433 = vmatmul.f32.gmra.mxu0 %v2334
        %v2434 = vpop.f32.mrf.mxu0
        %v2435 = vadd.f32 %v2370, %v2434
        %2436 = vdwg.mxu0
        %2437 = vmatpush.msra.mxu0 %v2367
        %2438 = vmatpush.msra.mxu0 %v2366
        %2439 = vmatpush.msra.mxu0 %v2365
        %2440 = vmatpush.msra.mxu0 %v2364
        %2441 = vmatpush.msra.mxu0 %v2363
        %2442 = vmatpush.msra.mxu0 %v2362
        %2443 = vmatpush.msra.mxu0 %v2361
        %2444 = vmatpush.msra.mxu0 %v2360
        %2445 = vmatpush.msra.mxu0 %v2359
        %2446 = vmatpush.msra.mxu0 %v2358
        %2447 = vmatpush.msra.mxu0 %v2357
        %2448 = vmatpush.msra.mxu0 %v2356
        %2449 = vmatpush.msra.mxu0 %v2355
        %2450 = vmatpush.msra.mxu0 %v2354
        %2451 = vmatpush.msra.mxu0 %v2353
        %2452 = vmatpush.msra.mxu0 %v2352
        %2453 = vmatmul.f32.gmra.mxu0 %v2305
        %v2454 = vpop.f32.mrf.mxu0
        %v2455 = vadd.f32 %v2390, %v2454
        %2456 = vmatmul.f32.gmra.mxu0 %v2307
        %v2457 = vpop.f32.mrf.mxu0
        %v2458 = vadd.f32 %v2393, %v2457
        %2459 = vmatmul.f32.gmra.mxu0 %v2309
        %v2460 = vpop.f32.mrf.mxu0
        %v2461 = vadd.f32 %v2396, %v2460
        %2462 = vmatmul.f32.gmra.mxu0 %v2311
        %v2463 = vpop.f32.mrf.mxu0
        %v2464 = vadd.f32 %v2399, %v2463
        %2465 = vmatmul.f32.gmra.mxu0 %v2313
        %v2466 = vpop.f32.mrf.mxu0
        %v2467 = vadd.f32 %v2402, %v2466
        %2468 = vmatmul.f32.gmra.mxu0 %v2315
        %v2469 = vpop.f32.mrf.mxu0
        %v2470 = vadd.f32 %v2405, %v2469
        %2471 = vmatmul.f32.gmra.mxu0 %v2317
        %v2472 = vpop.f32.mrf.mxu0
        %v2473 = vadd.f32 %v2408, %v2472
        %2474 = vmatmul.f32.gmra.mxu0 %v2319
        %v2475 = vpop.f32.mrf.mxu0
        %v2476 = vadd.f32 %v2411, %v2475
        %2477 = vmatmul.f32.gmra.mxu0 %v2321
        %v2478 = vpop.f32.mrf.mxu0
        %v2479 = vadd.f32 %v2414, %v2478
        %2480 = vmatmul.f32.gmra.mxu0 %v2323
        %v2481 = vpop.f32.mrf.mxu0
        %v2482 = vadd.f32 %v2417, %v2481
        %2483 = vmatmul.f32.gmra.mxu0 %v2325
        %v2484 = vpop.f32.mrf.mxu0
        %v2485 = vadd.f32 %v2420, %v2484
        %2486 = vmatmul.f32.gmra.mxu0 %v2327
        %v2487 = vpop.f32.mrf.mxu0
        %v2488 = vadd.f32 %v2423, %v2487
        %2489 = vmatmul.f32.gmra.mxu0 %v2329
        %v2490 = vpop.f32.mrf.mxu0
        %v2491 = vadd.f32 %v2426, %v2490
        %2492 = vmatmul.f32.gmra.mxu0 %v2331
        %v2493 = vpop.f32.mrf.mxu0
        %v2494 = vadd.f32 %v2429, %v2493
        %2495 = vmatmul.f32.gmra.mxu0 %v2333
        %v2496 = vpop.f32.mrf.mxu0
        %v2497 = vadd.f32 %v2432, %v2496
        %2498 = vmatmul.f32.gmra.mxu0 %v2335
        %v2499 = vpop.f32.mrf.mxu0
        %v2500 = vadd.f32 %v2435, %v2499
        %2501 = vdwg.mxu0
        %v2502 = vmax.f32 %v2455, 0.0
        %v2503 = vmax.f32 %v2458, 0.0
        %v2504 = vmax.f32 %v2461, 0.0
        %v2505 = vmax.f32 %v2464, 0.0
        %v2506 = vmax.f32 %v2467, 0.0
        %v2507 = vmax.f32 %v2470, 0.0
        %v2508 = vmax.f32 %v2473, 0.0
        %v2509 = vmax.f32 %v2476, 0.0
        %v2510 = vmax.f32 %v2479, 0.0
        %v2511 = vmax.f32 %v2482, 0.0
        %v2512 = vmax.f32 %v2485, 0.0
        %v2513 = vmax.f32 %v2488, 0.0
        %v2514 = vmax.f32 %v2491, 0.0
        %v2515 = vmax.f32 %v2494, 0.0
        %v2516 = vmax.f32 %v2497, 0.0
        %v2517 = vmax.f32 %v2500, 0.0
        %v2518 = vld [vmem:[#allocation11] sm:$0xff]
        %v2519 = vld [vmem:[#allocation11 + $0x8] sm:$0xff]
        %v2520 = vld [vmem:[#allocation11 + $0x10] sm:$0xff]
        %v2521 = vld [vmem:[#allocation11 + $0x18] sm:$0xff]
        %v2522 = vld [vmem:[#allocation11 + $0x20] sm:$0xff]
        %v2523 = vld [vmem:[#allocation11 + $0x28] sm:$0xff]
        %v2524 = vld [vmem:[#allocation11 + $0x30] sm:$0xff]
        %v2525 = vld [vmem:[#allocation11 + $0x38] sm:$0xff]
        %v2526 = vld [vmem:[#allocation11 + $0x40] sm:$0xff]
        %v2527 = vld [vmem:[#allocation11 + $0x48] sm:$0xff]
        %v2528 = vld [vmem:[#allocation11 + $0x50] sm:$0xff]
        %v2529 = vld [vmem:[#allocation11 + $0x58] sm:$0xff]
        %v2530 = vld [vmem:[#allocation11 + $0x60] sm:$0xff]
        %v2531 = vld [vmem:[#allocation11 + $0x68] sm:$0xff]
        %v2532 = vld [vmem:[#allocation11 + $0x70] sm:$0xff]
        %v2533 = vld [vmem:[#allocation11 + $0x78] sm:$0xff]
        %v2534 = vld [vmem:[#allocation20 + $0x8] sm:$0x1]
        %v2536 = vperm.slane %v2534, 0
        %2538 = vmatpush.msra.mxu0 %v2533
        %2539 = vmatpush.msra.mxu0 %v2532
        %2540 = vmatpush.msra.mxu0 %v2531
        %2541 = vmatpush.msra.mxu0 %v2530
        %2542 = vmatpush.msra.mxu0 %v2529
        %2543 = vmatpush.msra.mxu0 %v2528
        %2544 = vmatpush.msra.mxu0 %v2527
        %2545 = vmatpush.msra.mxu0 %v2526
        %2546 = vmatpush.msra.mxu0 %v2525
        %2547 = vmatpush.msra.mxu0 %v2524
        %2548 = vmatpush.msra.mxu0 %v2523
        %2549 = vmatpush.msra.mxu0 %v2522
        %2550 = vmatpush.msra.mxu0 %v2521
        %2551 = vmatpush.msra.mxu0 %v2520
        %2552 = vmatpush.msra.mxu0 %v2519
        %2553 = vmatpush.msra.mxu0 %v2518
        %2554 = vmatmul.f32.gmra.mxu0 %v2502
        %v2555 = vpop.f32.mrf.mxu0
        %v2556 = vadd.f32 %v2536, %v2555
        %2557 = vmatmul.f32.gmra.mxu0 %v2503
        %v2558 = vpop.f32.mrf.mxu0
        %v2559 = vadd.f32 %v2536, %v2558
        %2560 = vmatmul.f32.gmra.mxu0 %v2504
        %v2561 = vpop.f32.mrf.mxu0
        %v2562 = vadd.f32 %v2536, %v2561
        %2563 = vmatmul.f32.gmra.mxu0 %v2505
        %v2564 = vpop.f32.mrf.mxu0
        %v2565 = vadd.f32 %v2536, %v2564
        %2566 = vmatmul.f32.gmra.mxu0 %v2506
        %v2567 = vpop.f32.mrf.mxu0
        %v2568 = vadd.f32 %v2536, %v2567
        %2569 = vmatmul.f32.gmra.mxu0 %v2507
        %v2570 = vpop.f32.mrf.mxu0
        %v2571 = vadd.f32 %v2536, %v2570
        %2572 = vmatmul.f32.gmra.mxu0 %v2508
        %v2573 = vpop.f32.mrf.mxu0
        %v2574 = vadd.f32 %v2536, %v2573
        %2575 = vmatmul.f32.gmra.mxu0 %v2509
        %v2576 = vpop.f32.mrf.mxu0
        %v2577 = vadd.f32 %v2536, %v2576
        %2578 = vmatmul.f32.gmra.mxu0 %v2510
        %v2579 = vpop.f32.mrf.mxu0
        %v2580 = vadd.f32 %v2536, %v2579
        %2581 = vmatmul.f32.gmra.mxu0 %v2511
        %v2582 = vpop.f32.mrf.mxu0
        %v2583 = vadd.f32 %v2536, %v2582
        %2584 = vmatmul.f32.gmra.mxu0 %v2512
        %v2585 = vpop.f32.mrf.mxu0
        %v2586 = vadd.f32 %v2536, %v2585
        %2587 = vmatmul.f32.gmra.mxu0 %v2513
        %v2588 = vpop.f32.mrf.mxu0
        %v2589 = vadd.f32 %v2536, %v2588
        %2590 = vmatmul.f32.gmra.mxu0 %v2514
        %v2591 = vpop.f32.mrf.mxu0
        %v2592 = vadd.f32 %v2536, %v2591
        %2593 = vmatmul.f32.gmra.mxu0 %v2515
        %v2594 = vpop.f32.mrf.mxu0
        %v2595 = vadd.f32 %v2536, %v2594
        %2596 = vmatmul.f32.gmra.mxu0 %v2516
        %v2597 = vpop.f32.mrf.mxu0
        %v2598 = vadd.f32 %v2536, %v2597
        %2599 = vmatmul.f32.gmra.mxu0 %v2517
        %v2600 = vpop.f32.mrf.mxu0
        %v2601 = vadd.f32 %v2536, %v2600
        %2602 = vdwg.mxu0
        %v2603 = vld [vmem:[#allocation13] sm:$0xff]
        %v2604 = vld [vmem:[#allocation13 + $0x8] sm:$0xff]
        %v2605 = vld [vmem:[#allocation13 + $0x10] sm:$0xff]
        %v2606 = vld [vmem:[#allocation13 + $0x18] sm:$0xff]
        %v2607 = vld [vmem:[#allocation13 + $0x20] sm:$0xff]
        %v2608 = vld [vmem:[#allocation13 + $0x28] sm:$0xff]
        %v2609 = vld [vmem:[#allocation13 + $0x30] sm:$0xff]
        %v2610 = vld [vmem:[#allocation13 + $0x38] sm:$0xff]
        %v2611 = vld [vmem:[#allocation13 + $0x40] sm:$0xff]
        %v2612 = vld [vmem:[#allocation13 + $0x48] sm:$0xff]
        %v2613 = vld [vmem:[#allocation13 + $0x50] sm:$0xff]
        %v2614 = vld [vmem:[#allocation13 + $0x58] sm:$0xff]
        %v2615 = vld [vmem:[#allocation13 + $0x60] sm:$0xff]
        %v2616 = vld [vmem:[#allocation13 + $0x68] sm:$0xff]
        %v2617 = vld [vmem:[#allocation13 + $0x70] sm:$0xff]
        %v2618 = vld [vmem:[#allocation13 + $0x78] sm:$0xff]
        %v2619 = vld [vmem:[#allocation20 + $0x9] sm:$0x1]
        %v2621 = vperm.slane %v2619, 0
        %2623 = vmatpush.msra.mxu0 %v2618
        %2624 = vmatpush.msra.mxu0 %v2617
        %2625 = vmatpush.msra.mxu0 %v2616
        %2626 = vmatpush.msra.mxu0 %v2615
        %2627 = vmatpush.msra.mxu0 %v2614
        %2628 = vmatpush.msra.mxu0 %v2613
        %2629 = vmatpush.msra.mxu0 %v2612
        %2630 = vmatpush.msra.mxu0 %v2611
        %2631 = vmatpush.msra.mxu0 %v2610
        %2632 = vmatpush.msra.mxu0 %v2609
        %2633 = vmatpush.msra.mxu0 %v2608
        %2634 = vmatpush.msra.mxu0 %v2607
        %2635 = vmatpush.msra.mxu0 %v2606
        %2636 = vmatpush.msra.mxu0 %v2605
        %2637 = vmatpush.msra.mxu0 %v2604
        %2638 = vmatpush.msra.mxu0 %v2603
        %2639 = vmatmul.f32.gmra.mxu0 %v2556
        %v2640 = vpop.f32.mrf.mxu0
        %v2641 = vadd.f32 %v2621, %v2640
        %2642 = vmatmul.f32.gmra.mxu0 %v2559
        %v2643 = vpop.f32.mrf.mxu0
        %v2644 = vadd.f32 %v2621, %v2643
        %2645 = vmatmul.f32.gmra.mxu0 %v2562
        %v2646 = vpop.f32.mrf.mxu0
        %v2647 = vadd.f32 %v2621, %v2646
        %2648 = vmatmul.f32.gmra.mxu0 %v2565
        %v2649 = vpop.f32.mrf.mxu0
        %v2650 = vadd.f32 %v2621, %v2649
        %2651 = vmatmul.f32.gmra.mxu0 %v2568
        %v2652 = vpop.f32.mrf.mxu0
        %v2653 = vadd.f32 %v2621, %v2652
        %2654 = vmatmul.f32.gmra.mxu0 %v2571
        %v2655 = vpop.f32.mrf.mxu0
        %v2656 = vadd.f32 %v2621, %v2655
        %2657 = vmatmul.f32.gmra.mxu0 %v2574
        %v2658 = vpop.f32.mrf.mxu0
        %v2659 = vadd.f32 %v2621, %v2658
        %2660 = vmatmul.f32.gmra.mxu0 %v2577
        %v2661 = vpop.f32.mrf.mxu0
        %v2662 = vadd.f32 %v2621, %v2661
        %2663 = vmatmul.f32.gmra.mxu0 %v2580
        %v2664 = vpop.f32.mrf.mxu0
        %v2665 = vadd.f32 %v2621, %v2664
        %2666 = vmatmul.f32.gmra.mxu0 %v2583
        %v2667 = vpop.f32.mrf.mxu0
        %v2668 = vadd.f32 %v2621, %v2667
        %2669 = vmatmul.f32.gmra.mxu0 %v2586
        %v2670 = vpop.f32.mrf.mxu0
        %v2671 = vadd.f32 %v2621, %v2670
        %2672 = vmatmul.f32.gmra.mxu0 %v2589
        %v2673 = vpop.f32.mrf.mxu0
        %v2674 = vadd.f32 %v2621, %v2673
        %2675 = vmatmul.f32.gmra.mxu0 %v2592
        %v2676 = vpop.f32.mrf.mxu0
        %v2677 = vadd.f32 %v2621, %v2676
        %2678 = vmatmul.f32.gmra.mxu0 %v2595
        %v2679 = vpop.f32.mrf.mxu0
        %v2680 = vadd.f32 %v2621, %v2679
        %2681 = vmatmul.f32.gmra.mxu0 %v2598
        %v2682 = vpop.f32.mrf.mxu0
        %v2683 = vadd.f32 %v2621, %v2682
        %2684 = vmatmul.f32.gmra.mxu0 %v2601
        %v2685 = vpop.f32.mrf.mxu0
        %v2686 = vadd.f32 %v2621, %v2685
        %2687 = vdwg.mxu0
        %v2688 = vmax.f32 %v2641, 0.0
        %v2689 = vmax.f32 %v2644, 0.0
        %v2690 = vmax.f32 %v2647, 0.0
        %v2691 = vmax.f32 %v2650, 0.0
        %v2692 = vmax.f32 %v2653, 0.0
        %v2693 = vmax.f32 %v2656, 0.0
        %v2694 = vmax.f32 %v2659, 0.0
        %v2695 = vmax.f32 %v2662, 0.0
        %v2696 = vmax.f32 %v2665, 0.0
        %v2697 = vmax.f32 %v2668, 0.0
        %v2698 = vmax.f32 %v2671, 0.0
        %v2699 = vmax.f32 %v2674, 0.0
        %v2700 = vmax.f32 %v2677, 0.0
        %v2701 = vmax.f32 %v2680, 0.0
        %v2702 = vmax.f32 %v2683, 0.0
        %v2703 = vmax.f32 %v2686, 0.0
        %v2704 = vld [vmem:[#allocation14] sm:$0xff]
        %v2705 = vld [vmem:[#allocation14 + $0x8] sm:$0xff]
        %v2706 = vld [vmem:[#allocation14 + $0x10] sm:$0xff]
        %v2707 = vld [vmem:[#allocation14 + $0x18] sm:$0xff]
        %v2708 = vld [vmem:[#allocation14 + $0x20] sm:$0xff]
        %v2709 = vld [vmem:[#allocation14 + $0x28] sm:$0xff]
        %v2710 = vld [vmem:[#allocation14 + $0x30] sm:$0xff]
        %v2711 = vld [vmem:[#allocation14 + $0x38] sm:$0xff]
        %v2712 = vld [vmem:[#allocation14 + $0x40] sm:$0xff]
        %v2713 = vld [vmem:[#allocation14 + $0x48] sm:$0xff]
        %v2714 = vld [vmem:[#allocation14 + $0x50] sm:$0xff]
        %v2715 = vld [vmem:[#allocation14 + $0x58] sm:$0xff]
        %v2716 = vld [vmem:[#allocation14 + $0x60] sm:$0xff]
        %v2717 = vld [vmem:[#allocation14 + $0x68] sm:$0xff]
        %v2718 = vld [vmem:[#allocation14 + $0x70] sm:$0xff]
        %v2719 = vld [vmem:[#allocation14 + $0x78] sm:$0xff]
        %v2720 = vld [vmem:[#allocation14 + $0x80] sm:$0xff]
        %v2721 = vld [vmem:[#allocation14 + $0x88] sm:$0xff]
        %v2722 = vld [vmem:[#allocation14 + $0x90] sm:$0xff]
        %v2723 = vld [vmem:[#allocation14 + $0x98] sm:$0xff]
        %v2724 = vld [vmem:[#allocation14 + $0xa0] sm:$0xff]
        %v2725 = vld [vmem:[#allocation14 + $0xa8] sm:$0xff]
        %v2726 = vld [vmem:[#allocation14 + $0xb0] sm:$0xff]
        %v2727 = vld [vmem:[#allocation14 + $0xb8] sm:$0xff]
        %v2728 = vld [vmem:[#allocation14 + $0xc0] sm:$0xff]
        %v2729 = vld [vmem:[#allocation14 + $0xc8] sm:$0xff]
        %v2730 = vld [vmem:[#allocation14 + $0xd0] sm:$0xff]
        %v2731 = vld [vmem:[#allocation14 + $0xd8] sm:$0xff]
        %v2732 = vld [vmem:[#allocation14 + $0xe0] sm:$0xff]
        %v2733 = vld [vmem:[#allocation14 + $0xe8] sm:$0xff]
        %v2734 = vld [vmem:[#allocation14 + $0xf0] sm:$0xff]
        %v2735 = vld [vmem:[#allocation14 + $0xf8] sm:$0xff]
        %v2736 = vld [vmem:[#allocation20 + $0xa] sm:$0x3]
        %v2738 = vperm.slane %v2736, 0
        %v2739 = vperm.slane %v2736, 1
        %2742 = vmatpush.msra.mxu0 %v2734
        %2743 = vmatpush.msra.mxu0 %v2732
        %2744 = vmatpush.msra.mxu0 %v2730
        %2745 = vmatpush.msra.mxu0 %v2728
        %2746 = vmatpush.msra.mxu0 %v2726
        %2747 = vmatpush.msra.mxu0 %v2724
        %2748 = vmatpush.msra.mxu0 %v2722
        %2749 = vmatpush.msra.mxu0 %v2720
        %2750 = vmatpush.msra.mxu0 %v2718
        %2751 = vmatpush.msra.mxu0 %v2716
        %2752 = vmatpush.msra.mxu0 %v2714
        %2753 = vmatpush.msra.mxu0 %v2712
        %2754 = vmatpush.msra.mxu0 %v2710
        %2755 = vmatpush.msra.mxu0 %v2708
        %2756 = vmatpush.msra.mxu0 %v2706
        %2757 = vmatpush.msra.mxu0 %v2704
        %2758 = vmatmul.f32.gmra.mxu0 %v2688
        %v2759 = vpop.f32.mrf.mxu0
        %v2760 = vadd.f32 %v2738, %v2759
        %2761 = vmatmul.f32.gmra.mxu0 %v2689
        %v2762 = vpop.f32.mrf.mxu0
        %v2763 = vadd.f32 %v2738, %v2762
        %2764 = vmatmul.f32.gmra.mxu0 %v2690
        %v2765 = vpop.f32.mrf.mxu0
        %v2766 = vadd.f32 %v2738, %v2765
        %2767 = vmatmul.f32.gmra.mxu0 %v2691
        %v2768 = vpop.f32.mrf.mxu0
        %v2769 = vadd.f32 %v2738, %v2768
        %2770 = vmatmul.f32.gmra.mxu0 %v2692
        %v2771 = vpop.f32.mrf.mxu0
        %v2772 = vadd.f32 %v2738, %v2771
        %2773 = vmatmul.f32.gmra.mxu0 %v2693
        %v2774 = vpop.f32.mrf.mxu0
        %v2775 = vadd.f32 %v2738, %v2774
        %2776 = vmatmul.f32.gmra.mxu0 %v2694
        %v2777 = vpop.f32.mrf.mxu0
        %v2778 = vadd.f32 %v2738, %v2777
        %2779 = vmatmul.f32.gmra.mxu0 %v2695
        %v2780 = vpop.f32.mrf.mxu0
        %v2781 = vadd.f32 %v2738, %v2780
        %2782 = vmatmul.f32.gmra.mxu0 %v2696
        %v2783 = vpop.f32.mrf.mxu0
        %v2784 = vadd.f32 %v2738, %v2783
        %2785 = vmatmul.f32.gmra.mxu0 %v2697
        %v2786 = vpop.f32.mrf.mxu0
        %v2787 = vadd.f32 %v2738, %v2786
        %2788 = vmatmul.f32.gmra.mxu0 %v2698
        %v2789 = vpop.f32.mrf.mxu0
        %v2790 = vadd.f32 %v2738, %v2789
        %2791 = vmatmul.f32.gmra.mxu0 %v2699
        %v2792 = vpop.f32.mrf.mxu0
        %v2793 = vadd.f32 %v2738, %v2792
        %2794 = vmatmul.f32.gmra.mxu0 %v2700
        %v2795 = vpop.f32.mrf.mxu0
        %v2796 = vadd.f32 %v2738, %v2795
        %2797 = vmatmul.f32.gmra.mxu0 %v2701
        %v2798 = vpop.f32.mrf.mxu0
        %v2799 = vadd.f32 %v2738, %v2798
        %2800 = vmatmul.f32.gmra.mxu0 %v2702
        %v2801 = vpop.f32.mrf.mxu0
        %v2802 = vadd.f32 %v2738, %v2801
        %2803 = vmatmul.f32.gmra.mxu0 %v2703
        %v2804 = vpop.f32.mrf.mxu0
        %v2805 = vadd.f32 %v2738, %v2804
        %2806 = vdwg.mxu0
        %2807 = vmatpush.msra.mxu0 %v2735
        %2808 = vmatpush.msra.mxu0 %v2733
        %2809 = vmatpush.msra.mxu0 %v2731
        %2810 = vmatpush.msra.mxu0 %v2729
        %2811 = vmatpush.msra.mxu0 %v2727
        %2812 = vmatpush.msra.mxu0 %v2725
        %2813 = vmatpush.msra.mxu0 %v2723
        %2814 = vmatpush.msra.mxu0 %v2721
        %2815 = vmatpush.msra.mxu0 %v2719
        %2816 = vmatpush.msra.mxu0 %v2717
        %2817 = vmatpush.msra.mxu0 %v2715
        %2818 = vmatpush.msra.mxu0 %v2713
        %2819 = vmatpush.msra.mxu0 %v2711
        %2820 = vmatpush.msra.mxu0 %v2709
        %2821 = vmatpush.msra.mxu0 %v2707
        %2822 = vmatpush.msra.mxu0 %v2705
        %2823 = vmatmul.f32.gmra.mxu0 %v2688
        %v2824 = vpop.f32.mrf.mxu0
        %v2825 = vadd.f32 %v2739, %v2824
        %2826 = vmatmul.f32.gmra.mxu0 %v2689
        %v2827 = vpop.f32.mrf.mxu0
        %v2828 = vadd.f32 %v2739, %v2827
        %2829 = vmatmul.f32.gmra.mxu0 %v2690
        %v2830 = vpop.f32.mrf.mxu0
        %v2831 = vadd.f32 %v2739, %v2830
        %2832 = vmatmul.f32.gmra.mxu0 %v2691
        %v2833 = vpop.f32.mrf.mxu0
        %v2834 = vadd.f32 %v2739, %v2833
        %2835 = vmatmul.f32.gmra.mxu0 %v2692
        %v2836 = vpop.f32.mrf.mxu0
        %v2837 = vadd.f32 %v2739, %v2836
        %2838 = vmatmul.f32.gmra.mxu0 %v2693
        %v2839 = vpop.f32.mrf.mxu0
        %v2840 = vadd.f32 %v2739, %v2839
        %2841 = vmatmul.f32.gmra.mxu0 %v2694
        %v2842 = vpop.f32.mrf.mxu0
        %v2843 = vadd.f32 %v2739, %v2842
        %2844 = vmatmul.f32.gmra.mxu0 %v2695
        %v2845 = vpop.f32.mrf.mxu0
        %v2846 = vadd.f32 %v2739, %v2845
        %2847 = vmatmul.f32.gmra.mxu0 %v2696
        %v2848 = vpop.f32.mrf.mxu0
        %v2849 = vadd.f32 %v2739, %v2848
        %2850 = vmatmul.f32.gmra.mxu0 %v2697
        %v2851 = vpop.f32.mrf.mxu0
        %v2852 = vadd.f32 %v2739, %v2851
        %2853 = vmatmul.f32.gmra.mxu0 %v2698
        %v2854 = vpop.f32.mrf.mxu0
        %v2855 = vadd.f32 %v2739, %v2854
        %2856 = vmatmul.f32.gmra.mxu0 %v2699
        %v2857 = vpop.f32.mrf.mxu0
        %v2858 = vadd.f32 %v2739, %v2857
        %2859 = vmatmul.f32.gmra.mxu0 %v2700
        %v2860 = vpop.f32.mrf.mxu0
        %v2861 = vadd.f32 %v2739, %v2860
        %2862 = vmatmul.f32.gmra.mxu0 %v2701
        %v2863 = vpop.f32.mrf.mxu0
        %v2864 = vadd.f32 %v2739, %v2863
        %2865 = vmatmul.f32.gmra.mxu0 %v2702
        %v2866 = vpop.f32.mrf.mxu0
        %v2867 = vadd.f32 %v2739, %v2866
        %2868 = vmatmul.f32.gmra.mxu0 %v2703
        %v2869 = vpop.f32.mrf.mxu0
        %v2870 = vadd.f32 %v2739, %v2869
        %2871 = vdwg.mxu0
        %v2872 = vmax.f32 %v2760, 0.0
        %v2873 = vmax.f32 %v2825, 0.0
        %v2874 = vmax.f32 %v2763, 0.0
        %v2875 = vmax.f32 %v2828, 0.0
        %v2876 = vmax.f32 %v2766, 0.0
        %v2877 = vmax.f32 %v2831, 0.0
        %v2878 = vmax.f32 %v2769, 0.0
        %v2879 = vmax.f32 %v2834, 0.0
        %v2880 = vmax.f32 %v2772, 0.0
        %v2881 = vmax.f32 %v2837, 0.0
        %v2882 = vmax.f32 %v2775, 0.0
        %v2883 = vmax.f32 %v2840, 0.0
        %v2884 = vmax.f32 %v2778, 0.0
        %v2885 = vmax.f32 %v2843, 0.0
        %v2886 = vmax.f32 %v2781, 0.0
        %v2887 = vmax.f32 %v2846, 0.0
        %v2888 = vmax.f32 %v2784, 0.0
        %v2889 = vmax.f32 %v2849, 0.0
        %v2890 = vmax.f32 %v2787, 0.0
        %v2891 = vmax.f32 %v2852, 0.0
        %v2892 = vmax.f32 %v2790, 0.0
        %v2893 = vmax.f32 %v2855, 0.0
        %v2894 = vmax.f32 %v2793, 0.0
        %v2895 = vmax.f32 %v2858, 0.0
        %v2896 = vmax.f32 %v2796, 0.0
        %v2897 = vmax.f32 %v2861, 0.0
        %v2898 = vmax.f32 %v2799, 0.0
        %v2899 = vmax.f32 %v2864, 0.0
        %v2900 = vmax.f32 %v2802, 0.0
        %v2901 = vmax.f32 %v2867, 0.0
        %v2902 = vmax.f32 %v2805, 0.0
        %v2903 = vmax.f32 %v2870, 0.0
        %v2904 = vld [vmem:[#allocation16] sm:$0xff]
        %v2905 = vld [vmem:[#allocation16 + $0x8] sm:$0xff]
        %v2906 = vld [vmem:[#allocation16 + $0x10] sm:$0xff]
        %v2907 = vld [vmem:[#allocation16 + $0x18] sm:$0xff]
        %v2908 = vld [vmem:[#allocation16 + $0x20] sm:$0xff]
        %v2909 = vld [vmem:[#allocation16 + $0x28] sm:$0xff]
        %v2910 = vld [vmem:[#allocation16 + $0x30] sm:$0xff]
        %v2911 = vld [vmem:[#allocation16 + $0x38] sm:$0xff]
        %v2912 = vld [vmem:[#allocation16 + $0x40] sm:$0xff]
        %v2913 = vld [vmem:[#allocation16 + $0x48] sm:$0xff]
        %v2914 = vld [vmem:[#allocation16 + $0x50] sm:$0xff]
        %v2915 = vld [vmem:[#allocation16 + $0x58] sm:$0xff]
        %v2916 = vld [vmem:[#allocation16 + $0x60] sm:$0xff]
        %v2917 = vld [vmem:[#allocation16 + $0x68] sm:$0xff]
        %v2918 = vld [vmem:[#allocation16 + $0x70] sm:$0xff]
        %v2919 = vld [vmem:[#allocation16 + $0x78] sm:$0xff]
        %v2920 = vld [vmem:[#allocation16 + $0x80] sm:$0xff]
        %v2921 = vld [vmem:[#allocation16 + $0x88] sm:$0xff]
        %v2922 = vld [vmem:[#allocation16 + $0x90] sm:$0xff]
        %v2923 = vld [vmem:[#allocation16 + $0x98] sm:$0xff]
        %v2924 = vld [vmem:[#allocation16 + $0xa0] sm:$0xff]
        %v2925 = vld [vmem:[#allocation16 + $0xa8] sm:$0xff]
        %v2926 = vld [vmem:[#allocation16 + $0xb0] sm:$0xff]
        %v2927 = vld [vmem:[#allocation16 + $0xb8] sm:$0xff]
        %v2928 = vld [vmem:[#allocation16 + $0xc0] sm:$0xff]
        %v2929 = vld [vmem:[#allocation16 + $0xc8] sm:$0xff]
        %v2930 = vld [vmem:[#allocation16 + $0xd0] sm:$0xff]
        %v2931 = vld [vmem:[#allocation16 + $0xd8] sm:$0xff]
        %v2932 = vld [vmem:[#allocation16 + $0xe0] sm:$0xff]
        %v2933 = vld [vmem:[#allocation16 + $0xe8] sm:$0xff]
        %v2934 = vld [vmem:[#allocation16 + $0xf0] sm:$0xff]
        %v2935 = vld [vmem:[#allocation16 + $0xf8] sm:$0xff]
        %v2936 = vld [vmem:[#allocation16 + $0x100] sm:$0xff]
        %v2937 = vld [vmem:[#allocation16 + $0x108] sm:$0xff]
        %v2938 = vld [vmem:[#allocation16 + $0x110] sm:$0xff]
        %v2939 = vld [vmem:[#allocation16 + $0x118] sm:$0xff]
        %v2940 = vld [vmem:[#allocation16 + $0x120] sm:$0xff]
        %v2941 = vld [vmem:[#allocation16 + $0x128] sm:$0xff]
        %v2942 = vld [vmem:[#allocation16 + $0x130] sm:$0xff]
        %v2943 = vld [vmem:[#allocation16 + $0x138] sm:$0xff]
        %v2944 = vld [vmem:[#allocation16 + $0x140] sm:$0xff]
        %v2945 = vld [vmem:[#allocation16 + $0x148] sm:$0xff]
        %v2946 = vld [vmem:[#allocation16 + $0x150] sm:$0xff]
        %v2947 = vld [vmem:[#allocation16 + $0x158] sm:$0xff]
        %v2948 = vld [vmem:[#allocation16 + $0x160] sm:$0xff]
        %v2949 = vld [vmem:[#allocation16 + $0x168] sm:$0xff]
        %v2950 = vld [vmem:[#allocation16 + $0x170] sm:$0xff]
        %v2951 = vld [vmem:[#allocation16 + $0x178] sm:$0xff]
        %v2952 = vld [vmem:[#allocation16 + $0x180] sm:$0xff]
        %v2953 = vld [vmem:[#allocation16 + $0x188] sm:$0xff]
        %v2954 = vld [vmem:[#allocation16 + $0x190] sm:$0xff]
        %v2955 = vld [vmem:[#allocation16 + $0x198] sm:$0xff]
        %v2956 = vld [vmem:[#allocation16 + $0x1a0] sm:$0xff]
        %v2957 = vld [vmem:[#allocation16 + $0x1a8] sm:$0xff]
        %v2958 = vld [vmem:[#allocation16 + $0x1b0] sm:$0xff]
        %v2959 = vld [vmem:[#allocation16 + $0x1b8] sm:$0xff]
        %v2960 = vld [vmem:[#allocation16 + $0x1c0] sm:$0xff]
        %v2961 = vld [vmem:[#allocation16 + $0x1c8] sm:$0xff]
        %v2962 = vld [vmem:[#allocation16 + $0x1d0] sm:$0xff]
        %v2963 = vld [vmem:[#allocation16 + $0x1d8] sm:$0xff]
        %v2964 = vld [vmem:[#allocation16 + $0x1e0] sm:$0xff]
        %v2965 = vld [vmem:[#allocation16 + $0x1e8] sm:$0xff]
        %v2966 = vld [vmem:[#allocation16 + $0x1f0] sm:$0xff]
        %v2967 = vld [vmem:[#allocation16 + $0x1f8] sm:$0xff]
        %v2968 = vld [vmem:[#allocation20 + $0xc] sm:$0x3]
        %v2970 = vperm.slane %v2968, 0
        %v2971 = vperm.slane %v2968, 1
        %2974 = vmatpush.msra.mxu0 %v2934
        %2975 = vmatpush.msra.mxu0 %v2932
        %2976 = vmatpush.msra.mxu0 %v2930
        %2977 = vmatpush.msra.mxu0 %v2928
        %2978 = vmatpush.msra.mxu0 %v2926
        %2979 = vmatpush.msra.mxu0 %v2924
        %2980 = vmatpush.msra.mxu0 %v2922
        %2981 = vmatpush.msra.mxu0 %v2920
        %2982 = vmatpush.msra.mxu0 %v2918
        %2983 = vmatpush.msra.mxu0 %v2916
        %2984 = vmatpush.msra.mxu0 %v2914
        %2985 = vmatpush.msra.mxu0 %v2912
        %2986 = vmatpush.msra.mxu0 %v2910
        %2987 = vmatpush.msra.mxu0 %v2908
        %2988 = vmatpush.msra.mxu0 %v2906
        %2989 = vmatpush.msra.mxu0 %v2904
        %2990 = vmatmul.f32.gmra.mxu0 %v2872
        %v2991 = vpop.f32.mrf.mxu0
        %v2992 = vadd.f32 %v2970, %v2991
        %2993 = vmatmul.f32.gmra.mxu0 %v2874
        %v2994 = vpop.f32.mrf.mxu0
        %v2995 = vadd.f32 %v2970, %v2994
        %2996 = vmatmul.f32.gmra.mxu0 %v2876
        %v2997 = vpop.f32.mrf.mxu0
        %v2998 = vadd.f32 %v2970, %v2997
        %2999 = vmatmul.f32.gmra.mxu0 %v2878
        %v3000 = vpop.f32.mrf.mxu0
        %v3001 = vadd.f32 %v2970, %v3000
        %3002 = vmatmul.f32.gmra.mxu0 %v2880
        %v3003 = vpop.f32.mrf.mxu0
        %v3004 = vadd.f32 %v2970, %v3003
        %3005 = vmatmul.f32.gmra.mxu0 %v2882
        %v3006 = vpop.f32.mrf.mxu0
        %v3007 = vadd.f32 %v2970, %v3006
        %3008 = vmatmul.f32.gmra.mxu0 %v2884
        %v3009 = vpop.f32.mrf.mxu0
        %v3010 = vadd.f32 %v2970, %v3009
        %3011 = vmatmul.f32.gmra.mxu0 %v2886
        %v3012 = vpop.f32.mrf.mxu0
        %v3013 = vadd.f32 %v2970, %v3012
        %3014 = vmatmul.f32.gmra.mxu0 %v2888
        %v3015 = vpop.f32.mrf.mxu0
        %v3016 = vadd.f32 %v2970, %v3015
        %3017 = vmatmul.f32.gmra.mxu0 %v2890
        %v3018 = vpop.f32.mrf.mxu0
        %v3019 = vadd.f32 %v2970, %v3018
        %3020 = vmatmul.f32.gmra.mxu0 %v2892
        %v3021 = vpop.f32.mrf.mxu0
        %v3022 = vadd.f32 %v2970, %v3021
        %3023 = vmatmul.f32.gmra.mxu0 %v2894
        %v3024 = vpop.f32.mrf.mxu0
        %v3025 = vadd.f32 %v2970, %v3024
        %3026 = vmatmul.f32.gmra.mxu0 %v2896
        %v3027 = vpop.f32.mrf.mxu0
        %v3028 = vadd.f32 %v2970, %v3027
        %3029 = vmatmul.f32.gmra.mxu0 %v2898
        %v3030 = vpop.f32.mrf.mxu0
        %v3031 = vadd.f32 %v2970, %v3030
        %3032 = vmatmul.f32.gmra.mxu0 %v2900
        %v3033 = vpop.f32.mrf.mxu0
        %v3034 = vadd.f32 %v2970, %v3033
        %3035 = vmatmul.f32.gmra.mxu0 %v2902
        %v3036 = vpop.f32.mrf.mxu0
        %v3037 = vadd.f32 %v2970, %v3036
        %3038 = vdwg.mxu0
        %3039 = vmatpush.msra.mxu0 %v2966
        %3040 = vmatpush.msra.mxu0 %v2964
        %3041 = vmatpush.msra.mxu0 %v2962
        %3042 = vmatpush.msra.mxu0 %v2960
        %3043 = vmatpush.msra.mxu0 %v2958
        %3044 = vmatpush.msra.mxu0 %v2956
        %3045 = vmatpush.msra.mxu0 %v2954
        %3046 = vmatpush.msra.mxu0 %v2952
        %3047 = vmatpush.msra.mxu0 %v2950
        %3048 = vmatpush.msra.mxu0 %v2948
        %3049 = vmatpush.msra.mxu0 %v2946
        %3050 = vmatpush.msra.mxu0 %v2944
        %3051 = vmatpush.msra.mxu0 %v2942
        %3052 = vmatpush.msra.mxu0 %v2940
        %3053 = vmatpush.msra.mxu0 %v2938
        %3054 = vmatpush.msra.mxu0 %v2936
        %3055 = vmatmul.f32.gmra.mxu0 %v2873
        %v3056 = vpop.f32.mrf.mxu0
        %v3057 = vadd.f32 %v2992, %v3056
        %3058 = vmatmul.f32.gmra.mxu0 %v2875
        %v3059 = vpop.f32.mrf.mxu0
        %v3060 = vadd.f32 %v2995, %v3059
        %3061 = vmatmul.f32.gmra.mxu0 %v2877
        %v3062 = vpop.f32.mrf.mxu0
        %v3063 = vadd.f32 %v2998, %v3062
        %3064 = vmatmul.f32.gmra.mxu0 %v2879
        %v3065 = vpop.f32.mrf.mxu0
        %v3066 = vadd.f32 %v3001, %v3065
        %3067 = vmatmul.f32.gmra.mxu0 %v2881
        %v3068 = vpop.f32.mrf.mxu0
        %v3069 = vadd.f32 %v3004, %v3068
        %3070 = vmatmul.f32.gmra.mxu0 %v2883
        %v3071 = vpop.f32.mrf.mxu0
        %v3072 = vadd.f32 %v3007, %v3071
        %3073 = vmatmul.f32.gmra.mxu0 %v2885
        %v3074 = vpop.f32.mrf.mxu0
        %v3075 = vadd.f32 %v3010, %v3074
        %3076 = vmatmul.f32.gmra.mxu0 %v2887
        %v3077 = vpop.f32.mrf.mxu0
        %v3078 = vadd.f32 %v3013, %v3077
        %3079 = vmatmul.f32.gmra.mxu0 %v2889
        %v3080 = vpop.f32.mrf.mxu0
        %v3081 = vadd.f32 %v3016, %v3080
        %3082 = vmatmul.f32.gmra.mxu0 %v2891
        %v3083 = vpop.f32.mrf.mxu0
        %v3084 = vadd.f32 %v3019, %v3083
        %3085 = vmatmul.f32.gmra.mxu0 %v2893
        %v3086 = vpop.f32.mrf.mxu0
        %v3087 = vadd.f32 %v3022, %v3086
        %3088 = vmatmul.f32.gmra.mxu0 %v2895
        %v3089 = vpop.f32.mrf.mxu0
        %v3090 = vadd.f32 %v3025, %v3089
        %3091 = vmatmul.f32.gmra.mxu0 %v2897
        %v3092 = vpop.f32.mrf.mxu0
        %v3093 = vadd.f32 %v3028, %v3092
        %3094 = vmatmul.f32.gmra.mxu0 %v2899
        %v3095 = vpop.f32.mrf.mxu0
        %v3096 = vadd.f32 %v3031, %v3095
        %3097 = vmatmul.f32.gmra.mxu0 %v2901
        %v3098 = vpop.f32.mrf.mxu0
        %v3099 = vadd.f32 %v3034, %v3098
        %3100 = vmatmul.f32.gmra.mxu0 %v2903
        %v3101 = vpop.f32.mrf.mxu0
        %v3102 = vadd.f32 %v3037, %v3101
        %3103 = vdwg.mxu0
        %3104 = vmatpush.msra.mxu0 %v2935
        %3105 = vmatpush.msra.mxu0 %v2933
        %3106 = vmatpush.msra.mxu0 %v2931
        %3107 = vmatpush.msra.mxu0 %v2929
        %3108 = vmatpush.msra.mxu0 %v2927
        %3109 = vmatpush.msra.mxu0 %v2925
        %3110 = vmatpush.msra.mxu0 %v2923
        %3111 = vmatpush.msra.mxu0 %v2921
        %3112 = vmatpush.msra.mxu0 %v2919
        %3113 = vmatpush.msra.mxu0 %v2917
        %3114 = vmatpush.msra.mxu0 %v2915
        %3115 = vmatpush.msra.mxu0 %v2913
        %3116 = vmatpush.msra.mxu0 %v2911
        %3117 = vmatpush.msra.mxu0 %v2909
        %3118 = vmatpush.msra.mxu0 %v2907
        %3119 = vmatpush.msra.mxu0 %v2905
        %3120 = vmatmul.f32.gmra.mxu0 %v2872
        %v3121 = vpop.f32.mrf.mxu0
        %v3122 = vadd.f32 %v2971, %v3121
        %3123 = vmatmul.f32.gmra.mxu0 %v2874
        %v3124 = vpop.f32.mrf.mxu0
        %v3125 = vadd.f32 %v2971, %v3124
        %3126 = vmatmul.f32.gmra.mxu0 %v2876
        %v3127 = vpop.f32.mrf.mxu0
        %v3128 = vadd.f32 %v2971, %v3127
        %3129 = vmatmul.f32.gmra.mxu0 %v2878
        %v3130 = vpop.f32.mrf.mxu0
        %v3131 = vadd.f32 %v2971, %v3130
        %3132 = vmatmul.f32.gmra.mxu0 %v2880
        %v3133 = vpop.f32.mrf.mxu0
        %v3134 = vadd.f32 %v2971, %v3133
        %3135 = vmatmul.f32.gmra.mxu0 %v2882
        %v3136 = vpop.f32.mrf.mxu0
        %v3137 = vadd.f32 %v2971, %v3136
        %3138 = vmatmul.f32.gmra.mxu0 %v2884
        %v3139 = vpop.f32.mrf.mxu0
        %v3140 = vadd.f32 %v2971, %v3139
        %3141 = vmatmul.f32.gmra.mxu0 %v2886
        %v3142 = vpop.f32.mrf.mxu0
        %v3143 = vadd.f32 %v2971, %v3142
        %3144 = vmatmul.f32.gmra.mxu0 %v2888
        %v3145 = vpop.f32.mrf.mxu0
        %v3146 = vadd.f32 %v2971, %v3145
        %3147 = vmatmul.f32.gmra.mxu0 %v2890
        %v3148 = vpop.f32.mrf.mxu0
        %v3149 = vadd.f32 %v2971, %v3148
        %3150 = vmatmul.f32.gmra.mxu0 %v2892
        %v3151 = vpop.f32.mrf.mxu0
        %v3152 = vadd.f32 %v2971, %v3151
        %3153 = vmatmul.f32.gmra.mxu0 %v2894
        %v3154 = vpop.f32.mrf.mxu0
        %v3155 = vadd.f32 %v2971, %v3154
        %3156 = vmatmul.f32.gmra.mxu0 %v2896
        %v3157 = vpop.f32.mrf.mxu0
        %v3158 = vadd.f32 %v2971, %v3157
        %3159 = vmatmul.f32.gmra.mxu0 %v2898
        %v3160 = vpop.f32.mrf.mxu0
        %v3161 = vadd.f32 %v2971, %v3160
        %3162 = vmatmul.f32.gmra.mxu0 %v2900
        %v3163 = vpop.f32.mrf.mxu0
        %v3164 = vadd.f32 %v2971, %v3163
        %3165 = vmatmul.f32.gmra.mxu0 %v2902
        %v3166 = vpop.f32.mrf.mxu0
        %v3167 = vadd.f32 %v2971, %v3166
        %3168 = vdwg.mxu0
        %3169 = vmatpush.msra.mxu0 %v2967
        %3170 = vmatpush.msra.mxu0 %v2965
        %3171 = vmatpush.msra.mxu0 %v2963
        %3172 = vmatpush.msra.mxu0 %v2961
        %3173 = vmatpush.msra.mxu0 %v2959
        %3174 = vmatpush.msra.mxu0 %v2957
        %3175 = vmatpush.msra.mxu0 %v2955
        %3176 = vmatpush.msra.mxu0 %v2953
        %3177 = vmatpush.msra.mxu0 %v2951
        %3178 = vmatpush.msra.mxu0 %v2949
        %3179 = vmatpush.msra.mxu0 %v2947
        %3180 = vmatpush.msra.mxu0 %v2945
        %3181 = vmatpush.msra.mxu0 %v2943
        %3182 = vmatpush.msra.mxu0 %v2941
        %3183 = vmatpush.msra.mxu0 %v2939
        %3184 = vmatpush.msra.mxu0 %v2937
        %3185 = vmatmul.f32.gmra.mxu0 %v2873
        %v3186 = vpop.f32.mrf.mxu0
        %v3187 = vadd.f32 %v3122, %v3186
        %3188 = vmatmul.f32.gmra.mxu0 %v2875
        %v3189 = vpop.f32.mrf.mxu0
        %v3190 = vadd.f32 %v3125, %v3189
        %3191 = vmatmul.f32.gmra.mxu0 %v2877
        %v3192 = vpop.f32.mrf.mxu0
        %v3193 = vadd.f32 %v3128, %v3192
        %3194 = vmatmul.f32.gmra.mxu0 %v2879
        %v3195 = vpop.f32.mrf.mxu0
        %v3196 = vadd.f32 %v3131, %v3195
        %3197 = vmatmul.f32.gmra.mxu0 %v2881
        %v3198 = vpop.f32.mrf.mxu0
        %v3199 = vadd.f32 %v3134, %v3198
        %3200 = vmatmul.f32.gmra.mxu0 %v2883
        %v3201 = vpop.f32.mrf.mxu0
        %v3202 = vadd.f32 %v3137, %v3201
        %3203 = vmatmul.f32.gmra.mxu0 %v2885
        %v3204 = vpop.f32.mrf.mxu0
        %v3205 = vadd.f32 %v3140, %v3204
        %3206 = vmatmul.f32.gmra.mxu0 %v2887
        %v3207 = vpop.f32.mrf.mxu0
        %v3208 = vadd.f32 %v3143, %v3207
        %3209 = vmatmul.f32.gmra.mxu0 %v2889
        %v3210 = vpop.f32.mrf.mxu0
        %v3211 = vadd.f32 %v3146, %v3210
        %3212 = vmatmul.f32.gmra.mxu0 %v2891
        %v3213 = vpop.f32.mrf.mxu0
        %v3214 = vadd.f32 %v3149, %v3213
        %3215 = vmatmul.f32.gmra.mxu0 %v2893
        %v3216 = vpop.f32.mrf.mxu0
        %v3217 = vadd.f32 %v3152, %v3216
        %3218 = vmatmul.f32.gmra.mxu0 %v2895
        %v3219 = vpop.f32.mrf.mxu0
        %v3220 = vadd.f32 %v3155, %v3219
        %3221 = vmatmul.f32.gmra.mxu0 %v2897
        %v3222 = vpop.f32.mrf.mxu0
        %v3223 = vadd.f32 %v3158, %v3222
        %3224 = vmatmul.f32.gmra.mxu0 %v2899
        %v3225 = vpop.f32.mrf.mxu0
        %v3226 = vadd.f32 %v3161, %v3225
        %3227 = vmatmul.f32.gmra.mxu0 %v2901
        %v3228 = vpop.f32.mrf.mxu0
        %v3229 = vadd.f32 %v3164, %v3228
        %3230 = vmatmul.f32.gmra.mxu0 %v2903
        %v3231 = vpop.f32.mrf.mxu0
        %v3232 = vadd.f32 %v3167, %v3231
        %3233 = vdwg.mxu0
        %v3234 = vmax.f32 %v3057, 0.0
        %v3235 = vmax.f32 %v3187, 0.0
        %v3236 = vmax.f32 %v3060, 0.0
        %v3237 = vmax.f32 %v3190, 0.0
        %v3238 = vmax.f32 %v3063, 0.0
        %v3239 = vmax.f32 %v3193, 0.0
        %v3240 = vmax.f32 %v3066, 0.0
        %v3241 = vmax.f32 %v3196, 0.0
        %v3242 = vmax.f32 %v3069, 0.0
        %v3243 = vmax.f32 %v3199, 0.0
        %v3244 = vmax.f32 %v3072, 0.0
        %v3245 = vmax.f32 %v3202, 0.0
        %v3246 = vmax.f32 %v3075, 0.0
        %v3247 = vmax.f32 %v3205, 0.0
        %v3248 = vmax.f32 %v3078, 0.0
        %v3249 = vmax.f32 %v3208, 0.0
        %v3250 = vmax.f32 %v3081, 0.0
        %v3251 = vmax.f32 %v3211, 0.0
        %v3252 = vmax.f32 %v3084, 0.0
        %v3253 = vmax.f32 %v3214, 0.0
        %v3254 = vmax.f32 %v3087, 0.0
        %v3255 = vmax.f32 %v3217, 0.0
        %v3256 = vmax.f32 %v3090, 0.0
        %v3257 = vmax.f32 %v3220, 0.0
        %v3258 = vmax.f32 %v3093, 0.0
        %v3259 = vmax.f32 %v3223, 0.0
        %v3260 = vmax.f32 %v3096, 0.0
        %v3261 = vmax.f32 %v3226, 0.0
        %v3262 = vmax.f32 %v3099, 0.0
        %v3263 = vmax.f32 %v3229, 0.0
        %v3264 = vmax.f32 %v3102, 0.0
        %v3265 = vmax.f32 %v3232, 0.0
        %v3266 = vld [vmem:[#allocation17] sm:$0xff]
        %v3267 = vld [vmem:[#allocation17 + $0x8] sm:$0xff]
        %v3268 = vld [vmem:[#allocation17 + $0x10] sm:$0xff]
        %v3269 = vld [vmem:[#allocation17 + $0x18] sm:$0xff]
        %v3270 = vld [vmem:[#allocation17 + $0x20] sm:$0xff]
        %v3271 = vld [vmem:[#allocation17 + $0x28] sm:$0xff]
        %v3272 = vld [vmem:[#allocation17 + $0x30] sm:$0xff]
        %v3273 = vld [vmem:[#allocation17 + $0x38] sm:$0xff]
        %v3274 = vld [vmem:[#allocation17 + $0x40] sm:$0xff]
        %v3275 = vld [vmem:[#allocation17 + $0x48] sm:$0xff]
        %v3276 = vld [vmem:[#allocation17 + $0x50] sm:$0xff]
        %v3277 = vld [vmem:[#allocation17 + $0x58] sm:$0xff]
        %v3278 = vld [vmem:[#allocation17 + $0x60] sm:$0xff]
        %v3279 = vld [vmem:[#allocation17 + $0x68] sm:$0xff]
        %v3280 = vld [vmem:[#allocation17 + $0x70] sm:$0xff]
        %v3281 = vld [vmem:[#allocation17 + $0x78] sm:$0xff]
        %v3282 = vld [vmem:[#allocation17 + $0x80] sm:$0xff]
        %v3283 = vld [vmem:[#allocation17 + $0x88] sm:$0xff]
        %v3284 = vld [vmem:[#allocation17 + $0x90] sm:$0xff]
        %v3285 = vld [vmem:[#allocation17 + $0x98] sm:$0xff]
        %v3286 = vld [vmem:[#allocation17 + $0xa0] sm:$0xff]
        %v3287 = vld [vmem:[#allocation17 + $0xa8] sm:$0xff]
        %v3288 = vld [vmem:[#allocation17 + $0xb0] sm:$0xff]
        %v3289 = vld [vmem:[#allocation17 + $0xb8] sm:$0xff]
        %v3290 = vld [vmem:[#allocation17 + $0xc0] sm:$0xff]
        %v3291 = vld [vmem:[#allocation17 + $0xc8] sm:$0xff]
        %v3292 = vld [vmem:[#allocation17 + $0xd0] sm:$0xff]
        %v3293 = vld [vmem:[#allocation17 + $0xd8] sm:$0xff]
        %v3294 = vld [vmem:[#allocation17 + $0xe0] sm:$0xff]
        %v3295 = vld [vmem:[#allocation17 + $0xe8] sm:$0xff]
        %v3296 = vld [vmem:[#allocation17 + $0xf0] sm:$0xff]
        %v3297 = vld [vmem:[#allocation17 + $0xf8] sm:$0xff]
        %v3298 = vld [vmem:[#allocation17 + $0x100] sm:$0xff]
        %v3299 = vld [vmem:[#allocation17 + $0x108] sm:$0xff]
        %v3300 = vld [vmem:[#allocation17 + $0x110] sm:$0xff]
        %v3301 = vld [vmem:[#allocation17 + $0x118] sm:$0xff]
        %v3302 = vld [vmem:[#allocation17 + $0x120] sm:$0xff]
        %v3303 = vld [vmem:[#allocation17 + $0x128] sm:$0xff]
        %v3304 = vld [vmem:[#allocation17 + $0x130] sm:$0xff]
        %v3305 = vld [vmem:[#allocation17 + $0x138] sm:$0xff]
        %v3306 = vld [vmem:[#allocation17 + $0x140] sm:$0xff]
        %v3307 = vld [vmem:[#allocation17 + $0x148] sm:$0xff]
        %v3308 = vld [vmem:[#allocation17 + $0x150] sm:$0xff]
        %v3309 = vld [vmem:[#allocation17 + $0x158] sm:$0xff]
        %v3310 = vld [vmem:[#allocation17 + $0x160] sm:$0xff]
        %v3311 = vld [vmem:[#allocation17 + $0x168] sm:$0xff]
        %v3312 = vld [vmem:[#allocation17 + $0x170] sm:$0xff]
        %v3313 = vld [vmem:[#allocation17 + $0x178] sm:$0xff]
        %v3314 = vld [vmem:[#allocation17 + $0x180] sm:$0xff]
        %v3315 = vld [vmem:[#allocation17 + $0x188] sm:$0xff]
        %v3316 = vld [vmem:[#allocation17 + $0x190] sm:$0xff]
        %v3317 = vld [vmem:[#allocation17 + $0x198] sm:$0xff]
        %v3318 = vld [vmem:[#allocation17 + $0x1a0] sm:$0xff]
        %v3319 = vld [vmem:[#allocation17 + $0x1a8] sm:$0xff]
        %v3320 = vld [vmem:[#allocation17 + $0x1b0] sm:$0xff]
        %v3321 = vld [vmem:[#allocation17 + $0x1b8] sm:$0xff]
        %v3322 = vld [vmem:[#allocation17 + $0x1c0] sm:$0xff]
        %v3323 = vld [vmem:[#allocation17 + $0x1c8] sm:$0xff]
        %v3324 = vld [vmem:[#allocation17 + $0x1d0] sm:$0xff]
        %v3325 = vld [vmem:[#allocation17 + $0x1d8] sm:$0xff]
        %v3326 = vld [vmem:[#allocation17 + $0x1e0] sm:$0xff]
        %v3327 = vld [vmem:[#allocation17 + $0x1e8] sm:$0xff]
        %v3328 = vld [vmem:[#allocation17 + $0x1f0] sm:$0xff]
        %v3329 = vld [vmem:[#allocation17 + $0x1f8] sm:$0xff]
        %v3330 = vld [vmem:[#allocation17 + $0x200] sm:$0xff]
        %v3331 = vld [vmem:[#allocation17 + $0x208] sm:$0xff]
        %v3332 = vld [vmem:[#allocation17 + $0x210] sm:$0xff]
        %v3333 = vld [vmem:[#allocation17 + $0x218] sm:$0xff]
        %v3334 = vld [vmem:[#allocation17 + $0x220] sm:$0xff]
        %v3335 = vld [vmem:[#allocation17 + $0x228] sm:$0xff]
        %v3336 = vld [vmem:[#allocation17 + $0x230] sm:$0xff]
        %v3337 = vld [vmem:[#allocation17 + $0x238] sm:$0xff]
        %v3338 = vld [vmem:[#allocation17 + $0x240] sm:$0xff]
        %v3339 = vld [vmem:[#allocation17 + $0x248] sm:$0xff]
        %v3340 = vld [vmem:[#allocation17 + $0x250] sm:$0xff]
        %v3341 = vld [vmem:[#allocation17 + $0x258] sm:$0xff]
        %v3342 = vld [vmem:[#allocation17 + $0x260] sm:$0xff]
        %v3343 = vld [vmem:[#allocation17 + $0x268] sm:$0xff]
        %v3344 = vld [vmem:[#allocation17 + $0x270] sm:$0xff]
        %v3345 = vld [vmem:[#allocation17 + $0x278] sm:$0xff]
        %v3346 = vld [vmem:[#allocation17 + $0x280] sm:$0xff]
        %v3347 = vld [vmem:[#allocation17 + $0x288] sm:$0xff]
        %v3348 = vld [vmem:[#allocation17 + $0x290] sm:$0xff]
        %v3349 = vld [vmem:[#allocation17 + $0x298] sm:$0xff]
        %v3350 = vld [vmem:[#allocation17 + $0x2a0] sm:$0xff]
        %v3351 = vld [vmem:[#allocation17 + $0x2a8] sm:$0xff]
        %v3352 = vld [vmem:[#allocation17 + $0x2b0] sm:$0xff]
        %v3353 = vld [vmem:[#allocation17 + $0x2b8] sm:$0xff]
        %v3354 = vld [vmem:[#allocation17 + $0x2c0] sm:$0xff]
        %v3355 = vld [vmem:[#allocation17 + $0x2c8] sm:$0xff]
        %v3356 = vld [vmem:[#allocation17 + $0x2d0] sm:$0xff]
        %v3357 = vld [vmem:[#allocation17 + $0x2d8] sm:$0xff]
        %v3358 = vld [vmem:[#allocation17 + $0x2e0] sm:$0xff]
        %v3359 = vld [vmem:[#allocation17 + $0x2e8] sm:$0xff]
        %v3360 = vld [vmem:[#allocation17 + $0x2f0] sm:$0xff]
        %v3361 = vld [vmem:[#allocation17 + $0x2f8] sm:$0xff]
        %v3362 = vld [vmem:[#allocation20 + $0xe] sm:$0x7]
        %v3364 = vperm.slane %v3362, 0
        %v3365 = vperm.slane %v3362, 1
        %v3366 = vperm.slane %v3362, 2
        %3370 = vmatpush.msra.mxu0 %v3311
        %3371 = vmatpush.msra.mxu0 %v3308
        %3372 = vmatpush.msra.mxu0 %v3305
        %3373 = vmatpush.msra.mxu0 %v3302
        %3374 = vmatpush.msra.mxu0 %v3299
        %3375 = vmatpush.msra.mxu0 %v3296
        %3376 = vmatpush.msra.mxu0 %v3293
        %3377 = vmatpush.msra.mxu0 %v3290
        %3378 = vmatpush.msra.mxu0 %v3287
        %3379 = vmatpush.msra.mxu0 %v3284
        %3380 = vmatpush.msra.mxu0 %v3281
        %3381 = vmatpush.msra.mxu0 %v3278
        %3382 = vmatpush.msra.mxu0 %v3275
        %3383 = vmatpush.msra.mxu0 %v3272
        %3384 = vmatpush.msra.mxu0 %v3269
        %3385 = vmatpush.msra.mxu0 %v3266
        %3386 = vmatmul.f32.gmra.mxu0 %v3234
        %v3387 = vpop.f32.mrf.mxu0
        %v3388 = vadd.f32 %v3364, %v3387
        %3389 = vmatmul.f32.gmra.mxu0 %v3236
        %v3390 = vpop.f32.mrf.mxu0
        %v3391 = vadd.f32 %v3364, %v3390
        %3392 = vmatmul.f32.gmra.mxu0 %v3238
        %v3393 = vpop.f32.mrf.mxu0
        %v3394 = vadd.f32 %v3364, %v3393
        %3395 = vmatmul.f32.gmra.mxu0 %v3240
        %v3396 = vpop.f32.mrf.mxu0
        %v3397 = vadd.f32 %v3364, %v3396
        %3398 = vmatmul.f32.gmra.mxu0 %v3242
        %v3399 = vpop.f32.mrf.mxu0
        %v3400 = vadd.f32 %v3364, %v3399
        %3401 = vmatmul.f32.gmra.mxu0 %v3244
        %v3402 = vpop.f32.mrf.mxu0
        %v3403 = vadd.f32 %v3364, %v3402
        %3404 = vmatmul.f32.gmra.mxu0 %v3246
        %v3405 = vpop.f32.mrf.mxu0
        %v3406 = vadd.f32 %v3364, %v3405
        %3407 = vmatmul.f32.gmra.mxu0 %v3248
        %v3408 = vpop.f32.mrf.mxu0
        %v3409 = vadd.f32 %v3364, %v3408
        %3410 = vmatmul.f32.gmra.mxu0 %v3250
        %v3411 = vpop.f32.mrf.mxu0
        %v3412 = vadd.f32 %v3364, %v3411
        %3413 = vmatmul.f32.gmra.mxu0 %v3252
        %v3414 = vpop.f32.mrf.mxu0
        %v3415 = vadd.f32 %v3364, %v3414
        %3416 = vmatmul.f32.gmra.mxu0 %v3254
        %v3417 = vpop.f32.mrf.mxu0
        %v3418 = vadd.f32 %v3364, %v3417
        %3419 = vmatmul.f32.gmra.mxu0 %v3256
        %v3420 = vpop.f32.mrf.mxu0
        %v3421 = vadd.f32 %v3364, %v3420
        %3422 = vmatmul.f32.gmra.mxu0 %v3258
        %v3423 = vpop.f32.mrf.mxu0
        %v3424 = vadd.f32 %v3364, %v3423
        %3425 = vmatmul.f32.gmra.mxu0 %v3260
        %v3426 = vpop.f32.mrf.mxu0
        %v3427 = vadd.f32 %v3364, %v3426
        %3428 = vmatmul.f32.gmra.mxu0 %v3262
        %v3429 = vpop.f32.mrf.mxu0
        %v3430 = vadd.f32 %v3364, %v3429
        %3431 = vmatmul.f32.gmra.mxu0 %v3264
        %v3432 = vpop.f32.mrf.mxu0
        %v3433 = vadd.f32 %v3364, %v3432
        %3434 = vdwg.mxu0
        %3435 = vmatpush.msra.mxu0 %v3359
        %3436 = vmatpush.msra.mxu0 %v3356
        %3437 = vmatpush.msra.mxu0 %v3353
        %3438 = vmatpush.msra.mxu0 %v3350
        %3439 = vmatpush.msra.mxu0 %v3347
        %3440 = vmatpush.msra.mxu0 %v3344
        %3441 = vmatpush.msra.mxu0 %v3341
        %3442 = vmatpush.msra.mxu0 %v3338
        %3443 = vmatpush.msra.mxu0 %v3335
        %3444 = vmatpush.msra.mxu0 %v3332
        %3445 = vmatpush.msra.mxu0 %v3329
        %3446 = vmatpush.msra.mxu0 %v3326
        %3447 = vmatpush.msra.mxu0 %v3323
        %3448 = vmatpush.msra.mxu0 %v3320
        %3449 = vmatpush.msra.mxu0 %v3317
        %3450 = vmatpush.msra.mxu0 %v3314
        %3451 = vmatmul.f32.gmra.mxu0 %v3235
        %v3452 = vpop.f32.mrf.mxu0
        %v3453 = vadd.f32 %v3388, %v3452
        %3454 = vmatmul.f32.gmra.mxu0 %v3237
        %v3455 = vpop.f32.mrf.mxu0
        %v3456 = vadd.f32 %v3391, %v3455
        %3457 = vmatmul.f32.gmra.mxu0 %v3239
        %v3458 = vpop.f32.mrf.mxu0
        %v3459 = vadd.f32 %v3394, %v3458
        %3460 = vmatmul.f32.gmra.mxu0 %v3241
        %v3461 = vpop.f32.mrf.mxu0
        %v3462 = vadd.f32 %v3397, %v3461
        %3463 = vmatmul.f32.gmra.mxu0 %v3243
        %v3464 = vpop.f32.mrf.mxu0
        %v3465 = vadd.f32 %v3400, %v3464
        %3466 = vmatmul.f32.gmra.mxu0 %v3245
        %v3467 = vpop.f32.mrf.mxu0
        %v3468 = vadd.f32 %v3403, %v3467
        %3469 = vmatmul.f32.gmra.mxu0 %v3247
        %v3470 = vpop.f32.mrf.mxu0
        %v3471 = vadd.f32 %v3406, %v3470
        %3472 = vmatmul.f32.gmra.mxu0 %v3249
        %v3473 = vpop.f32.mrf.mxu0
        %v3474 = vadd.f32 %v3409, %v3473
        %3475 = vmatmul.f32.gmra.mxu0 %v3251
        %v3476 = vpop.f32.mrf.mxu0
        %v3477 = vadd.f32 %v3412, %v3476
        %3478 = vmatmul.f32.gmra.mxu0 %v3253
        %v3479 = vpop.f32.mrf.mxu0
        %v3480 = vadd.f32 %v3415, %v3479
        %3481 = vmatmul.f32.gmra.mxu0 %v3255
        %v3482 = vpop.f32.mrf.mxu0
        %v3483 = vadd.f32 %v3418, %v3482
        %3484 = vmatmul.f32.gmra.mxu0 %v3257
        %v3485 = vpop.f32.mrf.mxu0
        %v3486 = vadd.f32 %v3421, %v3485
        %3487 = vmatmul.f32.gmra.mxu0 %v3259
        %v3488 = vpop.f32.mrf.mxu0
        %v3489 = vadd.f32 %v3424, %v3488
        %3490 = vmatmul.f32.gmra.mxu0 %v3261
        %v3491 = vpop.f32.mrf.mxu0
        %v3492 = vadd.f32 %v3427, %v3491
        %3493 = vmatmul.f32.gmra.mxu0 %v3263
        %v3494 = vpop.f32.mrf.mxu0
        %v3495 = vadd.f32 %v3430, %v3494
        %3496 = vmatmul.f32.gmra.mxu0 %v3265
        %v3497 = vpop.f32.mrf.mxu0
        %v3498 = vadd.f32 %v3433, %v3497
        %3499 = vdwg.mxu0
        %3500 = vmatpush.msra.mxu0 %v3312
        %3501 = vmatpush.msra.mxu0 %v3309
        %3502 = vmatpush.msra.mxu0 %v3306
        %3503 = vmatpush.msra.mxu0 %v3303
        %3504 = vmatpush.msra.mxu0 %v3300
        %3505 = vmatpush.msra.mxu0 %v3297
        %3506 = vmatpush.msra.mxu0 %v3294
        %3507 = vmatpush.msra.mxu0 %v3291
        %3508 = vmatpush.msra.mxu0 %v3288
        %3509 = vmatpush.msra.mxu0 %v3285
        %3510 = vmatpush.msra.mxu0 %v3282
        %3511 = vmatpush.msra.mxu0 %v3279
        %3512 = vmatpush.msra.mxu0 %v3276
        %3513 = vmatpush.msra.mxu0 %v3273
        %3514 = vmatpush.msra.mxu0 %v3270
        %3515 = vmatpush.msra.mxu0 %v3267
        %3516 = vmatmul.f32.gmra.mxu0 %v3234
        %v3517 = vpop.f32.mrf.mxu0
        %v3518 = vadd.f32 %v3365, %v3517
        %3519 = vmatmul.f32.gmra.mxu0 %v3236
        %v3520 = vpop.f32.mrf.mxu0
        %v3521 = vadd.f32 %v3365, %v3520
        %3522 = vmatmul.f32.gmra.mxu0 %v3238
        %v3523 = vpop.f32.mrf.mxu0
        %v3524 = vadd.f32 %v3365, %v3523
        %3525 = vmatmul.f32.gmra.mxu0 %v3240
        %v3526 = vpop.f32.mrf.mxu0
        %v3527 = vadd.f32 %v3365, %v3526
        %3528 = vmatmul.f32.gmra.mxu0 %v3242
        %v3529 = vpop.f32.mrf.mxu0
        %v3530 = vadd.f32 %v3365, %v3529
        %3531 = vmatmul.f32.gmra.mxu0 %v3244
        %v3532 = vpop.f32.mrf.mxu0
        %v3533 = vadd.f32 %v3365, %v3532
        %3534 = vmatmul.f32.gmra.mxu0 %v3246
        %v3535 = vpop.f32.mrf.mxu0
        %v3536 = vadd.f32 %v3365, %v3535
        %3537 = vmatmul.f32.gmra.mxu0 %v3248
        %v3538 = vpop.f32.mrf.mxu0
        %v3539 = vadd.f32 %v3365, %v3538
        %3540 = vmatmul.f32.gmra.mxu0 %v3250
        %v3541 = vpop.f32.mrf.mxu0
        %v3542 = vadd.f32 %v3365, %v3541
        %3543 = vmatmul.f32.gmra.mxu0 %v3252
        %v3544 = vpop.f32.mrf.mxu0
        %v3545 = vadd.f32 %v3365, %v3544
        %3546 = vmatmul.f32.gmra.mxu0 %v3254
        %v3547 = vpop.f32.mrf.mxu0
        %v3548 = vadd.f32 %v3365, %v3547
        %3549 = vmatmul.f32.gmra.mxu0 %v3256
        %v3550 = vpop.f32.mrf.mxu0
        %v3551 = vadd.f32 %v3365, %v3550
        %3552 = vmatmul.f32.gmra.mxu0 %v3258
        %v3553 = vpop.f32.mrf.mxu0
        %v3554 = vadd.f32 %v3365, %v3553
        %3555 = vmatmul.f32.gmra.mxu0 %v3260
        %v3556 = vpop.f32.mrf.mxu0
        %v3557 = vadd.f32 %v3365, %v3556
        %3558 = vmatmul.f32.gmra.mxu0 %v3262
        %v3559 = vpop.f32.mrf.mxu0
        %v3560 = vadd.f32 %v3365, %v3559
        %3561 = vmatmul.f32.gmra.mxu0 %v3264
        %v3562 = vpop.f32.mrf.mxu0
        %v3563 = vadd.f32 %v3365, %v3562
        %3564 = vdwg.mxu0
        %3565 = vmatpush.msra.mxu0 %v3360
        %3566 = vmatpush.msra.mxu0 %v3357
        %3567 = vmatpush.msra.mxu0 %v3354
        %3568 = vmatpush.msra.mxu0 %v3351
        %3569 = vmatpush.msra.mxu0 %v3348
        %3570 = vmatpush.msra.mxu0 %v3345
        %3571 = vmatpush.msra.mxu0 %v3342
        %3572 = vmatpush.msra.mxu0 %v3339
        %3573 = vmatpush.msra.mxu0 %v3336
        %3574 = vmatpush.msra.mxu0 %v3333
        %3575 = vmatpush.msra.mxu0 %v3330
        %3576 = vmatpush.msra.mxu0 %v3327
        %3577 = vmatpush.msra.mxu0 %v3324
        %3578 = vmatpush.msra.mxu0 %v3321
        %3579 = vmatpush.msra.mxu0 %v3318
        %3580 = vmatpush.msra.mxu0 %v3315
        %3581 = vmatmul.f32.gmra.mxu0 %v3235
        %v3582 = vpop.f32.mrf.mxu0
        %v3583 = vadd.f32 %v3518, %v3582
        %3584 = vmatmul.f32.gmra.mxu0 %v3237
        %v3585 = vpop.f32.mrf.mxu0
        %v3586 = vadd.f32 %v3521, %v3585
        %3587 = vmatmul.f32.gmra.mxu0 %v3239
        %v3588 = vpop.f32.mrf.mxu0
        %v3589 = vadd.f32 %v3524, %v3588
        %3590 = vmatmul.f32.gmra.mxu0 %v3241
        %v3591 = vpop.f32.mrf.mxu0
        %v3592 = vadd.f32 %v3527, %v3591
        %3593 = vmatmul.f32.gmra.mxu0 %v3243
        %v3594 = vpop.f32.mrf.mxu0
        %v3595 = vadd.f32 %v3530, %v3594
        %3596 = vmatmul.f32.gmra.mxu0 %v3245
        %v3597 = vpop.f32.mrf.mxu0
        %v3598 = vadd.f32 %v3533, %v3597
        %3599 = vmatmul.f32.gmra.mxu0 %v3247
        %v3600 = vpop.f32.mrf.mxu0
        %v3601 = vadd.f32 %v3536, %v3600
        %3602 = vmatmul.f32.gmra.mxu0 %v3249
        %v3603 = vpop.f32.mrf.mxu0
        %v3604 = vadd.f32 %v3539, %v3603
        %3605 = vmatmul.f32.gmra.mxu0 %v3251
        %v3606 = vpop.f32.mrf.mxu0
        %v3607 = vadd.f32 %v3542, %v3606
        %3608 = vmatmul.f32.gmra.mxu0 %v3253
        %v3609 = vpop.f32.mrf.mxu0
        %v3610 = vadd.f32 %v3545, %v3609
        %3611 = vmatmul.f32.gmra.mxu0 %v3255
        %v3612 = vpop.f32.mrf.mxu0
        %v3613 = vadd.f32 %v3548, %v3612
        %3614 = vmatmul.f32.gmra.mxu0 %v3257
        %v3615 = vpop.f32.mrf.mxu0
        %v3616 = vadd.f32 %v3551, %v3615
        %3617 = vmatmul.f32.gmra.mxu0 %v3259
        %v3618 = vpop.f32.mrf.mxu0
        %v3619 = vadd.f32 %v3554, %v3618
        %3620 = vmatmul.f32.gmra.mxu0 %v3261
        %v3621 = vpop.f32.mrf.mxu0
        %v3622 = vadd.f32 %v3557, %v3621
        %3623 = vmatmul.f32.gmra.mxu0 %v3263
        %v3624 = vpop.f32.mrf.mxu0
        %v3625 = vadd.f32 %v3560, %v3624
        %3626 = vmatmul.f32.gmra.mxu0 %v3265
        %v3627 = vpop.f32.mrf.mxu0
        %v3628 = vadd.f32 %v3563, %v3627
        %3629 = vdwg.mxu0
        %3630 = vmatpush.msra.mxu0 %v3313
        %3631 = vmatpush.msra.mxu0 %v3310
        %3632 = vmatpush.msra.mxu0 %v3307
        %3633 = vmatpush.msra.mxu0 %v3304
        %3634 = vmatpush.msra.mxu0 %v3301
        %3635 = vmatpush.msra.mxu0 %v3298
        %3636 = vmatpush.msra.mxu0 %v3295
        %3637 = vmatpush.msra.mxu0 %v3292
        %3638 = vmatpush.msra.mxu0 %v3289
        %3639 = vmatpush.msra.mxu0 %v3286
        %3640 = vmatpush.msra.mxu0 %v3283
        %3641 = vmatpush.msra.mxu0 %v3280
        %3642 = vmatpush.msra.mxu0 %v3277
        %3643 = vmatpush.msra.mxu0 %v3274
        %3644 = vmatpush.msra.mxu0 %v3271
        %3645 = vmatpush.msra.mxu0 %v3268
        %3646 = vmatmul.f32.gmra.mxu0 %v3234
        %v3647 = vpop.f32.mrf.mxu0
        %v3648 = vadd.f32 %v3366, %v3647
        %3649 = vmatmul.f32.gmra.mxu0 %v3236
        %v3650 = vpop.f32.mrf.mxu0
        %v3651 = vadd.f32 %v3366, %v3650
        %3652 = vmatmul.f32.gmra.mxu0 %v3238
        %v3653 = vpop.f32.mrf.mxu0
        %v3654 = vadd.f32 %v3366, %v3653
        %3655 = vmatmul.f32.gmra.mxu0 %v3240
        %v3656 = vpop.f32.mrf.mxu0
        %v3657 = vadd.f32 %v3366, %v3656
        %3658 = vmatmul.f32.gmra.mxu0 %v3242
        %v3659 = vpop.f32.mrf.mxu0
        %v3660 = vadd.f32 %v3366, %v3659
        %3661 = vmatmul.f32.gmra.mxu0 %v3244
        %v3662 = vpop.f32.mrf.mxu0
        %v3663 = vadd.f32 %v3366, %v3662
        %3664 = vmatmul.f32.gmra.mxu0 %v3246
        %v3665 = vpop.f32.mrf.mxu0
        %v3666 = vadd.f32 %v3366, %v3665
        %3667 = vmatmul.f32.gmra.mxu0 %v3248
        %v3668 = vpop.f32.mrf.mxu0
        %v3669 = vadd.f32 %v3366, %v3668
        %3670 = vmatmul.f32.gmra.mxu0 %v3250
        %v3671 = vpop.f32.mrf.mxu0
        %v3672 = vadd.f32 %v3366, %v3671
        %3673 = vmatmul.f32.gmra.mxu0 %v3252
        %v3674 = vpop.f32.mrf.mxu0
        %v3675 = vadd.f32 %v3366, %v3674
        %3676 = vmatmul.f32.gmra.mxu0 %v3254
        %v3677 = vpop.f32.mrf.mxu0
        %v3678 = vadd.f32 %v3366, %v3677
        %3679 = vmatmul.f32.gmra.mxu0 %v3256
        %v3680 = vpop.f32.mrf.mxu0
        %v3681 = vadd.f32 %v3366, %v3680
        %3682 = vmatmul.f32.gmra.mxu0 %v3258
        %v3683 = vpop.f32.mrf.mxu0
        %v3684 = vadd.f32 %v3366, %v3683
        %3685 = vmatmul.f32.gmra.mxu0 %v3260
        %v3686 = vpop.f32.mrf.mxu0
        %v3687 = vadd.f32 %v3366, %v3686
        %3688 = vmatmul.f32.gmra.mxu0 %v3262
        %v3689 = vpop.f32.mrf.mxu0
        %v3690 = vadd.f32 %v3366, %v3689
        %3691 = vmatmul.f32.gmra.mxu0 %v3264
        %v3692 = vpop.f32.mrf.mxu0
        %v3693 = vadd.f32 %v3366, %v3692
        %3694 = vdwg.mxu0
        %3695 = vmatpush.msra.mxu0 %v3361
        %3696 = vmatpush.msra.mxu0 %v3358
        %3697 = vmatpush.msra.mxu0 %v3355
        %3698 = vmatpush.msra.mxu0 %v3352
        %3699 = vmatpush.msra.mxu0 %v3349
        %3700 = vmatpush.msra.mxu0 %v3346
        %3701 = vmatpush.msra.mxu0 %v3343
        %3702 = vmatpush.msra.mxu0 %v3340
        %3703 = vmatpush.msra.mxu0 %v3337
        %3704 = vmatpush.msra.mxu0 %v3334
        %3705 = vmatpush.msra.mxu0 %v3331
        %3706 = vmatpush.msra.mxu0 %v3328
        %3707 = vmatpush.msra.mxu0 %v3325
        %3708 = vmatpush.msra.mxu0 %v3322
        %3709 = vmatpush.msra.mxu0 %v3319
        %3710 = vmatpush.msra.mxu0 %v3316
        %3711 = vmatmul.f32.gmra.mxu0 %v3235
        %v3712 = vpop.f32.mrf.mxu0
        %v3713 = vadd.f32 %v3648, %v3712
        %3714 = vmatmul.f32.gmra.mxu0 %v3237
        %v3715 = vpop.f32.mrf.mxu0
        %v3716 = vadd.f32 %v3651, %v3715
        %3717 = vmatmul.f32.gmra.mxu0 %v3239
        %v3718 = vpop.f32.mrf.mxu0
        %v3719 = vadd.f32 %v3654, %v3718
        %3720 = vmatmul.f32.gmra.mxu0 %v3241
        %v3721 = vpop.f32.mrf.mxu0
        %v3722 = vadd.f32 %v3657, %v3721
        %3723 = vmatmul.f32.gmra.mxu0 %v3243
        %v3724 = vpop.f32.mrf.mxu0
        %v3725 = vadd.f32 %v3660, %v3724
        %3726 = vmatmul.f32.gmra.mxu0 %v3245
        %v3727 = vpop.f32.mrf.mxu0
        %v3728 = vadd.f32 %v3663, %v3727
        %3729 = vmatmul.f32.gmra.mxu0 %v3247
        %v3730 = vpop.f32.mrf.mxu0
        %v3731 = vadd.f32 %v3666, %v3730
        %3732 = vmatmul.f32.gmra.mxu0 %v3249
        %v3733 = vpop.f32.mrf.mxu0
        %v3734 = vadd.f32 %v3669, %v3733
        %3735 = vmatmul.f32.gmra.mxu0 %v3251
        %v3736 = vpop.f32.mrf.mxu0
        %v3737 = vadd.f32 %v3672, %v3736
        %3738 = vmatmul.f32.gmra.mxu0 %v3253
        %v3739 = vpop.f32.mrf.mxu0
        %v3740 = vadd.f32 %v3675, %v3739
        %3741 = vmatmul.f32.gmra.mxu0 %v3255
        %v3742 = vpop.f32.mrf.mxu0
        %v3743 = vadd.f32 %v3678, %v3742
        %3744 = vmatmul.f32.gmra.mxu0 %v3257
        %v3745 = vpop.f32.mrf.mxu0
        %v3746 = vadd.f32 %v3681, %v3745
        %3747 = vmatmul.f32.gmra.mxu0 %v3259
        %v3748 = vpop.f32.mrf.mxu0
        %v3749 = vadd.f32 %v3684, %v3748
        %3750 = vmatmul.f32.gmra.mxu0 %v3261
        %v3751 = vpop.f32.mrf.mxu0
        %v3752 = vadd.f32 %v3687, %v3751
        %3753 = vmatmul.f32.gmra.mxu0 %v3263
        %v3754 = vpop.f32.mrf.mxu0
        %v3755 = vadd.f32 %v3690, %v3754
        %3756 = vmatmul.f32.gmra.mxu0 %v3265
        %v3757 = vpop.f32.mrf.mxu0
        %v3758 = vadd.f32 %v3693, %v3757
        %3759 = vdwg.mxu0
        %v3760 = vmax.f32 %v3453, 0.0
        %v3761 = vmax.f32 %v3583, 0.0
        %v3762 = vmax.f32 %v3713, 0.0
        %v3763 = vmax.f32 %v3456, 0.0
        %v3764 = vmax.f32 %v3586, 0.0
        %v3765 = vmax.f32 %v3716, 0.0
        %v3766 = vmax.f32 %v3459, 0.0
        %v3767 = vmax.f32 %v3589, 0.0
        %v3768 = vmax.f32 %v3719, 0.0
        %v3769 = vmax.f32 %v3462, 0.0
        %v3770 = vmax.f32 %v3592, 0.0
        %v3771 = vmax.f32 %v3722, 0.0
        %v3772 = vmax.f32 %v3465, 0.0
        %v3773 = vmax.f32 %v3595, 0.0
        %v3774 = vmax.f32 %v3725, 0.0
        %v3775 = vmax.f32 %v3468, 0.0
        %v3776 = vmax.f32 %v3598, 0.0
        %v3777 = vmax.f32 %v3728, 0.0
        %v3778 = vmax.f32 %v3471, 0.0
        %v3779 = vmax.f32 %v3601, 0.0
        %v3780 = vmax.f32 %v3731, 0.0
        %v3781 = vmax.f32 %v3474, 0.0
        %v3782 = vmax.f32 %v3604, 0.0
        %v3783 = vmax.f32 %v3734, 0.0
        %v3784 = vmax.f32 %v3477, 0.0
        %v3785 = vmax.f32 %v3607, 0.0
        %v3786 = vmax.f32 %v3737, 0.0
        %v3787 = vmax.f32 %v3480, 0.0
        %v3788 = vmax.f32 %v3610, 0.0
        %v3789 = vmax.f32 %v3740, 0.0
        %v3790 = vmax.f32 %v3483, 0.0
        %v3791 = vmax.f32 %v3613, 0.0
        %v3792 = vmax.f32 %v3743, 0.0
        %v3793 = vmax.f32 %v3486, 0.0
        %v3794 = vmax.f32 %v3616, 0.0
        %v3795 = vmax.f32 %v3746, 0.0
        %v3796 = vmax.f32 %v3489, 0.0
        %v3797 = vmax.f32 %v3619, 0.0
        %v3798 = vmax.f32 %v3749, 0.0
        %v3799 = vmax.f32 %v3492, 0.0
        %v3800 = vmax.f32 %v3622, 0.0
        %v3801 = vmax.f32 %v3752, 0.0
        %v3802 = vmax.f32 %v3495, 0.0
        %v3803 = vmax.f32 %v3625, 0.0
        %v3804 = vmax.f32 %v3755, 0.0
        %v3805 = vmax.f32 %v3498, 0.0
        %v3806 = vmax.f32 %v3628, 0.0
        %v3807 = vmax.f32 %v3758, 0.0
        %v3808 = vld [vmem:[#allocation19] sm:$0xff]
        %v3809 = vld [vmem:[#allocation19 + $0x8] sm:$0xff]
        %v3810 = vld [vmem:[#allocation19 + $0x10] sm:$0xff]
        %v3811 = vld [vmem:[#allocation19 + $0x18] sm:$0xff]
        %v3812 = vld [vmem:[#allocation19 + $0x20] sm:$0xff]
        %v3813 = vld [vmem:[#allocation19 + $0x28] sm:$0xff]
        %v3814 = vld [vmem:[#allocation19 + $0x30] sm:$0xff]
        %v3815 = vld [vmem:[#allocation19 + $0x38] sm:$0xff]
        %v3816 = vld [vmem:[#allocation19 + $0x40] sm:$0xff]
        %v3817 = vld [vmem:[#allocation19 + $0x48] sm:$0xff]
        %v3818 = vld [vmem:[#allocation19 + $0x50] sm:$0xff]
        %v3819 = vld [vmem:[#allocation19 + $0x58] sm:$0xff]
        %v3820 = vld [vmem:[#allocation19 + $0x60] sm:$0xff]
        %v3821 = vld [vmem:[#allocation19 + $0x68] sm:$0xff]
        %v3822 = vld [vmem:[#allocation19 + $0x70] sm:$0xff]
        %v3823 = vld [vmem:[#allocation19 + $0x78] sm:$0xff]
        %v3824 = vld [vmem:[#allocation19 + $0x80] sm:$0xff]
        %v3825 = vld [vmem:[#allocation19 + $0x88] sm:$0xff]
        %v3826 = vld [vmem:[#allocation19 + $0x90] sm:$0xff]
        %v3827 = vld [vmem:[#allocation19 + $0x98] sm:$0xff]
        %v3828 = vld [vmem:[#allocation19 + $0xa0] sm:$0xff]
        %v3829 = vld [vmem:[#allocation19 + $0xa8] sm:$0xff]
        %v3830 = vld [vmem:[#allocation19 + $0xb0] sm:$0xff]
        %v3831 = vld [vmem:[#allocation19 + $0xb8] sm:$0xff]
        %v3832 = vld [vmem:[#allocation19 + $0xc0] sm:$0xff]
        %v3833 = vld [vmem:[#allocation19 + $0xc8] sm:$0xff]
        %v3834 = vld [vmem:[#allocation19 + $0xd0] sm:$0xff]
        %v3835 = vld [vmem:[#allocation19 + $0xd8] sm:$0xff]
        %v3836 = vld [vmem:[#allocation19 + $0xe0] sm:$0xff]
        %v3837 = vld [vmem:[#allocation19 + $0xe8] sm:$0xff]
        %v3838 = vld [vmem:[#allocation19 + $0xf0] sm:$0xff]
        %v3839 = vld [vmem:[#allocation19 + $0xf8] sm:$0xff]
        %v3840 = vld [vmem:[#allocation19 + $0x100] sm:$0xff]
        %v3841 = vld [vmem:[#allocation19 + $0x108] sm:$0xff]
        %v3842 = vld [vmem:[#allocation19 + $0x110] sm:$0xff]
        %v3843 = vld [vmem:[#allocation19 + $0x118] sm:$0xff]
        %v3844 = vld [vmem:[#allocation19 + $0x120] sm:$0xff]
        %v3845 = vld [vmem:[#allocation19 + $0x128] sm:$0xff]
        %v3846 = vld [vmem:[#allocation19 + $0x130] sm:$0xff]
        %v3847 = vld [vmem:[#allocation19 + $0x138] sm:$0xff]
        %v3848 = vld [vmem:[#allocation19 + $0x140] sm:$0xff]
        %v3849 = vld [vmem:[#allocation19 + $0x148] sm:$0xff]
        %v3850 = vld [vmem:[#allocation19 + $0x150] sm:$0xff]
        %v3851 = vld [vmem:[#allocation19 + $0x158] sm:$0xff]
        %v3852 = vld [vmem:[#allocation19 + $0x160] sm:$0xff]
        %v3853 = vld [vmem:[#allocation19 + $0x168] sm:$0xff]
        %v3854 = vld [vmem:[#allocation19 + $0x170] sm:$0xff]
        %v3855 = vld [vmem:[#allocation19 + $0x178] sm:$0xff]
        %v3856 = vld [vmem:[#allocation19 + $0x180] sm:$0xff]
        %v3857 = vld [vmem:[#allocation19 + $0x188] sm:$0xff]
        %v3858 = vld [vmem:[#allocation19 + $0x190] sm:$0xff]
        %v3859 = vld [vmem:[#allocation19 + $0x198] sm:$0xff]
        %v3860 = vld [vmem:[#allocation19 + $0x1a0] sm:$0xff]
        %v3861 = vld [vmem:[#allocation19 + $0x1a8] sm:$0xff]
        %v3862 = vld [vmem:[#allocation19 + $0x1b0] sm:$0xff]
        %v3863 = vld [vmem:[#allocation19 + $0x1b8] sm:$0xff]
        %v3864 = vld [vmem:[#allocation19 + $0x1c0] sm:$0xff]
        %v3865 = vld [vmem:[#allocation19 + $0x1c8] sm:$0xff]
        %v3866 = vld [vmem:[#allocation19 + $0x1d0] sm:$0xff]
        %v3867 = vld [vmem:[#allocation19 + $0x1d8] sm:$0xff]
        %v3868 = vld [vmem:[#allocation19 + $0x1e0] sm:$0xff]
        %v3869 = vld [vmem:[#allocation19 + $0x1e8] sm:$0xff]
        %v3870 = vld [vmem:[#allocation19 + $0x1f0] sm:$0xff]
        %v3871 = vld [vmem:[#allocation19 + $0x1f8] sm:$0xff]
        %v3872 = vld [vmem:[#allocation19 + $0x200] sm:$0xff]
        %v3873 = vld [vmem:[#allocation19 + $0x208] sm:$0xff]
        %v3874 = vld [vmem:[#allocation19 + $0x210] sm:$0xff]
        %v3875 = vld [vmem:[#allocation19 + $0x218] sm:$0xff]
        %v3876 = vld [vmem:[#allocation19 + $0x220] sm:$0xff]
        %v3877 = vld [vmem:[#allocation19 + $0x228] sm:$0xff]
        %v3878 = vld [vmem:[#allocation19 + $0x230] sm:$0xff]
        %v3879 = vld [vmem:[#allocation19 + $0x238] sm:$0xff]
        %v3880 = vld [vmem:[#allocation19 + $0x240] sm:$0xff]
        %v3881 = vld [vmem:[#allocation19 + $0x248] sm:$0xff]
        %v3882 = vld [vmem:[#allocation19 + $0x250] sm:$0xff]
        %v3883 = vld [vmem:[#allocation19 + $0x258] sm:$0xff]
        %v3884 = vld [vmem:[#allocation19 + $0x260] sm:$0xff]
        %v3885 = vld [vmem:[#allocation19 + $0x268] sm:$0xff]
        %v3886 = vld [vmem:[#allocation19 + $0x270] sm:$0xff]
        %v3887 = vld [vmem:[#allocation19 + $0x278] sm:$0xff]
        %v3888 = vld [vmem:[#allocation19 + $0x280] sm:$0xff]
        %v3889 = vld [vmem:[#allocation19 + $0x288] sm:$0xff]
        %v3890 = vld [vmem:[#allocation19 + $0x290] sm:$0xff]
        %v3891 = vld [vmem:[#allocation19 + $0x298] sm:$0xff]
        %v3892 = vld [vmem:[#allocation19 + $0x2a0] sm:$0xff]
        %v3893 = vld [vmem:[#allocation19 + $0x2a8] sm:$0xff]
        %v3894 = vld [vmem:[#allocation19 + $0x2b0] sm:$0xff]
        %v3895 = vld [vmem:[#allocation19 + $0x2b8] sm:$0xff]
        %v3896 = vld [vmem:[#allocation19 + $0x2c0] sm:$0xff]
        %v3897 = vld [vmem:[#allocation19 + $0x2c8] sm:$0xff]
        %v3898 = vld [vmem:[#allocation19 + $0x2d0] sm:$0xff]
        %v3899 = vld [vmem:[#allocation19 + $0x2d8] sm:$0xff]
        %v3900 = vld [vmem:[#allocation19 + $0x2e0] sm:$0xff]
        %v3901 = vld [vmem:[#allocation19 + $0x2e8] sm:$0xff]
        %v3902 = vld [vmem:[#allocation19 + $0x2f0] sm:$0xff]
        %v3903 = vld [vmem:[#allocation19 + $0x2f8] sm:$0xff]
        %v3904 = vld [vmem:[#allocation19 + $0x300] sm:$0xff]
        %v3905 = vld [vmem:[#allocation19 + $0x308] sm:$0xff]
        %v3906 = vld [vmem:[#allocation19 + $0x310] sm:$0xff]
        %v3907 = vld [vmem:[#allocation19 + $0x318] sm:$0xff]
        %v3908 = vld [vmem:[#allocation19 + $0x320] sm:$0xff]
        %v3909 = vld [vmem:[#allocation19 + $0x328] sm:$0xff]
        %v3910 = vld [vmem:[#allocation19 + $0x330] sm:$0xff]
        %v3911 = vld [vmem:[#allocation19 + $0x338] sm:$0xff]
        %v3912 = vld [vmem:[#allocation19 + $0x340] sm:$0xff]
        %v3913 = vld [vmem:[#allocation19 + $0x348] sm:$0xff]
        %v3914 = vld [vmem:[#allocation19 + $0x350] sm:$0xff]
        %v3915 = vld [vmem:[#allocation19 + $0x358] sm:$0xff]
        %v3916 = vld [vmem:[#allocation19 + $0x360] sm:$0xff]
        %v3917 = vld [vmem:[#allocation19 + $0x368] sm:$0xff]
        %v3918 = vld [vmem:[#allocation19 + $0x370] sm:$0xff]
        %v3919 = vld [vmem:[#allocation19 + $0x378] sm:$0xff]
        %v3920 = vld [vmem:[#allocation19 + $0x380] sm:$0xff]
        %v3921 = vld [vmem:[#allocation19 + $0x388] sm:$0xff]
        %v3922 = vld [vmem:[#allocation19 + $0x390] sm:$0xff]
        %v3923 = vld [vmem:[#allocation19 + $0x398] sm:$0xff]
        %v3924 = vld [vmem:[#allocation19 + $0x3a0] sm:$0xff]
        %v3925 = vld [vmem:[#allocation19 + $0x3a8] sm:$0xff]
        %v3926 = vld [vmem:[#allocation19 + $0x3b0] sm:$0xff]
        %v3927 = vld [vmem:[#allocation19 + $0x3b8] sm:$0xff]
        %v3928 = vld [vmem:[#allocation19 + $0x3c0] sm:$0xff]
        %v3929 = vld [vmem:[#allocation19 + $0x3c8] sm:$0xff]
        %v3930 = vld [vmem:[#allocation19 + $0x3d0] sm:$0xff]
        %v3931 = vld [vmem:[#allocation19 + $0x3d8] sm:$0xff]
        %v3932 = vld [vmem:[#allocation19 + $0x3e0] sm:$0xff]
        %v3933 = vld [vmem:[#allocation19 + $0x3e8] sm:$0xff]
        %v3934 = vld [vmem:[#allocation19 + $0x3f0] sm:$0xff]
        %v3935 = vld [vmem:[#allocation19 + $0x3f8] sm:$0xff]
        %v3936 = vld [vmem:[#allocation19 + $0x400] sm:$0xff]
        %v3937 = vld [vmem:[#allocation19 + $0x408] sm:$0xff]
        %v3938 = vld [vmem:[#allocation19 + $0x410] sm:$0xff]
        %v3939 = vld [vmem:[#allocation19 + $0x418] sm:$0xff]
        %v3940 = vld [vmem:[#allocation19 + $0x420] sm:$0xff]
        %v3941 = vld [vmem:[#allocation19 + $0x428] sm:$0xff]
        %v3942 = vld [vmem:[#allocation19 + $0x430] sm:$0xff]
        %v3943 = vld [vmem:[#allocation19 + $0x438] sm:$0xff]
        %v3944 = vld [vmem:[#allocation19 + $0x440] sm:$0xff]
        %v3945 = vld [vmem:[#allocation19 + $0x448] sm:$0xff]
        %v3946 = vld [vmem:[#allocation19 + $0x450] sm:$0xff]
        %v3947 = vld [vmem:[#allocation19 + $0x458] sm:$0xff]
        %v3948 = vld [vmem:[#allocation19 + $0x460] sm:$0xff]
        %v3949 = vld [vmem:[#allocation19 + $0x468] sm:$0xff]
        %v3950 = vld [vmem:[#allocation19 + $0x470] sm:$0xff]
        %v3951 = vld [vmem:[#allocation19 + $0x478] sm:$0xff]
        %v3952 = vld [vmem:[#allocation20 + $0x11] sm:$0x7]
        %v3954 = vperm.slane %v3952, 0
        %v3955 = vperm.slane %v3952, 1
        %v3956 = vperm.slane %v3952, 2
        %3960 = vmatpush.msra.mxu0 %v3853
        %3961 = vmatpush.msra.mxu0 %v3850
        %3962 = vmatpush.msra.mxu0 %v3847
        %3963 = vmatpush.msra.mxu0 %v3844
        %3964 = vmatpush.msra.mxu0 %v3841
        %3965 = vmatpush.msra.mxu0 %v3838
        %3966 = vmatpush.msra.mxu0 %v3835
        %3967 = vmatpush.msra.mxu0 %v3832
        %3968 = vmatpush.msra.mxu0 %v3829
        %3969 = vmatpush.msra.mxu0 %v3826
        %3970 = vmatpush.msra.mxu0 %v3823
        %3971 = vmatpush.msra.mxu0 %v3820
        %3972 = vmatpush.msra.mxu0 %v3817
        %3973 = vmatpush.msra.mxu0 %v3814
        %3974 = vmatpush.msra.mxu0 %v3811
        %3975 = vmatpush.msra.mxu0 %v3808
        %3976 = vmatmul.f32.gmra.mxu0 %v3760
        %v3977 = vpop.f32.mrf.mxu0
        %v3978 = vadd.f32 %v3954, %v3977
        %3979 = vmatmul.f32.gmra.mxu0 %v3763
        %v3980 = vpop.f32.mrf.mxu0
        %v3981 = vadd.f32 %v3954, %v3980
        %3982 = vmatmul.f32.gmra.mxu0 %v3766
        %v3983 = vpop.f32.mrf.mxu0
        %v3984 = vadd.f32 %v3954, %v3983
        %3985 = vmatmul.f32.gmra.mxu0 %v3769
        %v3986 = vpop.f32.mrf.mxu0
        %v3987 = vadd.f32 %v3954, %v3986
        %3988 = vmatmul.f32.gmra.mxu0 %v3772
        %v3989 = vpop.f32.mrf.mxu0
        %v3990 = vadd.f32 %v3954, %v3989
        %3991 = vmatmul.f32.gmra.mxu0 %v3775
        %v3992 = vpop.f32.mrf.mxu0
        %v3993 = vadd.f32 %v3954, %v3992
        %3994 = vmatmul.f32.gmra.mxu0 %v3778
        %v3995 = vpop.f32.mrf.mxu0
        %v3996 = vadd.f32 %v3954, %v3995
        %3997 = vmatmul.f32.gmra.mxu0 %v3781
        %v3998 = vpop.f32.mrf.mxu0
        %v3999 = vadd.f32 %v3954, %v3998
        %4000 = vmatmul.f32.gmra.mxu0 %v3784
        %v4001 = vpop.f32.mrf.mxu0
        %v4002 = vadd.f32 %v3954, %v4001
        %4003 = vmatmul.f32.gmra.mxu0 %v3787
        %v4004 = vpop.f32.mrf.mxu0
        %v4005 = vadd.f32 %v3954, %v4004
        %4006 = vmatmul.f32.gmra.mxu0 %v3790
        %v4007 = vpop.f32.mrf.mxu0
        %v4008 = vadd.f32 %v3954, %v4007
        %4009 = vmatmul.f32.gmra.mxu0 %v3793
        %v4010 = vpop.f32.mrf.mxu0
        %v4011 = vadd.f32 %v3954, %v4010
        %4012 = vmatmul.f32.gmra.mxu0 %v3796
        %v4013 = vpop.f32.mrf.mxu0
        %v4014 = vadd.f32 %v3954, %v4013
        %4015 = vmatmul.f32.gmra.mxu0 %v3799
        %v4016 = vpop.f32.mrf.mxu0
        %v4017 = vadd.f32 %v3954, %v4016
        %4018 = vmatmul.f32.gmra.mxu0 %v3802
        %v4019 = vpop.f32.mrf.mxu0
        %v4020 = vadd.f32 %v3954, %v4019
        %4021 = vmatmul.f32.gmra.mxu0 %v3805
        %v4022 = vpop.f32.mrf.mxu0
        %v4023 = vadd.f32 %v3954, %v4022
        %4024 = vdwg.mxu0
        %4025 = vmatpush.msra.mxu0 %v3901
        %4026 = vmatpush.msra.mxu0 %v3898
        %4027 = vmatpush.msra.mxu0 %v3895
        %4028 = vmatpush.msra.mxu0 %v3892
        %4029 = vmatpush.msra.mxu0 %v3889
        %4030 = vmatpush.msra.mxu0 %v3886
        %4031 = vmatpush.msra.mxu0 %v3883
        %4032 = vmatpush.msra.mxu0 %v3880
        %4033 = vmatpush.msra.mxu0 %v3877
        %4034 = vmatpush.msra.mxu0 %v3874
        %4035 = vmatpush.msra.mxu0 %v3871
        %4036 = vmatpush.msra.mxu0 %v3868
        %4037 = vmatpush.msra.mxu0 %v3865
        %4038 = vmatpush.msra.mxu0 %v3862
        %4039 = vmatpush.msra.mxu0 %v3859
        %4040 = vmatpush.msra.mxu0 %v3856
        %4041 = vmatmul.f32.gmra.mxu0 %v3761
        %v4042 = vpop.f32.mrf.mxu0
        %v4043 = vadd.f32 %v3978, %v4042
        %4044 = vmatmul.f32.gmra.mxu0 %v3764
        %v4045 = vpop.f32.mrf.mxu0
        %v4046 = vadd.f32 %v3981, %v4045
        %4047 = vmatmul.f32.gmra.mxu0 %v3767
        %v4048 = vpop.f32.mrf.mxu0
        %v4049 = vadd.f32 %v3984, %v4048
        %4050 = vmatmul.f32.gmra.mxu0 %v3770
        %v4051 = vpop.f32.mrf.mxu0
        %v4052 = vadd.f32 %v3987, %v4051
        %4053 = vmatmul.f32.gmra.mxu0 %v3773
        %v4054 = vpop.f32.mrf.mxu0
        %v4055 = vadd.f32 %v3990, %v4054
        %4056 = vmatmul.f32.gmra.mxu0 %v3776
        %v4057 = vpop.f32.mrf.mxu0
        %v4058 = vadd.f32 %v3993, %v4057
        %4059 = vmatmul.f32.gmra.mxu0 %v3779
        %v4060 = vpop.f32.mrf.mxu0
        %v4061 = vadd.f32 %v3996, %v4060
        %4062 = vmatmul.f32.gmra.mxu0 %v3782
        %v4063 = vpop.f32.mrf.mxu0
        %v4064 = vadd.f32 %v3999, %v4063
        %4065 = vmatmul.f32.gmra.mxu0 %v3785
        %v4066 = vpop.f32.mrf.mxu0
        %v4067 = vadd.f32 %v4002, %v4066
        %4068 = vmatmul.f32.gmra.mxu0 %v3788
        %v4069 = vpop.f32.mrf.mxu0
        %v4070 = vadd.f32 %v4005, %v4069
        %4071 = vmatmul.f32.gmra.mxu0 %v3791
        %v4072 = vpop.f32.mrf.mxu0
        %v4073 = vadd.f32 %v4008, %v4072
        %4074 = vmatmul.f32.gmra.mxu0 %v3794
        %v4075 = vpop.f32.mrf.mxu0
        %v4076 = vadd.f32 %v4011, %v4075
        %4077 = vmatmul.f32.gmra.mxu0 %v3797
        %v4078 = vpop.f32.mrf.mxu0
        %v4079 = vadd.f32 %v4014, %v4078
        %4080 = vmatmul.f32.gmra.mxu0 %v3800
        %v4081 = vpop.f32.mrf.mxu0
        %v4082 = vadd.f32 %v4017, %v4081
        %4083 = vmatmul.f32.gmra.mxu0 %v3803
        %v4084 = vpop.f32.mrf.mxu0
        %v4085 = vadd.f32 %v4020, %v4084
        %4086 = vmatmul.f32.gmra.mxu0 %v3806
        %v4087 = vpop.f32.mrf.mxu0
        %v4088 = vadd.f32 %v4023, %v4087
        %4089 = vdwg.mxu0
        %4090 = vmatpush.msra.mxu0 %v3949
        %4091 = vmatpush.msra.mxu0 %v3946
        %4092 = vmatpush.msra.mxu0 %v3943
        %4093 = vmatpush.msra.mxu0 %v3940
        %4094 = vmatpush.msra.mxu0 %v3937
        %4095 = vmatpush.msra.mxu0 %v3934
        %4096 = vmatpush.msra.mxu0 %v3931
        %4097 = vmatpush.msra.mxu0 %v3928
        %4098 = vmatpush.msra.mxu0 %v3925
        %4099 = vmatpush.msra.mxu0 %v3922
        %4100 = vmatpush.msra.mxu0 %v3919
        %4101 = vmatpush.msra.mxu0 %v3916
        %4102 = vmatpush.msra.mxu0 %v3913
        %4103 = vmatpush.msra.mxu0 %v3910
        %4104 = vmatpush.msra.mxu0 %v3907
        %4105 = vmatpush.msra.mxu0 %v3904
        %4106 = vmatmul.f32.gmra.mxu0 %v3762
        %v4107 = vpop.f32.mrf.mxu0
        %v4108 = vadd.f32 %v4043, %v4107
        %4109 = vmatmul.f32.gmra.mxu0 %v3765
        %v4110 = vpop.f32.mrf.mxu0
        %v4111 = vadd.f32 %v4046, %v4110
        %4112 = vmatmul.f32.gmra.mxu0 %v3768
        %v4113 = vpop.f32.mrf.mxu0
        %v4114 = vadd.f32 %v4049, %v4113
        %4115 = vmatmul.f32.gmra.mxu0 %v3771
        %v4116 = vpop.f32.mrf.mxu0
        %v4117 = vadd.f32 %v4052, %v4116
        %4118 = vmatmul.f32.gmra.mxu0 %v3774
        %v4119 = vpop.f32.mrf.mxu0
        %v4120 = vadd.f32 %v4055, %v4119
        %4121 = vmatmul.f32.gmra.mxu0 %v3777
        %v4122 = vpop.f32.mrf.mxu0
        %v4123 = vadd.f32 %v4058, %v4122
        %4124 = vmatmul.f32.gmra.mxu0 %v3780
        %v4125 = vpop.f32.mrf.mxu0
        %v4126 = vadd.f32 %v4061, %v4125
        %4127 = vmatmul.f32.gmra.mxu0 %v3783
        %v4128 = vpop.f32.mrf.mxu0
        %v4129 = vadd.f32 %v4064, %v4128
        %4130 = vmatmul.f32.gmra.mxu0 %v3786
        %v4131 = vpop.f32.mrf.mxu0
        %v4132 = vadd.f32 %v4067, %v4131
        %4133 = vmatmul.f32.gmra.mxu0 %v3789
        %v4134 = vpop.f32.mrf.mxu0
        %v4135 = vadd.f32 %v4070, %v4134
        %4136 = vmatmul.f32.gmra.mxu0 %v3792
        %v4137 = vpop.f32.mrf.mxu0
        %v4138 = vadd.f32 %v4073, %v4137
        %4139 = vmatmul.f32.gmra.mxu0 %v3795
        %v4140 = vpop.f32.mrf.mxu0
        %v4141 = vadd.f32 %v4076, %v4140
        %4142 = vmatmul.f32.gmra.mxu0 %v3798
        %v4143 = vpop.f32.mrf.mxu0
        %v4144 = vadd.f32 %v4079, %v4143
        %4145 = vmatmul.f32.gmra.mxu0 %v3801
        %v4146 = vpop.f32.mrf.mxu0
        %v4147 = vadd.f32 %v4082, %v4146
        %4148 = vmatmul.f32.gmra.mxu0 %v3804
        %v4149 = vpop.f32.mrf.mxu0
        %v4150 = vadd.f32 %v4085, %v4149
        %4151 = vmatmul.f32.gmra.mxu0 %v3807
        %v4152 = vpop.f32.mrf.mxu0
        %v4153 = vadd.f32 %v4088, %v4152
        %4154 = vdwg.mxu0
        %4155 = vmatpush.msra.mxu0 %v3854
        %4156 = vmatpush.msra.mxu0 %v3851
        %4157 = vmatpush.msra.mxu0 %v3848
        %4158 = vmatpush.msra.mxu0 %v3845
        %4159 = vmatpush.msra.mxu0 %v3842
        %4160 = vmatpush.msra.mxu0 %v3839
        %4161 = vmatpush.msra.mxu0 %v3836
        %4162 = vmatpush.msra.mxu0 %v3833
        %4163 = vmatpush.msra.mxu0 %v3830
        %4164 = vmatpush.msra.mxu0 %v3827
        %4165 = vmatpush.msra.mxu0 %v3824
        %4166 = vmatpush.msra.mxu0 %v3821
        %4167 = vmatpush.msra.mxu0 %v3818
        %4168 = vmatpush.msra.mxu0 %v3815
        %4169 = vmatpush.msra.mxu0 %v3812
        %4170 = vmatpush.msra.mxu0 %v3809
        %4171 = vmatmul.f32.gmra.mxu0 %v3760
        %v4172 = vpop.f32.mrf.mxu0
        %v4173 = vadd.f32 %v3955, %v4172
        %4174 = vmatmul.f32.gmra.mxu0 %v3763
        %v4175 = vpop.f32.mrf.mxu0
        %v4176 = vadd.f32 %v3955, %v4175
        %4177 = vmatmul.f32.gmra.mxu0 %v3766
        %v4178 = vpop.f32.mrf.mxu0
        %v4179 = vadd.f32 %v3955, %v4178
        %4180 = vmatmul.f32.gmra.mxu0 %v3769
        %v4181 = vpop.f32.mrf.mxu0
        %v4182 = vadd.f32 %v3955, %v4181
        %4183 = vmatmul.f32.gmra.mxu0 %v3772
        %v4184 = vpop.f32.mrf.mxu0
        %v4185 = vadd.f32 %v3955, %v4184
        %4186 = vmatmul.f32.gmra.mxu0 %v3775
        %v4187 = vpop.f32.mrf.mxu0
        %v4188 = vadd.f32 %v3955, %v4187
        %4189 = vmatmul.f32.gmra.mxu0 %v3778
        %v4190 = vpop.f32.mrf.mxu0
        %v4191 = vadd.f32 %v3955, %v4190
        %4192 = vmatmul.f32.gmra.mxu0 %v3781
        %v4193 = vpop.f32.mrf.mxu0
        %v4194 = vadd.f32 %v3955, %v4193
        %4195 = vmatmul.f32.gmra.mxu0 %v3784
        %v4196 = vpop.f32.mrf.mxu0
        %v4197 = vadd.f32 %v3955, %v4196
        %4198 = vmatmul.f32.gmra.mxu0 %v3787
        %v4199 = vpop.f32.mrf.mxu0
        %v4200 = vadd.f32 %v3955, %v4199
        %4201 = vmatmul.f32.gmra.mxu0 %v3790
        %v4202 = vpop.f32.mrf.mxu0
        %v4203 = vadd.f32 %v3955, %v4202
        %4204 = vmatmul.f32.gmra.mxu0 %v3793
        %v4205 = vpop.f32.mrf.mxu0
        %v4206 = vadd.f32 %v3955, %v4205
        %4207 = vmatmul.f32.gmra.mxu0 %v3796
        %v4208 = vpop.f32.mrf.mxu0
        %v4209 = vadd.f32 %v3955, %v4208
        %4210 = vmatmul.f32.gmra.mxu0 %v3799
        %v4211 = vpop.f32.mrf.mxu0
        %v4212 = vadd.f32 %v3955, %v4211
        %4213 = vmatmul.f32.gmra.mxu0 %v3802
        %v4214 = vpop.f32.mrf.mxu0
        %v4215 = vadd.f32 %v3955, %v4214
        %4216 = vmatmul.f32.gmra.mxu0 %v3805
        %v4217 = vpop.f32.mrf.mxu0
        %v4218 = vadd.f32 %v3955, %v4217
        %4219 = vdwg.mxu0
        %4220 = vmatpush.msra.mxu0 %v3902
        %4221 = vmatpush.msra.mxu0 %v3899
        %4222 = vmatpush.msra.mxu0 %v3896
        %4223 = vmatpush.msra.mxu0 %v3893
        %4224 = vmatpush.msra.mxu0 %v3890
        %4225 = vmatpush.msra.mxu0 %v3887
        %4226 = vmatpush.msra.mxu0 %v3884
        %4227 = vmatpush.msra.mxu0 %v3881
        %4228 = vmatpush.msra.mxu0 %v3878
        %4229 = vmatpush.msra.mxu0 %v3875
        %4230 = vmatpush.msra.mxu0 %v3872
        %4231 = vmatpush.msra.mxu0 %v3869
        %4232 = vmatpush.msra.mxu0 %v3866
        %4233 = vmatpush.msra.mxu0 %v3863
        %4234 = vmatpush.msra.mxu0 %v3860
        %4235 = vmatpush.msra.mxu0 %v3857
        %4236 = vmatmul.f32.gmra.mxu0 %v3761
        %v4237 = vpop.f32.mrf.mxu0
        %v4238 = vadd.f32 %v4173, %v4237
        %4239 = vmatmul.f32.gmra.mxu0 %v3764
        %v4240 = vpop.f32.mrf.mxu0
        %v4241 = vadd.f32 %v4176, %v4240
        %4242 = vmatmul.f32.gmra.mxu0 %v3767
        %v4243 = vpop.f32.mrf.mxu0
        %v4244 = vadd.f32 %v4179, %v4243
        %4245 = vmatmul.f32.gmra.mxu0 %v3770
        %v4246 = vpop.f32.mrf.mxu0
        %v4247 = vadd.f32 %v4182, %v4246
        %4248 = vmatmul.f32.gmra.mxu0 %v3773
        %v4249 = vpop.f32.mrf.mxu0
        %v4250 = vadd.f32 %v4185, %v4249
        %4251 = vmatmul.f32.gmra.mxu0 %v3776
        %v4252 = vpop.f32.mrf.mxu0
        %v4253 = vadd.f32 %v4188, %v4252
        %4254 = vmatmul.f32.gmra.mxu0 %v3779
        %v4255 = vpop.f32.mrf.mxu0
        %v4256 = vadd.f32 %v4191, %v4255
        %4257 = vmatmul.f32.gmra.mxu0 %v3782
        %v4258 = vpop.f32.mrf.mxu0
        %v4259 = vadd.f32 %v4194, %v4258
        %4260 = vmatmul.f32.gmra.mxu0 %v3785
        %v4261 = vpop.f32.mrf.mxu0
        %v4262 = vadd.f32 %v4197, %v4261
        %4263 = vmatmul.f32.gmra.mxu0 %v3788
        %v4264 = vpop.f32.mrf.mxu0
        %v4265 = vadd.f32 %v4200, %v4264
        %4266 = vmatmul.f32.gmra.mxu0 %v3791
        %v4267 = vpop.f32.mrf.mxu0
        %v4268 = vadd.f32 %v4203, %v4267
        %4269 = vmatmul.f32.gmra.mxu0 %v3794
        %v4270 = vpop.f32.mrf.mxu0
        %v4271 = vadd.f32 %v4206, %v4270
        %4272 = vmatmul.f32.gmra.mxu0 %v3797
        %v4273 = vpop.f32.mrf.mxu0
        %v4274 = vadd.f32 %v4209, %v4273
        %4275 = vmatmul.f32.gmra.mxu0 %v3800
        %v4276 = vpop.f32.mrf.mxu0
        %v4277 = vadd.f32 %v4212, %v4276
        %4278 = vmatmul.f32.gmra.mxu0 %v3803
        %v4279 = vpop.f32.mrf.mxu0
        %v4280 = vadd.f32 %v4215, %v4279
        %4281 = vmatmul.f32.gmra.mxu0 %v3806
        %v4282 = vpop.f32.mrf.mxu0
        %v4283 = vadd.f32 %v4218, %v4282
        %4284 = vdwg.mxu0
        %4285 = vmatpush.msra.mxu0 %v3950
        %4286 = vmatpush.msra.mxu0 %v3947
        %4287 = vmatpush.msra.mxu0 %v3944
        %4288 = vmatpush.msra.mxu0 %v3941
        %4289 = vmatpush.msra.mxu0 %v3938
        %4290 = vmatpush.msra.mxu0 %v3935
        %4291 = vmatpush.msra.mxu0 %v3932
        %4292 = vmatpush.msra.mxu0 %v3929
        %4293 = vmatpush.msra.mxu0 %v3926
        %4294 = vmatpush.msra.mxu0 %v3923
        %4295 = vmatpush.msra.mxu0 %v3920
        %4296 = vmatpush.msra.mxu0 %v3917
        %4297 = vmatpush.msra.mxu0 %v3914
        %4298 = vmatpush.msra.mxu0 %v3911
        %4299 = vmatpush.msra.mxu0 %v3908
        %4300 = vmatpush.msra.mxu0 %v3905
        %4301 = vmatmul.f32.gmra.mxu0 %v3762
        %v4302 = vpop.f32.mrf.mxu0
        %v4303 = vadd.f32 %v4238, %v4302
        %4304 = vmatmul.f32.gmra.mxu0 %v3765
        %v4305 = vpop.f32.mrf.mxu0
        %v4306 = vadd.f32 %v4241, %v4305
        %4307 = vmatmul.f32.gmra.mxu0 %v3768
        %v4308 = vpop.f32.mrf.mxu0
        %v4309 = vadd.f32 %v4244, %v4308
        %4310 = vmatmul.f32.gmra.mxu0 %v3771
        %v4311 = vpop.f32.mrf.mxu0
        %v4312 = vadd.f32 %v4247, %v4311
        %4313 = vmatmul.f32.gmra.mxu0 %v3774
        %v4314 = vpop.f32.mrf.mxu0
        %v4315 = vadd.f32 %v4250, %v4314
        %4316 = vmatmul.f32.gmra.mxu0 %v3777
        %v4317 = vpop.f32.mrf.mxu0
        %v4318 = vadd.f32 %v4253, %v4317
        %4319 = vmatmul.f32.gmra.mxu0 %v3780
        %v4320 = vpop.f32.mrf.mxu0
        %v4321 = vadd.f32 %v4256, %v4320
        %4322 = vmatmul.f32.gmra.mxu0 %v3783
        %v4323 = vpop.f32.mrf.mxu0
        %v4324 = vadd.f32 %v4259, %v4323
        %4325 = vmatmul.f32.gmra.mxu0 %v3786
        %v4326 = vpop.f32.mrf.mxu0
        %v4327 = vadd.f32 %v4262, %v4326
        %4328 = vmatmul.f32.gmra.mxu0 %v3789
        %v4329 = vpop.f32.mrf.mxu0
        %v4330 = vadd.f32 %v4265, %v4329
        %4331 = vmatmul.f32.gmra.mxu0 %v3792
        %v4332 = vpop.f32.mrf.mxu0
        %v4333 = vadd.f32 %v4268, %v4332
        %4334 = vmatmul.f32.gmra.mxu0 %v3795
        %v4335 = vpop.f32.mrf.mxu0
        %v4336 = vadd.f32 %v4271, %v4335
        %4337 = vmatmul.f32.gmra.mxu0 %v3798
        %v4338 = vpop.f32.mrf.mxu0
        %v4339 = vadd.f32 %v4274, %v4338
        %4340 = vmatmul.f32.gmra.mxu0 %v3801
        %v4341 = vpop.f32.mrf.mxu0
        %v4342 = vadd.f32 %v4277, %v4341
        %4343 = vmatmul.f32.gmra.mxu0 %v3804
        %v4344 = vpop.f32.mrf.mxu0
        %v4345 = vadd.f32 %v4280, %v4344
        %4346 = vmatmul.f32.gmra.mxu0 %v3807
        %v4347 = vpop.f32.mrf.mxu0
        %v4348 = vadd.f32 %v4283, %v4347
        %4349 = vdwg.mxu0
        %4350 = vmatpush.msra.mxu0 %v3855
        %4351 = vmatpush.msra.mxu0 %v3852
        %4352 = vmatpush.msra.mxu0 %v3849
        %4353 = vmatpush.msra.mxu0 %v3846
        %4354 = vmatpush.msra.mxu0 %v3843
        %4355 = vmatpush.msra.mxu0 %v3840
        %4356 = vmatpush.msra.mxu0 %v3837
        %4357 = vmatpush.msra.mxu0 %v3834
        %4358 = vmatpush.msra.mxu0 %v3831
        %4359 = vmatpush.msra.mxu0 %v3828
        %4360 = vmatpush.msra.mxu0 %v3825
        %4361 = vmatpush.msra.mxu0 %v3822
        %4362 = vmatpush.msra.mxu0 %v3819
        %4363 = vmatpush.msra.mxu0 %v3816
        %4364 = vmatpush.msra.mxu0 %v3813
        %4365 = vmatpush.msra.mxu0 %v3810
        %4366 = vmatmul.f32.gmra.mxu0 %v3760
        %v4367 = vpop.f32.mrf.mxu0
        %v4368 = vadd.f32 %v3956, %v4367
        %4369 = vmatmul.f32.gmra.mxu0 %v3763
        %v4370 = vpop.f32.mrf.mxu0
        %v4371 = vadd.f32 %v3956, %v4370
        %4372 = vmatmul.f32.gmra.mxu0 %v3766
        %v4373 = vpop.f32.mrf.mxu0
        %v4374 = vadd.f32 %v3956, %v4373
        %4375 = vmatmul.f32.gmra.mxu0 %v3769
        %v4376 = vpop.f32.mrf.mxu0
        %v4377 = vadd.f32 %v3956, %v4376
        %4378 = vmatmul.f32.gmra.mxu0 %v3772
        %v4379 = vpop.f32.mrf.mxu0
        %v4380 = vadd.f32 %v3956, %v4379
        %4381 = vmatmul.f32.gmra.mxu0 %v3775
        %v4382 = vpop.f32.mrf.mxu0
        %v4383 = vadd.f32 %v3956, %v4382
        %4384 = vmatmul.f32.gmra.mxu0 %v3778
        %v4385 = vpop.f32.mrf.mxu0
        %v4386 = vadd.f32 %v3956, %v4385
        %4387 = vmatmul.f32.gmra.mxu0 %v3781
        %v4388 = vpop.f32.mrf.mxu0
        %v4389 = vadd.f32 %v3956, %v4388
        %4390 = vmatmul.f32.gmra.mxu0 %v3784
        %v4391 = vpop.f32.mrf.mxu0
        %v4392 = vadd.f32 %v3956, %v4391
        %4393 = vmatmul.f32.gmra.mxu0 %v3787
        %v4394 = vpop.f32.mrf.mxu0
        %v4395 = vadd.f32 %v3956, %v4394
        %4396 = vmatmul.f32.gmra.mxu0 %v3790
        %v4397 = vpop.f32.mrf.mxu0
        %v4398 = vadd.f32 %v3956, %v4397
        %4399 = vmatmul.f32.gmra.mxu0 %v3793
        %v4400 = vpop.f32.mrf.mxu0
        %v4401 = vadd.f32 %v3956, %v4400
        %4402 = vmatmul.f32.gmra.mxu0 %v3796
        %v4403 = vpop.f32.mrf.mxu0
        %v4404 = vadd.f32 %v3956, %v4403
        %4405 = vmatmul.f32.gmra.mxu0 %v3799
        %v4406 = vpop.f32.mrf.mxu0
        %v4407 = vadd.f32 %v3956, %v4406
        %4408 = vmatmul.f32.gmra.mxu0 %v3802
        %v4409 = vpop.f32.mrf.mxu0
        %v4410 = vadd.f32 %v3956, %v4409
        %4411 = vmatmul.f32.gmra.mxu0 %v3805
        %v4412 = vpop.f32.mrf.mxu0
        %v4413 = vadd.f32 %v3956, %v4412
        %4414 = vdwg.mxu0
        %4415 = vmatpush.msra.mxu0 %v3903
        %4416 = vmatpush.msra.mxu0 %v3900
        %4417 = vmatpush.msra.mxu0 %v3897
        %4418 = vmatpush.msra.mxu0 %v3894
        %4419 = vmatpush.msra.mxu0 %v3891
        %4420 = vmatpush.msra.mxu0 %v3888
        %4421 = vmatpush.msra.mxu0 %v3885
        %4422 = vmatpush.msra.mxu0 %v3882
        %4423 = vmatpush.msra.mxu0 %v3879
        %4424 = vmatpush.msra.mxu0 %v3876
        %4425 = vmatpush.msra.mxu0 %v3873
        %4426 = vmatpush.msra.mxu0 %v3870
        %4427 = vmatpush.msra.mxu0 %v3867
        %4428 = vmatpush.msra.mxu0 %v3864
        %4429 = vmatpush.msra.mxu0 %v3861
        %4430 = vmatpush.msra.mxu0 %v3858
        %4431 = vmatmul.f32.gmra.mxu0 %v3761
        %v4432 = vpop.f32.mrf.mxu0
        %v4433 = vadd.f32 %v4368, %v4432
        %4434 = vmatmul.f32.gmra.mxu0 %v3764
        %v4435 = vpop.f32.mrf.mxu0
        %v4436 = vadd.f32 %v4371, %v4435
        %4437 = vmatmul.f32.gmra.mxu0 %v3767
        %v4438 = vpop.f32.mrf.mxu0
        %v4439 = vadd.f32 %v4374, %v4438
        %4440 = vmatmul.f32.gmra.mxu0 %v3770
        %v4441 = vpop.f32.mrf.mxu0
        %v4442 = vadd.f32 %v4377, %v4441
        %4443 = vmatmul.f32.gmra.mxu0 %v3773
        %v4444 = vpop.f32.mrf.mxu0
        %v4445 = vadd.f32 %v4380, %v4444
        %4446 = vmatmul.f32.gmra.mxu0 %v3776
        %v4447 = vpop.f32.mrf.mxu0
        %v4448 = vadd.f32 %v4383, %v4447
        %4449 = vmatmul.f32.gmra.mxu0 %v3779
        %v4450 = vpop.f32.mrf.mxu0
        %v4451 = vadd.f32 %v4386, %v4450
        %4452 = vmatmul.f32.gmra.mxu0 %v3782
        %v4453 = vpop.f32.mrf.mxu0
        %v4454 = vadd.f32 %v4389, %v4453
        %4455 = vmatmul.f32.gmra.mxu0 %v3785
        %v4456 = vpop.f32.mrf.mxu0
        %v4457 = vadd.f32 %v4392, %v4456
        %4458 = vmatmul.f32.gmra.mxu0 %v3788
        %v4459 = vpop.f32.mrf.mxu0
        %v4460 = vadd.f32 %v4395, %v4459
        %4461 = vmatmul.f32.gmra.mxu0 %v3791
        %v4462 = vpop.f32.mrf.mxu0
        %v4463 = vadd.f32 %v4398, %v4462
        %4464 = vmatmul.f32.gmra.mxu0 %v3794
        %v4465 = vpop.f32.mrf.mxu0
        %v4466 = vadd.f32 %v4401, %v4465
        %4467 = vmatmul.f32.gmra.mxu0 %v3797
        %v4468 = vpop.f32.mrf.mxu0
        %v4469 = vadd.f32 %v4404, %v4468
        %4470 = vmatmul.f32.gmra.mxu0 %v3800
        %v4471 = vpop.f32.mrf.mxu0
        %v4472 = vadd.f32 %v4407, %v4471
        %4473 = vmatmul.f32.gmra.mxu0 %v3803
        %v4474 = vpop.f32.mrf.mxu0
        %v4475 = vadd.f32 %v4410, %v4474
        %4476 = vmatmul.f32.gmra.mxu0 %v3806
        %v4477 = vpop.f32.mrf.mxu0
        %v4478 = vadd.f32 %v4413, %v4477
        %4479 = vdwg.mxu0
        %4480 = vmatpush.msra.mxu0 %v3951
        %4481 = vmatpush.msra.mxu0 %v3948
        %4482 = vmatpush.msra.mxu0 %v3945
        %4483 = vmatpush.msra.mxu0 %v3942
        %4484 = vmatpush.msra.mxu0 %v3939
        %4485 = vmatpush.msra.mxu0 %v3936
        %4486 = vmatpush.msra.mxu0 %v3933
        %4487 = vmatpush.msra.mxu0 %v3930
        %4488 = vmatpush.msra.mxu0 %v3927
        %4489 = vmatpush.msra.mxu0 %v3924
        %4490 = vmatpush.msra.mxu0 %v3921
        %4491 = vmatpush.msra.mxu0 %v3918
        %4492 = vmatpush.msra.mxu0 %v3915
        %4493 = vmatpush.msra.mxu0 %v3912
        %4494 = vmatpush.msra.mxu0 %v3909
        %4495 = vmatpush.msra.mxu0 %v3906
        %4496 = vmatmul.f32.gmra.mxu0 %v3762
        %v4497 = vpop.f32.mrf.mxu0
        %v4498 = vadd.f32 %v4433, %v4497
        %4499 = vmatmul.f32.gmra.mxu0 %v3765
        %v4500 = vpop.f32.mrf.mxu0
        %v4501 = vadd.f32 %v4436, %v4500
        %4502 = vmatmul.f32.gmra.mxu0 %v3768
        %v4503 = vpop.f32.mrf.mxu0
        %v4504 = vadd.f32 %v4439, %v4503
        %4505 = vmatmul.f32.gmra.mxu0 %v3771
        %v4506 = vpop.f32.mrf.mxu0
        %v4507 = vadd.f32 %v4442, %v4506
        %4508 = vmatmul.f32.gmra.mxu0 %v3774
        %v4509 = vpop.f32.mrf.mxu0
        %v4510 = vadd.f32 %v4445, %v4509
        %4511 = vmatmul.f32.gmra.mxu0 %v3777
        %v4512 = vpop.f32.mrf.mxu0
        %v4513 = vadd.f32 %v4448, %v4512
        %4514 = vmatmul.f32.gmra.mxu0 %v3780
        %v4515 = vpop.f32.mrf.mxu0
        %v4516 = vadd.f32 %v4451, %v4515
        %4517 = vmatmul.f32.gmra.mxu0 %v3783
        %v4518 = vpop.f32.mrf.mxu0
        %v4519 = vadd.f32 %v4454, %v4518
        %4520 = vmatmul.f32.gmra.mxu0 %v3786
        %v4521 = vpop.f32.mrf.mxu0
        %v4522 = vadd.f32 %v4457, %v4521
        %4523 = vmatmul.f32.gmra.mxu0 %v3789
        %v4524 = vpop.f32.mrf.mxu0
        %v4525 = vadd.f32 %v4460, %v4524
        %4526 = vmatmul.f32.gmra.mxu0 %v3792
        %v4527 = vpop.f32.mrf.mxu0
        %v4528 = vadd.f32 %v4463, %v4527
        %4529 = vmatmul.f32.gmra.mxu0 %v3795
        %v4530 = vpop.f32.mrf.mxu0
        %v4531 = vadd.f32 %v4466, %v4530
        %4532 = vmatmul.f32.gmra.mxu0 %v3798
        %v4533 = vpop.f32.mrf.mxu0
        %v4534 = vadd.f32 %v4469, %v4533
        %4535 = vmatmul.f32.gmra.mxu0 %v3801
        %v4536 = vpop.f32.mrf.mxu0
        %v4537 = vadd.f32 %v4472, %v4536
        %4538 = vmatmul.f32.gmra.mxu0 %v3804
        %v4539 = vpop.f32.mrf.mxu0
        %v4540 = vadd.f32 %v4475, %v4539
        %4541 = vmatmul.f32.gmra.mxu0 %v3807
        %v4542 = vpop.f32.mrf.mxu0
        %v4543 = vadd.f32 %v4478, %v4542
        %4544 = vdwg.mxu0
        %4545 = vst [vmem:[%s614] sm:$0xff] %v4108
        %4546 = vst [vmem:[%s614 + $0x8] sm:$0xff] %v4303
        %4547 = vst [vmem:[%s614 + $0x10] sm:$0xff] %v4498
        %4548 = vst [vmem:[%s614 + $0x18] sm:$0xff] %v4111
        %4549 = vst [vmem:[%s614 + $0x20] sm:$0xff] %v4306
        %4550 = vst [vmem:[%s614 + $0x28] sm:$0xff] %v4501
        %4551 = vst [vmem:[%s614 + $0x30] sm:$0xff] %v4114
        %4552 = vst [vmem:[%s614 + $0x38] sm:$0xff] %v4309
        %4553 = vst [vmem:[%s614 + $0x40] sm:$0xff] %v4504
        %4554 = vst [vmem:[%s614 + $0x48] sm:$0xff] %v4117
        %4555 = vst [vmem:[%s614 + $0x50] sm:$0xff] %v4312
        %4556 = vst [vmem:[%s614 + $0x58] sm:$0xff] %v4507
        %4557 = vst [vmem:[%s614 + $0x60] sm:$0xff] %v4120
        %4558 = vst [vmem:[%s614 + $0x68] sm:$0xff] %v4315
        %4559 = vst [vmem:[%s614 + $0x70] sm:$0xff] %v4510
        %4560 = vst [vmem:[%s614 + $0x78] sm:$0xff] %v4123
        %4561 = vst [vmem:[%s614 + $0x80] sm:$0xff] %v4318
        %4562 = vst [vmem:[%s614 + $0x88] sm:$0xff] %v4513
        %4563 = vst [vmem:[%s614 + $0x90] sm:$0xff] %v4126
        %4564 = vst [vmem:[%s614 + $0x98] sm:$0xff] %v4321
        %4565 = vst [vmem:[%s614 + $0xa0] sm:$0xff] %v4516
        %4566 = vst [vmem:[%s614 + $0xa8] sm:$0xff] %v4129
        %4567 = vst [vmem:[%s614 + $0xb0] sm:$0xff] %v4324
        %4568 = vst [vmem:[%s614 + $0xb8] sm:$0xff] %v4519
        %4569 = vst [vmem:[%s614 + $0xc0] sm:$0xff] %v4132
        %4570 = vst [vmem:[%s614 + $0xc8] sm:$0xff] %v4327
        %4571 = vst [vmem:[%s614 + $0xd0] sm:$0xff] %v4522
        %4572 = vst [vmem:[%s614 + $0xd8] sm:$0xff] %v4135
        %4573 = vst [vmem:[%s614 + $0xe0] sm:$0xff] %v4330
        %4574 = vst [vmem:[%s614 + $0xe8] sm:$0xff] %v4525
        %4575 = vst [vmem:[%s614 + $0xf0] sm:$0xff] %v4138
        %4576 = vst [vmem:[%s614 + $0xf8] sm:$0xff] %v4333
        %4577 = vst [vmem:[%s614 + $0x100] sm:$0xff] %v4528
        %4578 = vst [vmem:[%s614 + $0x108] sm:$0xff] %v4141
        %4579 = vst [vmem:[%s614 + $0x110] sm:$0xff] %v4336
        %4580 = vst [vmem:[%s614 + $0x118] sm:$0xff] %v4531
        %4581 = vst [vmem:[%s614 + $0x120] sm:$0xff] %v4144
        %4582 = vst [vmem:[%s614 + $0x128] sm:$0xff] %v4339
        %4583 = vst [vmem:[%s614 + $0x130] sm:$0xff] %v4534
        %4584 = vst [vmem:[%s614 + $0x138] sm:$0xff] %v4147
        %4585 = vst [vmem:[%s614 + $0x140] sm:$0xff] %v4342
        %4586 = vst [vmem:[%s614 + $0x148] sm:$0xff] %v4537
        %4587 = vst [vmem:[%s614 + $0x150] sm:$0xff] %v4150
        %4588 = vst [vmem:[%s614 + $0x158] sm:$0xff] %v4345
        %4589 = vst [vmem:[%s614 + $0x160] sm:$0xff] %v4540
        %4590 = vst [vmem:[%s614 + $0x168] sm:$0xff] %v4153
        %4591 = vst [vmem:[%s614 + $0x170] sm:$0xff] %v4348
        %4592 = vst [vmem:[%s614 + $0x178] sm:$0xff] %v4543
        %s4593 = sand.u32 %s300, 1
        %s4594 = scalar_lea.sflag [#allocation4], %s4593
        %s4595 = sand.u32 %s300, 1
        %s4596 = smul.addr %s4595, 384
        %s4597 = scalar_lea.vmem [#allocation22], %s4596
        // Predicated region
        $region117: #{tpu_custom_call.1} parent=67 // pred_check
          %p4598 = pneg %p310
        $region118: #{tpu_custom_call.1} parent=67 // pred_check_branch
          %4600 = sbr.rel (%p4598) target = $region120
        $region119: #{tpu_custom_call.1} parent=67 // pred_region
          %s4601 = smul.u32 16, %s35
          %4603 = vsyncadd %s4594, 0
          %s4604 = smul.addr %s4601, 3
          %s4605 = smul.addr %s4604, 8
          %s4606 = scalar_lea.hbm %s12, %s4605
          %s4607 = sshll.u32 %s4597, 4
          %s4608 = int_to_ptr.vmem [resolvable:$true] %s4607
          %s4609 = sshll.u32 %s4606, 4
          %s4610 = int_to_ptr.hbm [resolvable:$true] %s4609
          %4615 = dma.vmem_to_hbm [thread:$0]  %s4608, 6144, %s4610, %s4594, 384, 384, 24
        $region120: #{tpu_custom_call.1} parent=67 // pred_fallthru
          _
      $region68: #{tpu_custom_call.1} parent=5 // pred_fallthru
        _
      %p4616 = scmp.le.s32.totalorder 2, %s30
      // Predicated region
      $region121: #{tpu_custom_call.1} parent=5 // pred_check
        %p4617 = pneg %p4616
      $region122: #{tpu_custom_call.1} parent=5 // pred_check_branch
        %4619 = sbr.rel (%p4617) target = $region124
      $region123: #{tpu_custom_call.1} parent=5 // pred_region
        %s4620 = ssub.s32 %s30, 2
        // Predicated region
        $region125: #{tpu_custom_call.1} parent=123 // pred_check
          %p4621 = pneg %p316
        $region126: #{tpu_custom_call.1} parent=123 // pred_check_branch
          %4623 = sbr.rel (%p4621) target = $region128
        $region127: #{tpu_custom_call.1} parent=123 // pred_region
          %s4624 = sand.u32 %s301, 1
          %s4625 = scalar_lea.sflag [#allocation4], %s4624
          %s4626 = sand.u32 %s301, 1
          %s4627 = smul.addr %s4626, 384
          %s4628 = scalar_lea.vmem [#allocation22], %s4627
          %4630 = dma.done %s4625, 6144
        $region128: #{tpu_custom_call.1} parent=123 // pred_fallthru
          _
      $region124: #{tpu_custom_call.1} parent=5 // pred_fallthru
        _
    $region6: #{tpu_custom_call.1} parent=1 // loop_footer
      %s34 = sadd.s32 1, %s30
    $region7: #{tpu_custom_call.1} parent=1 // loop_footer_branch
      %29 = sbr.rel target = $region3
    $region8: #{tpu_custom_call.1} parent=1 // loop_exit
      _
    %4631 = vsyncpa [#allocation3], 1
    %s4632 = scalar_lea.sflag [#allocation3], 1
    %4633 = vsyncpa %s4632, 1
    %4634 = vsyncpa [#allocation6], 1
    %4635 = vsyncpa [#allocation9], 1
    %4636 = vsyncpa [#allocation12], 1
    %4637 = vsyncpa [#allocation15], 1
    %4638 = vsyncpa [#allocation18], 1
    %4639 = vsyncpa [#allocation21], 1
    %4640 = vsyncpa [#allocation4], 1
    %s4641 = scalar_lea.sflag [#allocation4], 1
    %4642 = vsyncpa %s4641, 1

</llo_original>
